<compile_context>
chip_gen: v7x
topology: tpu7x:2x2x1
jax: 0.10.0
libtpu: 0.0.40
codegen_flags: <defaults>
</compile_context>

<pallas_src>
import math
import functools

import jax
import jax.numpy as jnp
from jax.experimental import pallas as pl
from jax.experimental.pallas import tpu as pltpu


def _gqa_kernel(q_ref, k_ref, v_ref, wq_ref, wk_ref, wv_ref, wo_ref, o_ref,
                k_sc, v_sc, ctx_sc, *, n_heads, n_kv_heads, head_dim):
    H, C, D = n_heads, n_kv_heads, head_dim
    G = H // C                      # query heads per kv head
    TQ = q_ref.shape[1]
    Skv = k_ref.shape[1]

    # ---- K/V projection hoisted: once per batch element (first q-tile).
    # Results live in persistent VMEM scratch in the (C, Skv, D) per-KV-head
    # layout consumed by the batched score / PV GEMMs (no G-fold repeat). ----
    @pl.when(pl.program_id(1) == 0)
    def _():
        k = jnp.dot(k_ref[0], wk_ref[...],
                    preferred_element_type=jnp.float32)          # (Skv, C*D)
        v = jnp.dot(v_ref[0], wv_ref[...],
                    preferred_element_type=jnp.float32)          # (Skv, C*D)
        kb = k.astype(jnp.bfloat16)
        vb = v.astype(jnp.bfloat16)
        for c in range(C):                                       # static unroll
            k_sc[c] = kb[:, c * D:(c + 1) * D]
            v_sc[c] = vb[:, c * D:(c + 1) * D]

    # ---- Q projection for this tile (1/sqrt(D) already folded into wq). ----
    q = jnp.dot(q_ref[0], wq_ref[...],
                preferred_element_type=jnp.float32)              # (TQ, E) f32
    qb = q.astype(jnp.bfloat16)      # cast once, before the head relayout

    # Head relayout grouped by KV head: (C, G*TQ, D); heads of one group are
    # stacked along rows so each batched GEMM has M = G*TQ.
    qh = jnp.stack([qb[:, h * D:(h + 1) * D] for h in range(H)], axis=0)  # (H,TQ,D)
    qg = qh.reshape(C, G * TQ, D)    # leading-dim regroup, layout preserving

    # ---- Scores: C batched GEMMs, contracting D, K used un-duplicated. ----
    s = jax.lax.dot_general(qg, k_sc[...], (((2,), (2,)), ((0,), (0,))),
                            preferred_element_type=jnp.float32)  # (C, G*TQ, Skv)

    # TODO(synk): optional attention mask (mask=None path implemented only).
    m = jnp.max(s, axis=-1, keepdims=True)
    e = jnp.exp(s - m)
    denom = jnp.sum(e, axis=-1, keepdims=True)                   # (C, G*TQ, 1)

    # TODO(synk): attn_dropout / resid_dropout omitted (eval-mode identity).
    # TODO(synk): for long Skv add a KV grid axis with flash-style online
    #             softmax accumulators (v7x's 64 MiB VMEM is the binding limit).
    ctx = jax.lax.dot_general(e.astype(jnp.bfloat16), v_sc[...],
                              (((2,), (1,)), ((0,), (0,))),
                              preferred_element_type=jnp.float32)  # (C, G*TQ, D)
    ctx = ctx * pl.reciprocal(denom, approx=True)                  # deferred norm

    # ---- Pack per-head context into a lane-dense (TQ, E) bf16 slab so the
    # output projection is a single K=E GEMM against the 2-D wo weight. ----
    ctx = ctx.reshape(H, TQ, D)      # leading regroup; row h = c*G + g
    for h in range(H):               # static unroll: H column-slice stores
        ctx_sc[:, h * D:(h + 1) * D] = ctx[h].astype(jnp.bfloat16)

    out = jnp.dot(ctx_sc[...], wo_ref[...],
                  preferred_element_type=jnp.float32)            # (TQ, E)
    o_ref[0] = out.astype(o_ref.dtype)


def gqa_forward(query, key, value, wq, wk, wv, wo, *, n_heads, n_kv_heads):
    B, Sq, E = query.shape
    _, Skv, _ = key.shape
    assert E % n_heads == 0 and n_heads % n_kv_heads == 0
    head_dim = E // n_heads
    Ekv = n_kv_heads * head_dim
    out_dtype = query.dtype
    scale = 1.0 / math.sqrt(head_dim)

    # Query-sequence tile.  256 keeps the (C, G*TQ, Skv) f32 score block small
    # enough for v7x's 64 MiB VMEM while remaining sublane-dense; larger tiles
    # only help once Skv is also tiled (flash-style), so keep it uniform.
    TQ = Sq
    for cand in (256, 512, 128):
        if Sq % cand == 0:
            TQ = cand
            break

    # bf16 activations at the boundary (halves HBM->VMEM DMA); MXU consumes
    # bf16 operands anyway, accumulation stays f32 inside the kernel.
    q_b = query.astype(jnp.bfloat16)
    k_b = key.astype(jnp.bfloat16)
    v_b = value.astype(jnp.bfloat16)
    # Fold the 1/sqrt(head_dim) scale into wq on the host (free).
    wq_b = (wq * scale).astype(jnp.bfloat16)
    wk_b = wk.astype(jnp.bfloat16)
    wv_b = wv.astype(jnp.bfloat16)
    wo_b = wo.astype(jnp.bfloat16)

    kernel = functools.partial(_gqa_kernel, n_heads=n_heads,
                               n_kv_heads=n_kv_heads, head_dim=head_dim)

    return pl.pallas_call(
        kernel,
        out_shape=jax.ShapeDtypeStruct((B, Sq, E), out_dtype),
        grid_spec=pltpu.PrefetchScalarGridSpec(
            num_scalar_prefetch=0,
            grid=(B, Sq // TQ),
            in_specs=[
                pl.BlockSpec((1, TQ, E), lambda b, t: (b, t, 0)),    # query tile
                pl.BlockSpec((1, Skv, E), lambda b, t: (b, 0, 0)),   # key (const over t)
                pl.BlockSpec((1, Skv, E), lambda b, t: (b, 0, 0)),   # value (const over t)
                pl.BlockSpec((E, E), lambda b, t: (0, 0)),           # wq (scale folded)
                pl.BlockSpec((E, Ekv), lambda b, t: (0, 0)),         # wk
                pl.BlockSpec((E, Ekv), lambda b, t: (0, 0)),         # wv
                pl.BlockSpec((E, E), lambda b, t: (0, 0)),           # wo (2-D)
            ],
            out_specs=pl.BlockSpec((1, TQ, E), lambda b, t: (b, t, 0)),
            scratch_shapes=[
                pltpu.VMEM((n_kv_heads, Skv, head_dim), jnp.bfloat16),  # K heads
                pltpu.VMEM((n_kv_heads, Skv, head_dim), jnp.bfloat16),  # V heads
                pltpu.VMEM((TQ, E), jnp.bfloat16),                      # ctx slab
            ]),
        compiler_params=pltpu.CompilerParams(
            # batch axis parallel (covers both v7x TensorCores when B >= 2);
            # q-tile axis arbitrary so the hoisted K/V scratch is reused across it.
            dimension_semantics=("parallel", "arbitrary"),
            vmem_limit_bytes=64 * 1024 * 1024),
    )(q_b, k_b, v_b, wq_b, wk_b, wv_b, wo_b)


def gqa_reference(query, key, value, wq, wk, wv, wo, *, n_heads, n_kv_heads):
    """Pure-JAX f32 reference mirroring the PyTorch forward (eval, no mask)."""
    B, Sq, E = query.shape
    _, Skv, _ = key.shape
    head_dim = E // n_heads
    num_q_per_kv = n_heads // n_kv_heads

    q = query @ wq
    k = key @ wk
    v = value @ wv

    q = q.reshape(B, Sq, n_heads, head_dim).transpose(0, 2, 1, 3)

    def repeat_kv(x):
        x = x.reshape(B, Skv, n_kv_heads, head_dim)
        x = jnp.repeat(x[:, :, :, None, :], num_q_per_kv, axis=3)
        return x.reshape(B, Skv, n_heads, head_dim)

    k = repeat_kv(k).transpose(0, 2, 1, 3)
    v = repeat_kv(v).transpose(0, 2, 1, 3)

    scores = jnp.einsum("bhqd,bhkd->bhqk", q, k) / math.sqrt(head_dim)
    probs = jax.nn.softmax(scores, axis=-1)
    ctx = jnp.einsum("bhqk,bhkd->bhqd", probs, v)
    ctx = ctx.transpose(0, 2, 1, 3).reshape(B, Sq, E)
    return ctx @ wo


if __name__ == "__main__":
    # Small but lane-dense shapes (E multiple of 128; Sq gives 2 q-tiles so the
    # hoisted K/V path is exercised; B=2 covers both v7x TensorCores).
    B = 2
    Sq, Skv = 512, 128
    embedding_dim = 128
    n_heads = 4
    n_kv_heads = 2
    head_dim = embedding_dim // n_heads        # 32
    Ekv = n_kv_heads * head_dim                # 64

    key0 = jax.random.PRNGKey(0)
    k_q, k_k, k_v, k_wq, k_wk, k_wv, k_wo = jax.random.split(key0, 7)

    query = jax.random.normal(k_q, (B, Sq, embedding_dim), dtype=jnp.float32)
    key_t = jax.random.normal(k_k, (B, Skv, embedding_dim), dtype=jnp.float32)
    value = jax.random.normal(k_v, (B, Skv, embedding_dim), dtype=jnp.float32)

    # Deterministic parameter init (Kaiming-uniform-like scale), stored as
    # (in_features, out_features) so the kernel computes x @ W.
    def init_w(k, fan_in, fan_out):
        bound = 1.0 / math.sqrt(fan_in)
        return jax.random.uniform(k, (fan_in, fan_out), jnp.float32, -bound, bound)

    wq = init_w(k_wq, embedding_dim, embedding_dim)
    wk = init_w(k_wk, embedding_dim, Ekv)
    wv = init_w(k_wv, embedding_dim, Ekv)
    wo = init_w(k_wo, embedding_dim, embedding_dim)

    out = gqa_forward(query, key_t, value, wq, wk, wv, wo,
                      n_heads=n_heads, n_kv_heads=n_kv_heads)
    out = jax.block_until_ready(out)

    ref = gqa_reference(query, key_t, value, wq, wk, wv, wo,
                        n_heads=n_heads, n_kv_heads=n_kv_heads)
    assert out.shape == (B, Sq, embedding_dim)
    # bf16 MXU operands + approx reciprocal (kernel) vs pure-f32 reference.
    assert jnp.allclose(out, ref, atol=2e-2, rtol=2e-2), "mismatch vs reference"

    print("KERNEL_OK")
</pallas_src>

<mosaic_0001>
module attributes {stable_mosaic.version = 11 : i64} {
  func.func @_gqa_kernel(%arg0: i32, %arg1: i32, %arg2: memref<1x256x128xbf16, #tpu.memory_space<vmem>>, %arg3: memref<1x128x128xbf16, #tpu.memory_space<vmem>>, %arg4: memref<1x128x128xbf16, #tpu.memory_space<vmem>>, %arg5: memref<128x128xbf16, #tpu.memory_space<vmem>>, %arg6: memref<128x64xbf16, #tpu.memory_space<vmem>>, %arg7: memref<128x64xbf16, #tpu.memory_space<vmem>>, %arg8: memref<128x128xbf16, #tpu.memory_space<vmem>>, %arg9: memref<1x256x128xf32, #tpu.memory_space<vmem>>, %arg10: memref<2x128x32xbf16, #tpu.memory_space<vmem>>, %arg11: memref<2x128x32xbf16, #tpu.memory_space<vmem>>, %arg12: memref<256x128xbf16, #tpu.memory_space<vmem>>) attributes {dimension_semantics = [#tpu.dimension_semantics<parallel>, #tpu.dimension_semantics<arbitrary>], iteration_bounds = array<i64: 2, 2>, scalar_prefetch = 0 : i64, scratch_operands = 3 : i64, tpu.core_type = #tpu.core_type<tc>, window_params = [{transform_indices = @transform_0, window_bounds = array<i64: 1, 256, 128>}, {transform_indices = @transform_1, window_bounds = array<i64: 1, 128, 128>}, {transform_indices = @transform_2, window_bounds = array<i64: 1, 128, 128>}, {pipeline_mode = #tpu.pipeline_mode<synchronous>, transform_indices = @transform_3, window_bounds = array<i64: 128, 128>}, {pipeline_mode = #tpu.pipeline_mode<synchronous>, transform_indices = @transform_4, window_bounds = array<i64: 128, 64>}, {pipeline_mode = #tpu.pipeline_mode<synchronous>, transform_indices = @transform_5, window_bounds = array<i64: 128, 64>}, {pipeline_mode = #tpu.pipeline_mode<synchronous>, transform_indices = @transform_6, window_bounds = array<i64: 128, 128>}, {transform_indices = @transform_7, window_bounds = array<i64: 1, 256, 128>}]} {
    %c0_i32 = arith.constant 0 : i32
    %0 = arith.cmpi eq, %arg1, %c0_i32 : i32
    %1 = arith.extui %0 : i1 to i32
    %c0_i32_0 = arith.constant 0 : i32
    %2 = arith.cmpi ne, %1, %c0_i32_0 : i32
    scf.if %2 {
      %c0_28 = arith.constant 0 : index
      %c0_29 = arith.constant 0 : index
      %c0_30 = arith.constant 0 : index
      %56 = vector.load %arg3[%c0_28, %c0_29, %c0_30] : memref<1x128x128xbf16, #tpu.memory_space<vmem>>, vector<1x128x128xbf16>
      %57 = vector.shape_cast %56 : vector<1x128x128xbf16> to vector<128x128xbf16>
      %c0_31 = arith.constant 0 : index
      %c0_32 = arith.constant 0 : index
      %58 = vector.load %arg6[%c0_31, %c0_32] : memref<128x64xbf16, #tpu.memory_space<vmem>>, vector<128x64xbf16>
      %cst_33 = arith.constant dense<0.000000e+00> : vector<128x64xf32>
      %59 = tpu.matmul %57, %58, %cst_33 {dimension_numbers = #tpu.dot_dimension_numbers<[1], [0], [0], [1], [0, 0, 1, 1], [], []>} : vector<128x128xbf16>, vector<128x64xbf16>, vector<128x64xf32> -> vector<128x64xf32>
      %c0_34 = arith.constant 0 : index
      %c0_35 = arith.constant 0 : index
      %c0_36 = arith.constant 0 : index
      %60 = vector.load %arg4[%c0_34, %c0_35, %c0_36] : memref<1x128x128xbf16, #tpu.memory_space<vmem>>, vector<1x128x128xbf16>
      %61 = vector.shape_cast %60 : vector<1x128x128xbf16> to vector<128x128xbf16>
      %c0_37 = arith.constant 0 : index
      %c0_38 = arith.constant 0 : index
      %62 = vector.load %arg7[%c0_37, %c0_38] : memref<128x64xbf16, #tpu.memory_space<vmem>>, vector<128x64xbf16>
      %cst_39 = arith.constant dense<0.000000e+00> : vector<128x64xf32>
      %63 = tpu.matmul %61, %62, %cst_39 {dimension_numbers = #tpu.dot_dimension_numbers<[1], [0], [0], [1], [0, 0, 1, 1], [], []>} : vector<128x128xbf16>, vector<128x64xbf16>, vector<128x64xf32> -> vector<128x64xf32>
      %64 = arith.truncf %59 : vector<128x64xf32> to vector<128x64xbf16>
      %65 = arith.truncf %63 : vector<128x64xf32> to vector<128x64xbf16>
      %66 = vector.extract_strided_slice %64 {offsets = [0, 0], sizes = [128, 32], strides = [1, 1]} : vector<128x64xbf16> to vector<128x32xbf16>
      %c0_40 = arith.constant 0 : index
      %c0_41 = arith.constant 0 : index
      %c0_42 = arith.constant 0 : index
      %67 = vector.load %arg10[%c0_40, %c0_41, %c0_42] : memref<2x128x32xbf16, #tpu.memory_space<vmem>>, vector<1x128x32xbf16>
      %68 = vector.shape_cast %67 : vector<1x128x32xbf16> to vector<128x32xbf16>
      %69 = vector.shape_cast %66 : vector<128x32xbf16> to vector<1x128x32xbf16>
      tpu.vector_store %arg10[%c0_40, %c0_41, %c0_42], %69 {strides = array<i32>} : memref<2x128x32xbf16, #tpu.memory_space<vmem>>, vector<1x128x32xbf16>,
      %70 = vector.extract_strided_slice %65 {offsets = [0, 0], sizes = [128, 32], strides = [1, 1]} : vector<128x64xbf16> to vector<128x32xbf16>
      %c0_43 = arith.constant 0 : index
      %c0_44 = arith.constant 0 : index
      %c0_45 = arith.constant 0 : index
      %71 = vector.load %arg11[%c0_43, %c0_44, %c0_45] : memref<2x128x32xbf16, #tpu.memory_space<vmem>>, vector<1x128x32xbf16>
      %72 = vector.shape_cast %71 : vector<1x128x32xbf16> to vector<128x32xbf16>
      %73 = vector.shape_cast %70 : vector<128x32xbf16> to vector<1x128x32xbf16>
      tpu.vector_store %arg11[%c0_43, %c0_44, %c0_45], %73 {strides = array<i32>} : memref<2x128x32xbf16, #tpu.memory_space<vmem>>, vector<1x128x32xbf16>,
      %74 = vector.extract_strided_slice %64 {offsets = [0, 32], sizes = [128, 32], strides = [1, 1]} : vector<128x64xbf16> to vector<128x32xbf16>
      %c1 = arith.constant 1 : index
      %c0_46 = arith.constant 0 : index
      %c0_47 = arith.constant 0 : index
      %75 = vector.load %arg10[%c1, %c0_46, %c0_47] : memref<2x128x32xbf16, #tpu.memory_space<vmem>>, vector<1x128x32xbf16>
      %76 = vector.shape_cast %75 : vector<1x128x32xbf16> to vector<128x32xbf16>
      %77 = vector.shape_cast %74 : vector<128x32xbf16> to vector<1x128x32xbf16>
      tpu.vector_store %arg10[%c1, %c0_46, %c0_47], %77 {strides = array<i32>} : memref<2x128x32xbf16, #tpu.memory_space<vmem>>, vector<1x128x32xbf16>,
      %78 = vector.extract_strided_slice %65 {offsets = [0, 32], sizes = [128, 32], strides = [1, 1]} : vector<128x64xbf16> to vector<128x32xbf16>
      %c1_48 = arith.constant 1 : index
      %c0_49 = arith.constant 0 : index
      %c0_50 = arith.constant 0 : index
      %79 = vector.load %arg11[%c1_48, %c0_49, %c0_50] : memref<2x128x32xbf16, #tpu.memory_space<vmem>>, vector<1x128x32xbf16>
      %80 = vector.shape_cast %79 : vector<1x128x32xbf16> to vector<128x32xbf16>
      %81 = vector.shape_cast %78 : vector<128x32xbf16> to vector<1x128x32xbf16>
      tpu.vector_store %arg11[%c1_48, %c0_49, %c0_50], %81 {strides = array<i32>} : memref<2x128x32xbf16, #tpu.memory_space<vmem>>, vector<1x128x32xbf16>,
    } else {
    }
    %c0 = arith.constant 0 : index
    %c0_1 = arith.constant 0 : index
    %c0_2 = arith.constant 0 : index
    %3 = vector.load %arg2[%c0, %c0_1, %c0_2] : memref<1x256x128xbf16, #tpu.memory_space<vmem>>, vector<1x256x128xbf16>
    %4 = vector.shape_cast %3 : vector<1x256x128xbf16> to vector<256x128xbf16>
    %c0_3 = arith.constant 0 : index
    %c0_4 = arith.constant 0 : index
    %5 = vector.load %arg5[%c0_3, %c0_4] : memref<128x128xbf16, #tpu.memory_space<vmem>>, vector<128x128xbf16>
    %cst = arith.constant dense<0.000000e+00> : vector<256x128xf32>
    %6 = tpu.matmul %4, %5, %cst {dimension_numbers = #tpu.dot_dimension_numbers<[1], [0], [0], [1], [0, 0, 1, 1], [], []>} : vector<256x128xbf16>, vector<128x128xbf16>, vector<256x128xf32> -> vector<256x128xf32>
    %7 = arith.truncf %6 : vector<256x128xf32> to vector<256x128xbf16>
    %8 = vector.extract_strided_slice %7 {offsets = [0, 0], sizes = [256, 32], strides = [1, 1]} : vector<256x128xbf16> to vector<256x32xbf16>
    %9 = vector.extract_strided_slice %7 {offsets = [0, 32], sizes = [256, 32], strides = [1, 1]} : vector<256x128xbf16> to vector<256x32xbf16>
    %10 = vector.extract_strided_slice %7 {offsets = [0, 64], sizes = [256, 32], strides = [1, 1]} : vector<256x128xbf16> to vector<256x32xbf16>
    %11 = vector.extract_strided_slice %7 {offsets = [0, 96], sizes = [256, 32], strides = [1, 1]} : vector<256x128xbf16> to vector<256x32xbf16>
    %12 = vector.shape_cast %8 : vector<256x32xbf16> to vector<1x256x32xbf16>
    %13 = vector.shape_cast %9 : vector<256x32xbf16> to vector<1x256x32xbf16>
    %14 = vector.shape_cast %10 : vector<256x32xbf16> to vector<1x256x32xbf16>
    %15 = vector.shape_cast %11 : vector<256x32xbf16> to vector<1x256x32xbf16>
    %16 = tpu.concatenate %12, %13, %14, %15 in 0 : vector<1x256x32xbf16>, vector<1x256x32xbf16>, vector<1x256x32xbf16>, vector<1x256x32xbf16> -> vector<4x256x32xbf16>
    %17 = vector.shape_cast %16 : vector<4x256x32xbf16> to vector<2x512x32xbf16>
    %c0_5 = arith.constant 0 : index
    %c0_6 = arith.constant 0 : index
    %c0_7 = arith.constant 0 : index
    %18 = vector.load %arg10[%c0_5, %c0_6, %c0_7] : memref<2x128x32xbf16, #tpu.memory_space<vmem>>, vector<2x128x32xbf16>
    %cst_8 = arith.constant dense<0.000000e+00> : vector<2x512x128xf32>
    %19 = tpu.matmul %17, %18, %cst_8 {dimension_numbers = #tpu.dot_dimension_numbers<[2], [2], [1], [1], [0, 0, 0, 1, 1, 1], [0], [0]>} : vector<2x512x32xbf16>, vector<2x128x32xbf16>, vector<2x512x128xf32> -> vector<2x512x128xf32>
    %cst_9 = arith.constant dense<0xFF800000> : vector<2x512xf32>
    %20 = vector.multi_reduction <maximumf>, %19, %cst_9 [2] : vector<2x512x128xf32> to vector<2x512xf32>
    %21 = vector.shape_cast %20 : vector<2x512xf32> to vector<2x512x1xf32>
    %22 = vector.broadcast %21 : vector<2x512x1xf32> to vector<2x512x128xf32>
    %23 = arith.subf %19, %22 : vector<2x512x128xf32>
    %24 = math.exp %23 : vector<2x512x128xf32>
    %cst_10 = arith.constant dense<0.000000e+00> : vector<2x512xf32>
    %25 = vector.multi_reduction <add>, %24, %cst_10 [2] : vector<2x512x128xf32> to vector<2x512xf32>
    %26 = vector.shape_cast %25 : vector<2x512xf32> to vector<2x512x1xf32>
    %27 = arith.truncf %24 : vector<2x512x128xf32> to vector<2x512x128xbf16>
    %c0_11 = arith.constant 0 : index
    %c0_12 = arith.constant 0 : index
    %c0_13 = arith.constant 0 : index
    %28 = vector.load %arg11[%c0_11, %c0_12, %c0_13] : memref<2x128x32xbf16, #tpu.memory_space<vmem>>, vector<2x128x32xbf16>
    %cst_14 = arith.constant dense<0.000000e+00> : vector<2x512x32xf32>
    %29 = tpu.matmul %27, %28, %cst_14 {dimension_numbers = #tpu.dot_dimension_numbers<[2], [1], [1], [2], [0, 0, 0, 1, 1, 2], [0], [0]>} : vector<2x512x128xbf16>, vector<2x128x32xbf16>, vector<2x512x32xf32> -> vector<2x512x32xf32>
    %30 = tpu.reciprocal %26 {approx = true} : vector<2x512x1xf32> -> vector<2x512x1xf32>
    %31 = vector.broadcast %30 : vector<2x512x1xf32> to vector<2x512x32xf32>
    %32 = arith.mulf %29, %31 : vector<2x512x32xf32>
    %33 = vector.shape_cast %32 : vector<2x512x32xf32> to vector<4x256x32xf32>
    %34 = vector.extract_strided_slice %33 {offsets = [0, 0, 0], sizes = [1, 256, 32], strides = [1, 1, 1]} : vector<4x256x32xf32> to vector<1x256x32xf32>
    %35 = vector.shape_cast %34 : vector<1x256x32xf32> to vector<256x32xf32>
    %36 = arith.truncf %35 : vector<256x32xf32> to vector<256x32xbf16>
    %c0_15 = arith.constant 0 : index
    %c0_16 = arith.constant 0 : index
    %37 = vector.load %arg12[%c0_15, %c0_16] : memref<256x128xbf16, #tpu.memory_space<vmem>>, vector<256x32xbf16>
    tpu.vector_store %arg12[%c0_15, %c0_16], %36 {strides = array<i32>} : memref<256x128xbf16, #tpu.memory_space<vmem>>, vector<256x32xbf16>,
    %38 = vector.extract_strided_slice %33 {offsets = [1, 0, 0], sizes = [1, 256, 32], strides = [1, 1, 1]} : vector<4x256x32xf32> to vector<1x256x32xf32>
    %39 = vector.shape_cast %38 : vector<1x256x32xf32> to vector<256x32xf32>
    %40 = arith.truncf %39 : vector<256x32xf32> to vector<256x32xbf16>
    %c0_17 = arith.constant 0 : index
    %c32 = arith.constant 32 : index
    %41 = vector.load %arg12[%c0_17, %c32] : memref<256x128xbf16, #tpu.memory_space<vmem>>, vector<256x32xbf16>
    tpu.vector_store %arg12[%c0_17, %c32], %40 {strides = array<i32>} : memref<256x128xbf16, #tpu.memory_space<vmem>>, vector<256x32xbf16>,
    %42 = vector.extract_strided_slice %33 {offsets = [2, 0, 0], sizes = [1, 256, 32], strides = [1, 1, 1]} : vector<4x256x32xf32> to vector<1x256x32xf32>
    %43 = vector.shape_cast %42 : vector<1x256x32xf32> to vector<256x32xf32>
    %44 = arith.truncf %43 : vector<256x32xf32> to vector<256x32xbf16>
    %c0_18 = arith.constant 0 : index
    %c64 = arith.constant 64 : index
    %45 = vector.load %arg12[%c0_18, %c64] : memref<256x128xbf16, #tpu.memory_space<vmem>>, vector<256x32xbf16>
    tpu.vector_store %arg12[%c0_18, %c64], %44 {strides = array<i32>} : memref<256x128xbf16, #tpu.memory_space<vmem>>, vector<256x32xbf16>,
    %46 = vector.extract_strided_slice %33 {offsets = [3, 0, 0], sizes = [1, 256, 32], strides = [1, 1, 1]} : vector<4x256x32xf32> to vector<1x256x32xf32>
    %47 = vector.shape_cast %46 : vector<1x256x32xf32> to vector<256x32xf32>
    %48 = arith.truncf %47 : vector<256x32xf32> to vector<256x32xbf16>
    %c0_19 = arith.constant 0 : index
    %c96 = arith.constant 96 : index
    %49 = vector.load %arg12[%c0_19, %c96] : memref<256x128xbf16, #tpu.memory_space<vmem>>, vector<256x32xbf16>
    tpu.vector_store %arg12[%c0_19, %c96], %48 {strides = array<i32>} : memref<256x128xbf16, #tpu.memory_space<vmem>>, vector<256x32xbf16>,
    %c0_20 = arith.constant 0 : index
    %c0_21 = arith.constant 0 : index
    %50 = vector.load %arg12[%c0_20, %c0_21] : memref<256x128xbf16, #tpu.memory_space<vmem>>, vector<256x128xbf16>
    %c0_22 = arith.constant 0 : index
    %c0_23 = arith.constant 0 : index
    %51 = vector.load %arg8[%c0_22, %c0_23] : memref<128x128xbf16, #tpu.memory_space<vmem>>, vector<128x128xbf16>
    %cst_24 = arith.constant dense<0.000000e+00> : vector<256x128xf32>
    %52 = tpu.matmul %50, %51, %cst_24 {dimension_numbers = #tpu.dot_dimension_numbers<[1], [0], [0], [1], [0, 0, 1, 1], [], []>} : vector<256x128xbf16>, vector<128x128xbf16>, vector<256x128xf32> -> vector<256x128xf32>
    %c0_25 = arith.constant 0 : index
    %c0_26 = arith.constant 0 : index
    %c0_27 = arith.constant 0 : index
    %53 = vector.load %arg9[%c0_25, %c0_26, %c0_27] : memref<1x256x128xf32, #tpu.memory_space<vmem>>, vector<1x256x128xf32>
    %54 = vector.shape_cast %53 : vector<1x256x128xf32> to vector<256x128xf32>
    %55 = vector.shape_cast %52 : vector<256x128xf32> to vector<1x256x128xf32>
    tpu.vector_store %arg9[%c0_25, %c0_26, %c0_27], %55 {strides = array<i32>} : memref<1x256x128xf32, #tpu.memory_space<vmem>>, vector<1x256x128xf32>,
    return
  }
  func.func @transform_0(%arg0: i32, %arg1: i32) -> (i32, i32, i32) {
    %c0_i32 = arith.constant 0 : i32
    %c0_i32_0 = arith.constant 0 : i32
    return %arg0, %arg1, %c0_i32 : i32, i32, i32
  }
  func.func @transform_1(%arg0: i32, %arg1: i32) -> (i32, i32, i32) {
    %c0_i32 = arith.constant 0 : i32
    %c0_i32_0 = arith.constant 0 : i32
    %c0_i32_1 = arith.constant 0 : i32
    return %arg0, %c0_i32, %c0_i32_0 : i32, i32, i32
  }
  func.func @transform_2(%arg0: i32, %arg1: i32) -> (i32, i32, i32) {
    %c0_i32 = arith.constant 0 : i32
    %c0_i32_0 = arith.constant 0 : i32
    %c0_i32_1 = arith.constant 0 : i32
    return %arg0, %c0_i32, %c0_i32_0 : i32, i32, i32
  }
  func.func @transform_3(%arg0: i32, %arg1: i32) -> (i32, i32) {
    %c0_i32 = arith.constant 0 : i32
    %c0_i32_0 = arith.constant 0 : i32
    %c0_i32_1 = arith.constant 0 : i32
    return %c0_i32, %c0_i32_0 : i32, i32
  }
  func.func @transform_4(%arg0: i32, %arg1: i32) -> (i32, i32) {
    %c0_i32 = arith.constant 0 : i32
    %c0_i32_0 = arith.constant 0 : i32
    %c0_i32_1 = arith.constant 0 : i32
    return %c0_i32, %c0_i32_0 : i32, i32
  }
  func.func @transform_5(%arg0: i32, %arg1: i32) -> (i32, i32) {
    %c0_i32 = arith.constant 0 : i32
    %c0_i32_0 = arith.constant 0 : i32
    %c0_i32_1 = arith.constant 0 : i32
    return %c0_i32, %c0_i32_0 : i32, i32
  }
  func.func @transform_6(%arg0: i32, %arg1: i32) -> (i32, i32) {
    %c0_i32 = arith.constant 0 : i32
    %c0_i32_0 = arith.constant 0 : i32
    %c0_i32_1 = arith.constant 0 : i32
    return %c0_i32, %c0_i32_0 : i32, i32
  }
  func.func @transform_7(%arg0: i32, %arg1: i32) -> (i32, i32, i32) {
    %c0_i32 = arith.constant 0 : i32
    %c0_i32_0 = arith.constant 0 : i32
    return %arg0, %arg1, %c0_i32 : i32, i32, i32
  }
}

</mosaic_0001>

<llo_original>
// kernel: tpu_custom_call.1
$region0: #{tpu_custom_call.1}
  #allocation0 [shape = 'u32[]', space=smem, size = 0x4, offset = 0x4, fixed_abs, tag = 'smem constant byte address 0x4 - core index']
  #allocation1 [shape = 'u32[144,128]{1,0:T(1,128)}', space=vmem, size = 0x12000, scoped, tag = 'internal scratch']
  #allocation2 [shape = 'bf16[2,128,32]{2,1,0:T(16,128)(2,1)}', space=vmem, size = 0x10000, scoped, tag = 'scratch operand']
  #allocation3 [shape = 'bf16[2,128,32]{2,1,0:T(16,128)(2,1)}', space=vmem, size = 0x10000, scoped, tag = 'scratch operand']
  #allocation4 [shape = 'bf16[256,128]{1,0:T(16,128)(2,1)}', space=vmem, size = 0x10000, scoped, tag = 'scratch operand']
  %s0 = inlined_call_operand.hbm [shape: bf16[2,512,128], index: 0, kind: input, shape index: {}]
  %s1 = inlined_call_operand.hbm [shape: bf16[2,128,128], index: 1, kind: input, shape index: {}]
  %s2 = inlined_call_operand.hbm [shape: bf16[2,128,128], index: 2, kind: input, shape index: {}]
  %s3 = inlined_call_operand.hbm [shape: bf16[128,128], index: 3, kind: input, shape index: {}]
  %s4 = inlined_call_operand.hbm [shape: bf16[128,64], index: 4, kind: input, shape index: {}]
  %s5 = inlined_call_operand.hbm [shape: bf16[128,64], index: 5, kind: input, shape index: {}]
  %s6 = inlined_call_operand.hbm [shape: bf16[128,128], index: 6, kind: input, shape index: {}]
  %s7 = inlined_call_operand.hbm [shape: f32[2,512,128], index: 7, kind: output, shape index: {}]
  %s8 = sld [smem:[#allocation0]]
  $region93: #{tpu_custom_call.1} parent=0
    _
  %s10 = ssub.s32 1, %s8
  %s11 = scalar_select 0, %s10, %s8
  $region1: #{tpu_custom_call.1} parent=0
    #allocation5 [shape = 'u8[131072]{0}', space=vmem, size = 0x20000, scoped, tag = 'input window, operand 0']
    #allocation6 [shape = 's32[2]{0}', space=sflag, size = 0x8, scoped, tag = 'scoped memory for tpu_custom_call.1']
    #allocation7 [shape = 's32[2]{0}', space=sflag, size = 0x8, scoped, tag = 'scoped memory for tpu_custom_call.1']
    #allocation8 [shape = 'u8[65536]{0}', space=vmem, size = 0x10000, scoped, tag = 'input window, operand 1']
    #allocation9 [shape = 's32[2]{0}', space=sflag, size = 0x8, scoped, tag = 'scoped memory for tpu_custom_call.1']
    #allocation10 [shape = 'u8[65536]{0}', space=vmem, size = 0x10000, scoped, tag = 'input window, operand 2']
    #allocation11 [shape = 'u8[32768]{0}', space=vmem, size = 0x8000, scoped, tag = 'input window, operand 3, single buffered']
    #allocation12 [shape = 's32[1]{0}', space=sflag, size = 0x4, scoped, tag = 'scoped memory for tpu_custom_call.1']
    #allocation13 [shape = 'u8[32768]{0}', space=vmem, size = 0x8000, scoped, tag = 'input window, operand 4, single buffered']
    #allocation14 [shape = 'u8[32768]{0}', space=vmem, size = 0x8000, scoped, tag = 'input window, operand 5, single buffered']
    #allocation15 [shape = 's32[1]{0}', space=sflag, size = 0x4, scoped, tag = 'scoped memory for tpu_custom_call.1']
    #allocation16 [shape = 'u8[32768]{0}', space=vmem, size = 0x8000, scoped, tag = 'input window, operand 6, single buffered']
    #allocation17 [shape = 'u8[262144]{0}', space=vmem, size = 0x40000, scoped, tag = 'output window, operand 0']
    %12 = vsyncpa [#allocation6], 0
    %s13 = scalar_lea.sflag [#allocation6], 1
    %14 = vsyncpa %s13, 0
    %15 = vsyncpa [#allocation9], 0
    %s16 = scalar_lea.sflag [#allocation9], 1
    %17 = vsyncpa %s16, 0
    %18 = vsyncpa [#allocation12], 0
    %19 = vsyncpa [#allocation15], 0
    %20 = vsyncpa [#allocation7], 0
    %s21 = scalar_lea.sflag [#allocation7], 1
    %22 = vsyncpa %s21, 0
    loop: start=0, step=1, limit=6
    $region2: #{tpu_custom_call.1} parent=1 // loop_pre_header
      _
    $region3: #{tpu_custom_call.1} parent=1 // loop_header
      %s24 = sphi 0, %s28
      %p25 = scmp.ge.s32.totalorder %s24, 6
      %s31 = sphi 0, %s43
      %s32 = sphi 0, %s39
      %s33 = sphi 0, %s31
      %s34 = sphi 0, %s32
      %s35 = sphi 0, %s33
      %s36 = sphi 0, %s34
      %s48 = sphi 0, %s50
      %s51 = sphi 0, %s48
      %s52 = sphi 0, %s51
      %s68 = sphi 0, %s52
      %s74 = sphi 0, %s76
      %s77 = sphi 0, %s74
      %s78 = sphi 0, %s77
      %s94 = sphi 0, %s78
      %s100 = sphi 0, %s102
      %s103 = sphi 0, %s100
      %s104 = sphi 0, %s103
      %s120 = sphi 0, %s104
      %s124 = sphi 0, %s124
      %s126 = sphi 0, %s124
      %s127 = sphi 0, %s126
      %s141 = sphi 0, %s127
      %s145 = sphi 0, %s145
      %s147 = sphi 0, %s145
      %s148 = sphi 0, %s147
      %s162 = sphi 0, %s148
      %s166 = sphi 0, %s166
      %s168 = sphi 0, %s166
      %s169 = sphi 0, %s168
      %s183 = sphi 0, %s169
      %s187 = sphi 0, %s187
      %s189 = sphi 0, %s187
      %s190 = sphi 0, %s189
      %s204 = sphi 0, %s190
      %s212 = sphi 0, %s214
      %s215 = sphi 0, %s212
      %s216 = sphi 0, %s215
      %s232 = sphi 0, %s216
    $region4: #{tpu_custom_call.1} parent=1 // loop_header_branch
      %27 = sbr.rel (%p25) target = $region8
    $region5: #{tpu_custom_call.1} parent=1 // loop_body
      %s29 = ssub.s32 %s24, 1
      %s30 = ssub.s32 %s24, 2
      %s37 = sadd.s32 1, %s32
      %p38 = scmp.ge.s32.totalorder %s37, 2
      %s39 = scalar_select %p38, 0, %s37
      %s40 = sadd.s32 1, %s31
      %s41 = scalar_select %p38, %s40, %s31
      %p42 = scmp.ge.s32.totalorder %s41, 2
      %s43 = scalar_select %p42, 0, %s41
      %s44 = ssub.s32 %s31, %s43
      %s45 = ssub.s32 %s32, %s39
      %s46 = sor.u32 %s44, %s45
      %p47 = scmp.eq.s32.totalorder %s46, 0
      %s49 = sadd.s32 %s48, 1
      %s50 = scalar_select %p47, %s48, %s49
      %p53 = pneg %p47
      %p54 = scmp.eq.s32.totalorder %s24, 3
      %p55 = por %p53, %p54
      %p56 = scmp.ne.s32.totalorder %s48, %s51
      %p57 = scmp.eq.s32.totalorder %s24, 0
      %p58 = por %p56, %p57
      %p59 = scmp.ne.s32.totalorder %s48, %s51
      %p60 = scmp.eq.s32.totalorder %s29, 3
      %p61 = por %p59, %p60
      %p62 = scmp.ne.s32.totalorder %s51, %s52
      %p63 = scmp.eq.s32.totalorder %s29, 0
      %p64 = por %p62, %p63
      %p65 = scmp.ne.s32.totalorder %s51, %s52
      %p66 = scmp.eq.s32.totalorder %s30, 3
      %p67 = por %p65, %p66
      %p69 = scmp.ne.s32.totalorder %s52, %s68
      %p70 = scmp.eq.s32.totalorder %s30, 0
      %p71 = por %p69, %p70
      %s72 = ssub.s32 %s31, %s43
      %p73 = scmp.eq.s32.totalorder %s72, 0
      %s75 = sadd.s32 %s74, 1
      %s76 = scalar_select %p73, %s74, %s75
      %p79 = pneg %p73
      %p80 = scmp.eq.s32.totalorder %s24, 3
      %p81 = por %p79, %p80
      %p82 = scmp.ne.s32.totalorder %s74, %s77
      %p83 = scmp.eq.s32.totalorder %s24, 0
      %p84 = por %p82, %p83
      %p85 = scmp.ne.s32.totalorder %s74, %s77
      %p86 = scmp.eq.s32.totalorder %s29, 3
      %p87 = por %p85, %p86
      %p88 = scmp.ne.s32.totalorder %s77, %s78
      %p89 = scmp.eq.s32.totalorder %s29, 0
      %p90 = por %p88, %p89
      %p91 = scmp.ne.s32.totalorder %s77, %s78
      %p92 = scmp.eq.s32.totalorder %s30, 3
      %p93 = por %p91, %p92
      %p95 = scmp.ne.s32.totalorder %s78, %s94
      %p96 = scmp.eq.s32.totalorder %s30, 0
      %p97 = por %p95, %p96
      %s98 = ssub.s32 %s31, %s43
      %p99 = scmp.eq.s32.totalorder %s98, 0
      %s101 = sadd.s32 %s100, 1
      %s102 = scalar_select %p99, %s100, %s101
      %p105 = pneg %p99
      %p106 = scmp.eq.s32.totalorder %s24, 3
      %p107 = por %p105, %p106
      %p108 = scmp.ne.s32.totalorder %s100, %s103
      %p109 = scmp.eq.s32.totalorder %s24, 0
      %p110 = por %p108, %p109
      %p111 = scmp.ne.s32.totalorder %s100, %s103
      %p112 = scmp.eq.s32.totalorder %s29, 3
      %p113 = por %p111, %p112
      %p114 = scmp.ne.s32.totalorder %s103, %s104
      %p115 = scmp.eq.s32.totalorder %s29, 0
      %p116 = por %p114, %p115
      %p117 = scmp.ne.s32.totalorder %s103, %s104
      %p118 = scmp.eq.s32.totalorder %s30, 3
      %p119 = por %p117, %p118
      %p121 = scmp.ne.s32.totalorder %s104, %s120
      %p122 = scmp.eq.s32.totalorder %s30, 0
      %p123 = por %p121, %p122
      %s125 = sadd.s32 %s124, 1
      %p128 = scmp.eq.s32.totalorder %s24, 3
      %p129 = scmp.ne.s32.totalorder %s124, %s126
      %p130 = scmp.eq.s32.totalorder %s24, 0
      %p131 = por %p129, %p130
      %p132 = scmp.ne.s32.totalorder %s124, %s126
      %p133 = scmp.eq.s32.totalorder %s29, 3
      %p134 = por %p132, %p133
      %p135 = scmp.ne.s32.totalorder %s126, %s127
      %p136 = scmp.eq.s32.totalorder %s29, 0
      %p137 = por %p135, %p136
      %p138 = scmp.ne.s32.totalorder %s126, %s127
      %p139 = scmp.eq.s32.totalorder %s30, 3
      %p140 = por %p138, %p139
      %p142 = scmp.ne.s32.totalorder %s127, %s141
      %p143 = scmp.eq.s32.totalorder %s30, 0
      %p144 = por %p142, %p143
      %s146 = sadd.s32 %s145, 1
      %p149 = scmp.eq.s32.totalorder %s24, 3
      %p150 = scmp.ne.s32.totalorder %s145, %s147
      %p151 = scmp.eq.s32.totalorder %s24, 0
      %p152 = por %p150, %p151
      %p153 = scmp.ne.s32.totalorder %s145, %s147
      %p154 = scmp.eq.s32.totalorder %s29, 3
      %p155 = por %p153, %p154
      %p156 = scmp.ne.s32.totalorder %s147, %s148
      %p157 = scmp.eq.s32.totalorder %s29, 0
      %p158 = por %p156, %p157
      %p159 = scmp.ne.s32.totalorder %s147, %s148
      %p160 = scmp.eq.s32.totalorder %s30, 3
      %p161 = por %p159, %p160
      %p163 = scmp.ne.s32.totalorder %s148, %s162
      %p164 = scmp.eq.s32.totalorder %s30, 0
      %p165 = por %p163, %p164
      %s167 = sadd.s32 %s166, 1
      %p170 = scmp.eq.s32.totalorder %s24, 3
      %p171 = scmp.ne.s32.totalorder %s166, %s168
      %p172 = scmp.eq.s32.totalorder %s24, 0
      %p173 = por %p171, %p172
      %p174 = scmp.ne.s32.totalorder %s166, %s168
      %p175 = scmp.eq.s32.totalorder %s29, 3
      %p176 = por %p174, %p175
      %p177 = scmp.ne.s32.totalorder %s168, %s169
      %p178 = scmp.eq.s32.totalorder %s29, 0
      %p179 = por %p177, %p178
      %p180 = scmp.ne.s32.totalorder %s168, %s169
      %p181 = scmp.eq.s32.totalorder %s30, 3
      %p182 = por %p180, %p181
      %p184 = scmp.ne.s32.totalorder %s169, %s183
      %p185 = scmp.eq.s32.totalorder %s30, 0
      %p186 = por %p184, %p185
      %s188 = sadd.s32 %s187, 1
      %p191 = scmp.eq.s32.totalorder %s24, 3
      %p192 = scmp.ne.s32.totalorder %s187, %s189
      %p193 = scmp.eq.s32.totalorder %s24, 0
      %p194 = por %p192, %p193
      %p195 = scmp.ne.s32.totalorder %s187, %s189
      %p196 = scmp.eq.s32.totalorder %s29, 3
      %p197 = por %p195, %p196
      %p198 = scmp.ne.s32.totalorder %s189, %s190
      %p199 = scmp.eq.s32.totalorder %s29, 0
      %p200 = por %p198, %p199
      %p201 = scmp.ne.s32.totalorder %s189, %s190
      %p202 = scmp.eq.s32.totalorder %s30, 3
      %p203 = por %p201, %p202
      %p205 = scmp.ne.s32.totalorder %s190, %s204
      %p206 = scmp.eq.s32.totalorder %s30, 0
      %p207 = por %p205, %p206
      %s208 = ssub.s32 %s31, %s43
      %s209 = ssub.s32 %s32, %s39
      %s210 = sor.u32 %s208, %s209
      %p211 = scmp.eq.s32.totalorder %s210, 0
      %s213 = sadd.s32 %s212, 1
      %s214 = scalar_select %p211, %s212, %s213
      %p217 = pneg %p211
      %p218 = scmp.eq.s32.totalorder %s24, 3
      %p219 = por %p217, %p218
      %p220 = scmp.ne.s32.totalorder %s212, %s215
      %p221 = scmp.eq.s32.totalorder %s24, 0
      %p222 = por %p220, %p221
      %p223 = scmp.ne.s32.totalorder %s212, %s215
      %p224 = scmp.eq.s32.totalorder %s29, 3
      %p225 = por %p223, %p224
      %p226 = scmp.ne.s32.totalorder %s215, %s216
      %p227 = scmp.eq.s32.totalorder %s29, 0
      %p228 = por %p226, %p227
      %p229 = scmp.ne.s32.totalorder %s215, %s216
      %p230 = scmp.eq.s32.totalorder %s30, 3
      %p231 = por %p229, %p230
      %p233 = scmp.ne.s32.totalorder %s216, %s232
      %p234 = scmp.eq.s32.totalorder %s30, 0
      %p235 = por %p233, %p234
      %p236 = scmp.le.s32.totalorder 1, %s24
      %p237 = scmp.lt.s32.totalorder %s24, 5
      %p238 = pnand %p236, %p237
      %p239 = pneg %p238
      // Predicated region
      $region9: #{tpu_custom_call.1} parent=5 // pred_check
        _
      $region10: #{tpu_custom_call.1} parent=5 // pred_check_branch
        %241 = sbr.rel (%p238) target = $region12
      $region11: #{tpu_custom_call.1} parent=5 // pred_region
        %s242 = ssub.s32 %s24, 1
        // Predicated region
        $region13: #{tpu_custom_call.1} parent=11 // pred_check
          %p243 = pneg %p137
        $region14: #{tpu_custom_call.1} parent=11 // pred_check_branch
          %245 = sbr.rel (%p243) target = $region16
        $region15: #{tpu_custom_call.1} parent=11 // pred_region
          %s247 = ssub.s32 1024, 1024
          %248 = vsyncadd [#allocation12], %s247
          %s249 = sshll.u32 [#allocation11], 4
          %s250 = int_to_ptr.vmem [resolvable:$true] %s249
          %255 = dma.hbm_to_vmem [thread:$0]  %s3, 1024, %s250, [#allocation12], 64, 64, 4
        $region16: #{tpu_custom_call.1} parent=11 // pred_fallthru
          _
        // Predicated region
        $region17: #{tpu_custom_call.1} parent=11 // pred_check
          %p256 = pneg %p158
        $region18: #{tpu_custom_call.1} parent=11 // pred_check_branch
          %258 = sbr.rel (%p256) target = $region20
        $region19: #{tpu_custom_call.1} parent=11 // pred_region
          %s260 = ssub.s32 1024, 1024
          %261 = vsyncadd [#allocation12], %s260
          %s262 = sshll.u32 [#allocation13], 4
          %s263 = int_to_ptr.vmem [resolvable:$true] %s262
          %268 = dma.hbm_to_vmem [thread:$0]  %s4, 1024, %s263, [#allocation12], 64, 64, 4
        $region20: #{tpu_custom_call.1} parent=11 // pred_fallthru
          _
        // Predicated region
        $region21: #{tpu_custom_call.1} parent=11 // pred_check
          %p269 = pneg %p179
        $region22: #{tpu_custom_call.1} parent=11 // pred_check_branch
          %271 = sbr.rel (%p269) target = $region24
        $region23: #{tpu_custom_call.1} parent=11 // pred_region
          %s273 = ssub.s32 1024, 1024
          %274 = vsyncadd [#allocation15], %s273
          %s275 = sshll.u32 [#allocation14], 4
          %s276 = int_to_ptr.vmem [resolvable:$true] %s275
          %281 = dma.hbm_to_vmem [thread:$0]  %s5, 1024, %s276, [#allocation15], 64, 64, 4
        $region24: #{tpu_custom_call.1} parent=11 // pred_fallthru
          _
        // Predicated region
        $region25: #{tpu_custom_call.1} parent=11 // pred_check
          %p282 = pneg %p200
        $region26: #{tpu_custom_call.1} parent=11 // pred_check_branch
          %284 = sbr.rel (%p282) target = $region28
        $region27: #{tpu_custom_call.1} parent=11 // pred_region
          %s286 = ssub.s32 1024, 1024
          %287 = vsyncadd [#allocation15], %s286
          %s288 = sshll.u32 [#allocation16], 4
          %s289 = int_to_ptr.vmem [resolvable:$true] %s288
          %294 = dma.hbm_to_vmem [thread:$0]  %s6, 1024, %s289, [#allocation15], 64, 64, 4
        $region28: #{tpu_custom_call.1} parent=11 // pred_fallthru
          _
      $region12: #{tpu_custom_call.1} parent=5 // pred_fallthru
        _
      %p295 = scmp.lt.s32.totalorder %s24, 4
      // Predicated region
      $region29: #{tpu_custom_call.1} parent=5 // pred_check
        %p296 = pneg %p295
      $region30: #{tpu_custom_call.1} parent=5 // pred_check_branch
        %298 = sbr.rel (%p296) target = $region32
      $region31: #{tpu_custom_call.1} parent=5 // pred_region
        // Predicated region
        $region33: #{tpu_custom_call.1} parent=31 // pred_check
          %p299 = pneg %p58
        $region34: #{tpu_custom_call.1} parent=31 // pred_check_branch
          %301 = sbr.rel (%p299) target = $region36
        $region35: #{tpu_custom_call.1} parent=31 // pred_region
          %s302 = sand.u32 %s48, 1
          %s303 = scalar_lea.sflag [#allocation6], %s302
          %s304 = sand.u32 %s48, 1
          %s305 = smul.addr %s304, 128
          %s306 = scalar_lea.vmem [#allocation5], %s305
          %s307 = smul.u32 32, %s32
          %s309 = ssub.s32 2048, 2048
          %310 = vsyncadd %s303, %s309
          %s311 = smul.addr %s31, 64
          %s312 = sadd.s32 %s307, %s311
          %s313 = smul.addr %s312, 64
          %s314 = scalar_lea.hbm %s0, %s313
          %s315 = sshll.u32 %s306, 4
          %s316 = int_to_ptr.vmem [resolvable:$true] %s315
          %321 = dma.hbm_to_vmem [thread:$0]  %s314, 2048, %s316, %s303, 64, 64, 4
        $region36: #{tpu_custom_call.1} parent=31 // pred_fallthru
          _
        // Predicated region
        $region37: #{tpu_custom_call.1} parent=31 // pred_check
          %p322 = pneg %p84
        $region38: #{tpu_custom_call.1} parent=31 // pred_check_branch
          %324 = sbr.rel (%p322) target = $region40
        $region39: #{tpu_custom_call.1} parent=31 // pred_region
          %s325 = sand.u32 %s24, 1
          %s326 = scalar_lea.sflag [#allocation9], %s325
          %s327 = sand.u32 %s74, 1
          %s328 = smul.addr %s327, 64
          %s329 = scalar_lea.vmem [#allocation8], %s328
          %s331 = ssub.s32 1024, 1024
          %332 = vsyncadd %s326, %s331
          %s333 = smul.addr %s31, 16
          %s334 = smul.addr %s333, 64
          %s335 = scalar_lea.hbm %s1, %s334
          %s336 = sshll.u32 %s329, 4
          %s337 = int_to_ptr.vmem [resolvable:$true] %s336
          %342 = dma.hbm_to_vmem [thread:$0]  %s335, 1024, %s337, %s326, 64, 64, 4
        $region40: #{tpu_custom_call.1} parent=31 // pred_fallthru
          _
        // Predicated region
        $region41: #{tpu_custom_call.1} parent=31 // pred_check
          %p343 = pneg %p110
        $region42: #{tpu_custom_call.1} parent=31 // pred_check_branch
          %345 = sbr.rel (%p343) target = $region44
        $region43: #{tpu_custom_call.1} parent=31 // pred_region
          %s346 = sand.u32 %s24, 1
          %s347 = scalar_lea.sflag [#allocation9], %s346
          %s348 = sand.u32 %s100, 1
          %s349 = smul.addr %s348, 64
          %s350 = scalar_lea.vmem [#allocation10], %s349
          %s352 = ssub.s32 1024, 1024
          %353 = vsyncadd %s347, %s352
          %s354 = smul.addr %s31, 16
          %s355 = smul.addr %s354, 64
          %s356 = scalar_lea.hbm %s2, %s355
          %s357 = sshll.u32 %s350, 4
          %s358 = int_to_ptr.vmem [resolvable:$true] %s357
          %363 = dma.hbm_to_vmem [thread:$0]  %s356, 1024, %s358, %s347, 64, 64, 4
        $region44: #{tpu_custom_call.1} parent=31 // pred_fallthru
          _
      $region32: #{tpu_custom_call.1} parent=5 // pred_fallthru
        _
      %p364 = scmp.le.s32.totalorder 1, %s24
      %p365 = scmp.lt.s32.totalorder %s24, 5
      %p366 = pnand %p364, %p365
      %p367 = pneg %p366
      // Predicated region
      $region45: #{tpu_custom_call.1} parent=5 // pred_check
        _
      $region46: #{tpu_custom_call.1} parent=5 // pred_check_branch
        %369 = sbr.rel (%p366) target = $region48
      $region47: #{tpu_custom_call.1} parent=5 // pred_region
        %s370 = ssub.s32 %s24, 1
        %s371 = sand.u32 %s51, 1
        %s372 = scalar_lea.sflag [#allocation6], %s371
        %s373 = sand.u32 %s51, 1
        %s374 = smul.addr %s373, 128
        %s375 = scalar_lea.vmem [#allocation5], %s374
        // Predicated region
        $region49: #{tpu_custom_call.1} parent=47 // pred_check
          %p376 = pneg %p64
        $region50: #{tpu_custom_call.1} parent=47 // pred_check_branch
          %378 = sbr.rel (%p376) target = $region52
        $region51: #{tpu_custom_call.1} parent=47 // pred_region
          %379 = dma.done %s372, 2048
        $region52: #{tpu_custom_call.1} parent=47 // pred_fallthru
          _
        %s380 = sand.u32 %s29, 1
        %s381 = scalar_lea.sflag [#allocation9], %s380
        %s382 = sand.u32 %s77, 1
        %s383 = smul.addr %s382, 64
        %s384 = scalar_lea.vmem [#allocation8], %s383
        // Predicated region
        $region53: #{tpu_custom_call.1} parent=47 // pred_check
          %p385 = pneg %p90
        $region54: #{tpu_custom_call.1} parent=47 // pred_check_branch
          %387 = sbr.rel (%p385) target = $region56
        $region55: #{tpu_custom_call.1} parent=47 // pred_region
          %388 = dma.done %s381, 1024
        $region56: #{tpu_custom_call.1} parent=47 // pred_fallthru
          _
        %s389 = sand.u32 %s29, 1
        %s390 = scalar_lea.sflag [#allocation9], %s389
        %s391 = sand.u32 %s103, 1
        %s392 = smul.addr %s391, 64
        %s393 = scalar_lea.vmem [#allocation10], %s392
        // Predicated region
        $region57: #{tpu_custom_call.1} parent=47 // pred_check
          %p394 = pneg %p116
        $region58: #{tpu_custom_call.1} parent=47 // pred_check_branch
          %396 = sbr.rel (%p394) target = $region60
        $region59: #{tpu_custom_call.1} parent=47 // pred_region
          %397 = dma.done %s390, 1024
        $region60: #{tpu_custom_call.1} parent=47 // pred_fallthru
          _
        // Predicated region
        $region61: #{tpu_custom_call.1} parent=47 // pred_check
          %p398 = pneg %p137
        $region62: #{tpu_custom_call.1} parent=47 // pred_check_branch
          %400 = sbr.rel (%p398) target = $region64
        $region63: #{tpu_custom_call.1} parent=47 // pred_region
          %401 = dma.done [#allocation12], 1024
        $region64: #{tpu_custom_call.1} parent=47 // pred_fallthru
          _
        // Predicated region
        $region65: #{tpu_custom_call.1} parent=47 // pred_check
          %p402 = pneg %p158
        $region66: #{tpu_custom_call.1} parent=47 // pred_check_branch
          %404 = sbr.rel (%p402) target = $region68
        $region67: #{tpu_custom_call.1} parent=47 // pred_region
          %405 = dma.done [#allocation12], 1024
        $region68: #{tpu_custom_call.1} parent=47 // pred_fallthru
          _
        // Predicated region
        $region69: #{tpu_custom_call.1} parent=47 // pred_check
          %p406 = pneg %p179
        $region70: #{tpu_custom_call.1} parent=47 // pred_check_branch
          %408 = sbr.rel (%p406) target = $region72
        $region71: #{tpu_custom_call.1} parent=47 // pred_region
          %409 = dma.done [#allocation15], 1024
        $region72: #{tpu_custom_call.1} parent=47 // pred_fallthru
          _
        // Predicated region
        $region73: #{tpu_custom_call.1} parent=47 // pred_check
          %p410 = pneg %p200
        $region74: #{tpu_custom_call.1} parent=47 // pred_check_branch
          %412 = sbr.rel (%p410) target = $region76
        $region75: #{tpu_custom_call.1} parent=47 // pred_region
          %413 = dma.done [#allocation15], 1024
        $region76: #{tpu_custom_call.1} parent=47 // pred_fallthru
          _
        %s414 = sand.u32 %s51, 1
        %s415 = scalar_lea.sflag [#allocation6], %s414
        %s416 = sand.u32 %s51, 1
        %s417 = smul.addr %s416, 128
        %s418 = scalar_lea.vmem [#allocation5], %s417
        %p419 = pneg %p64
        %p420 = pneg %p61
        %s421 = sand.u32 %s29, 1
        %s422 = scalar_lea.sflag [#allocation9], %s421
        %s423 = sand.u32 %s77, 1
        %s424 = smul.addr %s423, 64
        %s425 = scalar_lea.vmem [#allocation8], %s424
        %p426 = pneg %p90
        %p427 = pneg %p87
        %s428 = sand.u32 %s29, 1
        %s429 = scalar_lea.sflag [#allocation9], %s428
        %s430 = sand.u32 %s103, 1
        %s431 = smul.addr %s430, 64
        %s432 = scalar_lea.vmem [#allocation10], %s431
        %p433 = pneg %p116
        %p434 = pneg %p113
        %p435 = pneg %p137
        %p436 = pneg %p134
        %p437 = pneg %p158
        %p438 = pneg %p155
        %p439 = pneg %p179
        %p440 = pneg %p176
        %p441 = pneg %p200
        %p442 = pneg %p197
        %p443 = pneg %p228
        %p444 = pneg %p225
        %s445 = sand.u32 %s215, 1
        %s446 = scalar_lea.sflag [#allocation7], %s445
        %s447 = sand.u32 %s215, 1
        %s448 = smul.addr %s447, 256
        %s449 = scalar_lea.vmem [#allocation17], %s448
        %s450 = smul.u32 32, %s34
        %s451 = smul.u32 32, %s34
        %p453 = scmp.eq.s32.totalorder %s34, 0
        // Predicated region
        $region77: #{tpu_custom_call.1} parent=47 // pred_check
          %p454 = pneg %p453
        $region78: #{tpu_custom_call.1} parent=47 // pred_check_branch
          %456 = sbr.rel (%p454) target = $region80
        $region79: #{tpu_custom_call.1} parent=47 // pred_region
          %v457 = vld [vmem:[%s384] sm:$0xf]
          %v458 = vld [vmem:[%s384 + $0x4] sm:$0xf]
          %v459 = vld [vmem:[%s384 + $0x8] sm:$0xf]
          %v460 = vld [vmem:[%s384 + $0xc] sm:$0xf]
          %v461 = vld [vmem:[%s384 + $0x10] sm:$0xf]
          %v462 = vld [vmem:[%s384 + $0x14] sm:$0xf]
          %v463 = vld [vmem:[%s384 + $0x18] sm:$0xf]
          %v464 = vld [vmem:[%s384 + $0x1c] sm:$0xf]
          %v465 = vld [vmem:[%s384 + $0x20] sm:$0xf]
          %v466 = vld [vmem:[%s384 + $0x24] sm:$0xf]
          %v467 = vld [vmem:[%s384 + $0x28] sm:$0xf]
          %v468 = vld [vmem:[%s384 + $0x2c] sm:$0xf]
          %v469 = vld [vmem:[%s384 + $0x30] sm:$0xf]
          %v470 = vld [vmem:[%s384 + $0x34] sm:$0xf]
          %v471 = vld [vmem:[%s384 + $0x38] sm:$0xf]
          %v472 = vld [vmem:[%s384 + $0x3c] sm:$0xf]
          %v473 = vld [vmem:[#allocation13] sm:$0xf]
          %v474 = vld [vmem:[#allocation13 + $0x4] sm:$0xf]
          %v475 = vld [vmem:[#allocation13 + $0x8] sm:$0xf]
          %v476 = vld [vmem:[#allocation13 + $0xc] sm:$0xf]
          %v477 = vld [vmem:[#allocation13 + $0x10] sm:$0xf]
          %v478 = vld [vmem:[#allocation13 + $0x14] sm:$0xf]
          %v479 = vld [vmem:[#allocation13 + $0x18] sm:$0xf]
          %v480 = vld [vmem:[#allocation13 + $0x1c] sm:$0xf]
          %v481 = vld [vmem:[#allocation13 + $0x20] sm:$0xf]
          %v482 = vld [vmem:[#allocation13 + $0x24] sm:$0xf]
          %v483 = vld [vmem:[#allocation13 + $0x28] sm:$0xf]
          %v484 = vld [vmem:[#allocation13 + $0x2c] sm:$0xf]
          %v485 = vld [vmem:[#allocation13 + $0x30] sm:$0xf]
          %v486 = vld [vmem:[#allocation13 + $0x34] sm:$0xf]
          %v487 = vld [vmem:[#allocation13 + $0x38] sm:$0xf]
          %v488 = vld [vmem:[#allocation13 + $0x3c] sm:$0xf]
          %v505 = vunpack.c.l.b16 %v457
          %v506 = vunpack.c.l.b16 %v458
          %v507 = vunpack.c.l.b16 %v459
          %v508 = vunpack.c.l.b16 %v460
          %v509 = vunpack.c.l.b16 %v461
          %v510 = vunpack.c.l.b16 %v462
          %v511 = vunpack.c.l.b16 %v463
          %v512 = vunpack.c.l.b16 %v464
          %v513 = vunpack.c.l.b16 %v465
          %v514 = vunpack.c.l.b16 %v466
          %v515 = vunpack.c.l.b16 %v467
          %v516 = vunpack.c.l.b16 %v468
          %v517 = vunpack.c.l.b16 %v469
          %v518 = vunpack.c.l.b16 %v470
          %v519 = vunpack.c.l.b16 %v471
          %v520 = vunpack.c.l.b16 %v472
          %v521 = vpack.c.b16 %v506, %v505
          %v522 = vpack.c.b16 %v508, %v507
          %v523 = vpack.c.b16 %v510, %v509
          %v524 = vpack.c.b16 %v512, %v511
          %v525 = vpack.c.b16 %v514, %v513
          %v526 = vpack.c.b16 %v516, %v515
          %v527 = vpack.c.b16 %v518, %v517
          %v528 = vpack.c.b16 %v520, %v519
          %v553 = vunpack.c.l.b16 %v473
          %v554 = vunpack.c.l.b16 %v474
          %v555 = vunpack.c.l.b16 %v475
          %v556 = vunpack.c.l.b16 %v476
          %v557 = vunpack.c.l.b16 %v477
          %v558 = vunpack.c.l.b16 %v478
          %v559 = vunpack.c.l.b16 %v479
          %v560 = vunpack.c.l.b16 %v480
          %v561 = vunpack.c.l.b16 %v481
          %v562 = vunpack.c.l.b16 %v482
          %v563 = vunpack.c.l.b16 %v483
          %v564 = vunpack.c.l.b16 %v484
          %v565 = vunpack.c.l.b16 %v485
          %v566 = vunpack.c.l.b16 %v486
          %v567 = vunpack.c.l.b16 %v487
          %v568 = vunpack.c.l.b16 %v488
          %v569 = vpack.c.b16 %v554, %v553
          %v570 = vpack.c.b16 %v556, %v555
          %v571 = vpack.c.b16 %v558, %v557
          %v572 = vpack.c.b16 %v560, %v559
          %v573 = vpack.c.b16 %v562, %v561
          %v574 = vpack.c.b16 %v564, %v563
          %v575 = vpack.c.b16 %v566, %v565
          %v576 = vpack.c.b16 %v568, %v567
          %585 = vmatprep.subr.bf16.mxu0 0
          %586 = vmatpush1.bf16.msra.mxu0 %v569
          %587 = vmatprep.subr.bf16.mxu0 0
          %588 = vmatpush1.bf16.msra.mxu0 %v570
          %589 = vmatprep.subr.bf16.mxu0 0
          %590 = vmatpush1.bf16.msra.mxu0 %v571
          %591 = vmatprep.subr.bf16.mxu0 0
          %592 = vmatpush1.bf16.msra.mxu0 %v572
          %593 = vmatprep.subr.bf16.mxu0 0
          %594 = vmatpush1.bf16.msra.mxu0 %v573
          %595 = vmatprep.subr.bf16.mxu0 0
          %596 = vmatpush1.bf16.msra.mxu0 %v574
          %597 = vmatprep.subr.bf16.mxu0 0
          %598 = vmatpush1.bf16.msra.mxu0 %v575
          %599 = vmatprep.subr.bf16.mxu0 0
          %600 = vmatpush1.bf16.msra.mxu0 %v576
          %601 = vmatprep.subr.bf16.mxu0 0
          %602 = vmatpush1.bf16.msra.mxu0 0
          %603 = vmatprep.subr.bf16.mxu0 0
          %604 = vmatpush1.bf16.msra.mxu0 0
          %605 = vmatprep.subr.bf16.mxu0 0
          %606 = vmatpush1.bf16.msra.mxu0 0
          %607 = vmatprep.subr.bf16.mxu0 0
          %608 = vmatpush1.bf16.msra.mxu0 0
          %609 = vmatprep.subr.bf16.mxu0 0
          %610 = vmatpush1.bf16.msra.mxu0 0
          %611 = vmatprep.subr.bf16.mxu0 0
          %612 = vmatpush1.bf16.msra.mxu0 0
          %613 = vmatprep.subr.bf16.mxu0 0
          %614 = vmatpush1.bf16.msra.mxu0 0
          %615 = vmatprep.subr.bf16.mxu0 0
          %616 = vmatpush1.bf16.msra.mxu0 0
          %617 = vmatprep.mubr.bf16.mxu0 0
          %618 = vmatmul.mubr.bf16.gmra.mrb[0].mxu0 %v521
          %v619 = vpop.f32.mrb[0].mxu0
          %v620 = vadd.f32 0.0, %v619
          %v621 = vpop.f32.mrb[0].mxu0
          %v622 = vpop.f32.mrb[0].mxu0
          %v623 = vadd.f32 0.0, %v622
          %v624 = vpop.f32.mrb[0].mxu0
          %625 = vmatprep.mubr.bf16.mxu0 0
          %626 = vmatmul.mubr.bf16.gmra.mrb[0].mxu0 %v522
          %v627 = vpop.f32.mrb[0].mxu0
          %v628 = vadd.f32 0.0, %v627
          %v629 = vpop.f32.mrb[0].mxu0
          %v630 = vpop.f32.mrb[0].mxu0
          %v631 = vadd.f32 0.0, %v630
          %v632 = vpop.f32.mrb[0].mxu0
          %633 = vmatprep.mubr.bf16.mxu0 0
          %634 = vmatmul.mubr.bf16.gmra.mrb[0].mxu0 %v523
          %v635 = vpop.f32.mrb[0].mxu0
          %v636 = vadd.f32 0.0, %v635
          %v637 = vpop.f32.mrb[0].mxu0
          %v638 = vpop.f32.mrb[0].mxu0
          %v639 = vadd.f32 0.0, %v638
          %v640 = vpop.f32.mrb[0].mxu0
          %641 = vmatprep.mubr.bf16.mxu0 0
          %642 = vmatmul.mubr.bf16.gmra.mrb[0].mxu0 %v524
          %v643 = vpop.f32.mrb[0].mxu0
          %v644 = vadd.f32 0.0, %v643
          %v645 = vpop.f32.mrb[0].mxu0
          %v646 = vpop.f32.mrb[0].mxu0
          %v647 = vadd.f32 0.0, %v646
          %v648 = vpop.f32.mrb[0].mxu0
          %649 = vmatprep.mubr.bf16.mxu0 0
          %650 = vmatmul.mubr.bf16.gmra.mrb[0].mxu0 %v525
          %v651 = vpop.f32.mrb[0].mxu0
          %v652 = vadd.f32 0.0, %v651
          %v653 = vpop.f32.mrb[0].mxu0
          %v654 = vpop.f32.mrb[0].mxu0
          %v655 = vadd.f32 0.0, %v654
          %v656 = vpop.f32.mrb[0].mxu0
          %657 = vmatprep.mubr.bf16.mxu0 0
          %658 = vmatmul.mubr.bf16.gmra.mrb[0].mxu0 %v526
          %v659 = vpop.f32.mrb[0].mxu0
          %v660 = vadd.f32 0.0, %v659
          %v661 = vpop.f32.mrb[0].mxu0
          %v662 = vpop.f32.mrb[0].mxu0
          %v663 = vadd.f32 0.0, %v662
          %v664 = vpop.f32.mrb[0].mxu0
          %665 = vmatprep.mubr.bf16.mxu0 0
          %666 = vmatmul.mubr.bf16.gmra.mrb[0].mxu0 %v527
          %v667 = vpop.f32.mrb[0].mxu0
          %v668 = vadd.f32 0.0, %v667
          %v669 = vpop.f32.mrb[0].mxu0
          %v670 = vpop.f32.mrb[0].mxu0
          %v671 = vadd.f32 0.0, %v670
          %v672 = vpop.f32.mrb[0].mxu0
          %673 = vmatprep.mubr.bf16.mxu0 0
          %674 = vmatmul.mubr.bf16.gmra.mrb[0].mxu0 %v528
          %v675 = vpop.f32.mrb[0].mxu0
          %v676 = vadd.f32 0.0, %v675
          %v677 = vpop.f32.mrb[0].mxu0
          %v678 = vpop.f32.mrb[0].mxu0
          %v679 = vadd.f32 0.0, %v678
          %v680 = vpop.f32.mrb[0].mxu0
          %681 = vdwg.mxu0
          %v682 = vld [vmem:[%s393] sm:$0xf]
          %v683 = vld [vmem:[%s393 + $0x4] sm:$0xf]
          %v684 = vld [vmem:[%s393 + $0x8] sm:$0xf]
          %v685 = vld [vmem:[%s393 + $0xc] sm:$0xf]
          %v686 = vld [vmem:[%s393 + $0x10] sm:$0xf]
          %v687 = vld [vmem:[%s393 + $0x14] sm:$0xf]
          %v688 = vld [vmem:[%s393 + $0x18] sm:$0xf]
          %v689 = vld [vmem:[%s393 + $0x1c] sm:$0xf]
          %v690 = vld [vmem:[%s393 + $0x20] sm:$0xf]
          %v691 = vld [vmem:[%s393 + $0x24] sm:$0xf]
          %v692 = vld [vmem:[%s393 + $0x28] sm:$0xf]
          %v693 = vld [vmem:[%s393 + $0x2c] sm:$0xf]
          %v694 = vld [vmem:[%s393 + $0x30] sm:$0xf]
          %v695 = vld [vmem:[%s393 + $0x34] sm:$0xf]
          %v696 = vld [vmem:[%s393 + $0x38] sm:$0xf]
          %v697 = vld [vmem:[%s393 + $0x3c] sm:$0xf]
          %v698 = vld [vmem:[#allocation14] sm:$0xf]
          %v699 = vld [vmem:[#allocation14 + $0x4] sm:$0xf]
          %v700 = vld [vmem:[#allocation14 + $0x8] sm:$0xf]
          %v701 = vld [vmem:[#allocation14 + $0xc] sm:$0xf]
          %v702 = vld [vmem:[#allocation14 + $0x10] sm:$0xf]
          %v703 = vld [vmem:[#allocation14 + $0x14] sm:$0xf]
          %v704 = vld [vmem:[#allocation14 + $0x18] sm:$0xf]
          %v705 = vld [vmem:[#allocation14 + $0x1c] sm:$0xf]
          %v706 = vld [vmem:[#allocation14 + $0x20] sm:$0xf]
          %v707 = vld [vmem:[#allocation14 + $0x24] sm:$0xf]
          %v708 = vld [vmem:[#allocation14 + $0x28] sm:$0xf]
          %v709 = vld [vmem:[#allocation14 + $0x2c] sm:$0xf]
          %v710 = vld [vmem:[#allocation14 + $0x30] sm:$0xf]
          %v711 = vld [vmem:[#allocation14 + $0x34] sm:$0xf]
          %v712 = vld [vmem:[#allocation14 + $0x38] sm:$0xf]
          %v713 = vld [vmem:[#allocation14 + $0x3c] sm:$0xf]
          %v730 = vunpack.c.l.b16 %v682
          %v731 = vunpack.c.l.b16 %v683
          %v732 = vunpack.c.l.b16 %v684
          %v733 = vunpack.c.l.b16 %v685
          %v734 = vunpack.c.l.b16 %v686
          %v735 = vunpack.c.l.b16 %v687
          %v736 = vunpack.c.l.b16 %v688
          %v737 = vunpack.c.l.b16 %v689
          %v738 = vunpack.c.l.b16 %v690
          %v739 = vunpack.c.l.b16 %v691
          %v740 = vunpack.c.l.b16 %v692
          %v741 = vunpack.c.l.b16 %v693
          %v742 = vunpack.c.l.b16 %v694
          %v743 = vunpack.c.l.b16 %v695
          %v744 = vunpack.c.l.b16 %v696
          %v745 = vunpack.c.l.b16 %v697
          %v746 = vpack.c.b16 %v731, %v730
          %v747 = vpack.c.b16 %v733, %v732
          %v748 = vpack.c.b16 %v735, %v734
          %v749 = vpack.c.b16 %v737, %v736
          %v750 = vpack.c.b16 %v739, %v738
          %v751 = vpack.c.b16 %v741, %v740
          %v752 = vpack.c.b16 %v743, %v742
          %v753 = vpack.c.b16 %v745, %v744
          %v778 = vunpack.c.l.b16 %v698
          %v779 = vunpack.c.l.b16 %v699
          %v780 = vunpack.c.l.b16 %v700
          %v781 = vunpack.c.l.b16 %v701
          %v782 = vunpack.c.l.b16 %v702
          %v783 = vunpack.c.l.b16 %v703
          %v784 = vunpack.c.l.b16 %v704
          %v785 = vunpack.c.l.b16 %v705
          %v786 = vunpack.c.l.b16 %v706
          %v787 = vunpack.c.l.b16 %v707
          %v788 = vunpack.c.l.b16 %v708
          %v789 = vunpack.c.l.b16 %v709
          %v790 = vunpack.c.l.b16 %v710
          %v791 = vunpack.c.l.b16 %v711
          %v792 = vunpack.c.l.b16 %v712
          %v793 = vunpack.c.l.b16 %v713
          %v794 = vpack.c.b16 %v779, %v778
          %v795 = vpack.c.b16 %v781, %v780
          %v796 = vpack.c.b16 %v783, %v782
          %v797 = vpack.c.b16 %v785, %v784
          %v798 = vpack.c.b16 %v787, %v786
          %v799 = vpack.c.b16 %v789, %v788
          %v800 = vpack.c.b16 %v791, %v790
          %v801 = vpack.c.b16 %v793, %v792
          %810 = vmatprep.subr.bf16.mxu0 0
          %811 = vmatpush1.bf16.msra.mxu0 %v794
          %812 = vmatprep.subr.bf16.mxu0 0
          %813 = vmatpush1.bf16.msra.mxu0 %v795
          %814 = vmatprep.subr.bf16.mxu0 0
          %815 = vmatpush1.bf16.msra.mxu0 %v796
          %816 = vmatprep.subr.bf16.mxu0 0
          %817 = vmatpush1.bf16.msra.mxu0 %v797
          %818 = vmatprep.subr.bf16.mxu0 0
          %819 = vmatpush1.bf16.msra.mxu0 %v798
          %820 = vmatprep.subr.bf16.mxu0 0
          %821 = vmatpush1.bf16.msra.mxu0 %v799
          %822 = vmatprep.subr.bf16.mxu0 0
          %823 = vmatpush1.bf16.msra.mxu0 %v800
          %824 = vmatprep.subr.bf16.mxu0 0
          %825 = vmatpush1.bf16.msra.mxu0 %v801
          %826 = vmatprep.subr.bf16.mxu0 0
          %827 = vmatpush1.bf16.msra.mxu0 0
          %828 = vmatprep.subr.bf16.mxu0 0
          %829 = vmatpush1.bf16.msra.mxu0 0
          %830 = vmatprep.subr.bf16.mxu0 0
          %831 = vmatpush1.bf16.msra.mxu0 0
          %832 = vmatprep.subr.bf16.mxu0 0
          %833 = vmatpush1.bf16.msra.mxu0 0
          %834 = vmatprep.subr.bf16.mxu0 0
          %835 = vmatpush1.bf16.msra.mxu0 0
          %836 = vmatprep.subr.bf16.mxu0 0
          %837 = vmatpush1.bf16.msra.mxu0 0
          %838 = vmatprep.subr.bf16.mxu0 0
          %839 = vmatpush1.bf16.msra.mxu0 0
          %840 = vmatprep.subr.bf16.mxu0 0
          %841 = vmatpush1.bf16.msra.mxu0 0
          %842 = vmatprep.mubr.bf16.mxu0 0
          %843 = vmatmul.mubr.bf16.gmra.mrb[0].mxu0 %v746
          %v844 = vpop.f32.mrb[0].mxu0
          %v845 = vadd.f32 0.0, %v844
          %v846 = vpop.f32.mrb[0].mxu0
          %v847 = vpop.f32.mrb[0].mxu0
          %v848 = vadd.f32 0.0, %v847
          %v849 = vpop.f32.mrb[0].mxu0
          %850 = vmatprep.mubr.bf16.mxu0 0
          %851 = vmatmul.mubr.bf16.gmra.mrb[0].mxu0 %v747
          %v852 = vpop.f32.mrb[0].mxu0
          %v853 = vadd.f32 0.0, %v852
          %v854 = vpop.f32.mrb[0].mxu0
          %v855 = vpop.f32.mrb[0].mxu0
          %v856 = vadd.f32 0.0, %v855
          %v857 = vpop.f32.mrb[0].mxu0
          %858 = vmatprep.mubr.bf16.mxu0 0
          %859 = vmatmul.mubr.bf16.gmra.mrb[0].mxu0 %v748
          %v860 = vpop.f32.mrb[0].mxu0
          %v861 = vadd.f32 0.0, %v860
          %v862 = vpop.f32.mrb[0].mxu0
          %v863 = vpop.f32.mrb[0].mxu0
          %v864 = vadd.f32 0.0, %v863
          %v865 = vpop.f32.mrb[0].mxu0
          %866 = vmatprep.mubr.bf16.mxu0 0
          %867 = vmatmul.mubr.bf16.gmra.mrb[0].mxu0 %v749
          %v868 = vpop.f32.mrb[0].mxu0
          %v869 = vadd.f32 0.0, %v868
          %v870 = vpop.f32.mrb[0].mxu0
          %v871 = vpop.f32.mrb[0].mxu0
          %v872 = vadd.f32 0.0, %v871
          %v873 = vpop.f32.mrb[0].mxu0
          %874 = vmatprep.mubr.bf16.mxu0 0
          %875 = vmatmul.mubr.bf16.gmra.mrb[0].mxu0 %v750
          %v876 = vpop.f32.mrb[0].mxu0
          %v877 = vadd.f32 0.0, %v876
          %v878 = vpop.f32.mrb[0].mxu0
          %v879 = vpop.f32.mrb[0].mxu0
          %v880 = vadd.f32 0.0, %v879
          %v881 = vpop.f32.mrb[0].mxu0
          %882 = vmatprep.mubr.bf16.mxu0 0
          %883 = vmatmul.mubr.bf16.gmra.mrb[0].mxu0 %v751
          %v884 = vpop.f32.mrb[0].mxu0
          %v885 = vadd.f32 0.0, %v884
          %v886 = vpop.f32.mrb[0].mxu0
          %v887 = vpop.f32.mrb[0].mxu0
          %v888 = vadd.f32 0.0, %v887
          %v889 = vpop.f32.mrb[0].mxu0
          %890 = vmatprep.mubr.bf16.mxu0 0
          %891 = vmatmul.mubr.bf16.gmra.mrb[0].mxu0 %v752
          %v892 = vpop.f32.mrb[0].mxu0
          %v893 = vadd.f32 0.0, %v892
          %v894 = vpop.f32.mrb[0].mxu0
          %v895 = vpop.f32.mrb[0].mxu0
          %v896 = vadd.f32 0.0, %v895
          %v897 = vpop.f32.mrb[0].mxu0
          %898 = vmatprep.mubr.bf16.mxu0 0
          %899 = vmatmul.mubr.bf16.gmra.mrb[0].mxu0 %v753
          %v900 = vpop.f32.mrb[0].mxu0
          %v901 = vadd.f32 0.0, %v900
          %v902 = vpop.f32.mrb[0].mxu0
          %v903 = vpop.f32.mrb[0].mxu0
          %v904 = vadd.f32 0.0, %v903
          %v905 = vpop.f32.mrb[0].mxu0
          %906 = vdwg.mxu0
          %v907 = vpack.c.bf16 %v623, %v620
          %v908 = vpack.c.bf16 %v631, %v628
          %v909 = vpack.c.bf16 %v639, %v636
          %v910 = vpack.c.bf16 %v647, %v644
          %v911 = vpack.c.bf16 %v655, %v652
          %v912 = vpack.c.bf16 %v663, %v660
          %v913 = vpack.c.bf16 %v671, %v668
          %v914 = vpack.c.bf16 %v679, %v676
          %v915 = vpack.c.bf16 %v848, %v845
          %v916 = vpack.c.bf16 %v856, %v853
          %v917 = vpack.c.bf16 %v864, %v861
          %v918 = vpack.c.bf16 %v872, %v869
          %v919 = vpack.c.bf16 %v880, %v877
          %v920 = vpack.c.bf16 %v888, %v885
          %v921 = vpack.c.bf16 %v896, %v893
          %v922 = vpack.c.bf16 %v904, %v901
          %vm923 = vcmask 261120
          %924 = vst.msk [vmem:[#allocation2] sm:$0xff] %vm923, %v907
          %925 = vst.msk [vmem:[#allocation2 + $0x8] sm:$0xff] %vm923, %v908
          %926 = vst.msk [vmem:[#allocation2 + $0x10] sm:$0xff] %vm923, %v909
          %927 = vst.msk [vmem:[#allocation2 + $0x18] sm:$0xff] %vm923, %v910
          %928 = vst.msk [vmem:[#allocation2 + $0x20] sm:$0xff] %vm923, %v911
          %929 = vst.msk [vmem:[#allocation2 + $0x28] sm:$0xff] %vm923, %v912
          %930 = vst.msk [vmem:[#allocation2 + $0x30] sm:$0xff] %vm923, %v913
          %931 = vst.msk [vmem:[#allocation2 + $0x38] sm:$0xff] %vm923, %v914
          %932 = vst.msk [vmem:[#allocation3] sm:$0xff] %vm923, %v915
          %933 = vst.msk [vmem:[#allocation3 + $0x8] sm:$0xff] %vm923, %v916
          %934 = vst.msk [vmem:[#allocation3 + $0x10] sm:$0xff] %vm923, %v917
          %935 = vst.msk [vmem:[#allocation3 + $0x18] sm:$0xff] %vm923, %v918
          %936 = vst.msk [vmem:[#allocation3 + $0x20] sm:$0xff] %vm923, %v919
          %937 = vst.msk [vmem:[#allocation3 + $0x28] sm:$0xff] %vm923, %v920
          %938 = vst.msk [vmem:[#allocation3 + $0x30] sm:$0xff] %vm923, %v921
          %939 = vst.msk [vmem:[#allocation3 + $0x38] sm:$0xff] %vm923, %v922
          %948 = vrot.lane.b32.xlu0 %v907, 96
          %v949 = vpop.permute.xlu0 %948
          %950 = vrot.lane.b32.xlu0 %v908, 96
          %v951 = vpop.permute.xlu0 %950
          %952 = vrot.lane.b32.xlu0 %v909, 96
          %v953 = vpop.permute.xlu0 %952
          %954 = vrot.lane.b32.xlu0 %v910, 96
          %v955 = vpop.permute.xlu0 %954
          %956 = vrot.lane.b32.xlu0 %v911, 96
          %v957 = vpop.permute.xlu0 %956
          %958 = vrot.lane.b32.xlu0 %v912, 96
          %v959 = vpop.permute.xlu0 %958
          %960 = vrot.lane.b32.xlu0 %v913, 96
          %v961 = vpop.permute.xlu0 %960
          %962 = vrot.lane.b32.xlu0 %v914, 96
          %v963 = vpop.permute.xlu0 %962
          %s972 = scalar_lea.vmem [#allocation2], 64
          %973 = vst.msk [vmem:[%s972] sm:$0xff] %vm923, %v949
          %974 = vst.msk [vmem:[%s972 + $0x8] sm:$0xff] %vm923, %v951
          %975 = vst.msk [vmem:[%s972 + $0x10] sm:$0xff] %vm923, %v953
          %976 = vst.msk [vmem:[%s972 + $0x18] sm:$0xff] %vm923, %v955
          %977 = vst.msk [vmem:[%s972 + $0x20] sm:$0xff] %vm923, %v957
          %978 = vst.msk [vmem:[%s972 + $0x28] sm:$0xff] %vm923, %v959
          %979 = vst.msk [vmem:[%s972 + $0x30] sm:$0xff] %vm923, %v961
          %980 = vst.msk [vmem:[%s972 + $0x38] sm:$0xff] %vm923, %v963
          %989 = vrot.lane.b32.xlu0 %v915, 96
          %v990 = vpop.permute.xlu0 %989
          %991 = vrot.lane.b32.xlu0 %v916, 96
          %v992 = vpop.permute.xlu0 %991
          %993 = vrot.lane.b32.xlu0 %v917, 96
          %v994 = vpop.permute.xlu0 %993
          %995 = vrot.lane.b32.xlu0 %v918, 96
          %v996 = vpop.permute.xlu0 %995
          %997 = vrot.lane.b32.xlu0 %v919, 96
          %v998 = vpop.permute.xlu0 %997
          %999 = vrot.lane.b32.xlu0 %v920, 96
          %v1000 = vpop.permute.xlu0 %999
          %1001 = vrot.lane.b32.xlu0 %v921, 96
          %v1002 = vpop.permute.xlu0 %1001
          %1003 = vrot.lane.b32.xlu0 %v922, 96
          %v1004 = vpop.permute.xlu0 %1003
          %s1013 = scalar_lea.vmem [#allocation3], 64
          %1014 = vst.msk [vmem:[%s1013] sm:$0xff] %vm923, %v990
          %1015 = vst.msk [vmem:[%s1013 + $0x8] sm:$0xff] %vm923, %v992
          %1016 = vst.msk [vmem:[%s1013 + $0x10] sm:$0xff] %vm923, %v994
          %1017 = vst.msk [vmem:[%s1013 + $0x18] sm:$0xff] %vm923, %v996
          %1018 = vst.msk [vmem:[%s1013 + $0x20] sm:$0xff] %vm923, %v998
          %1019 = vst.msk [vmem:[%s1013 + $0x28] sm:$0xff] %vm923, %v1000
          %1020 = vst.msk [vmem:[%s1013 + $0x30] sm:$0xff] %vm923, %v1002
          %1021 = vst.msk [vmem:[%s1013 + $0x38] sm:$0xff] %vm923, %v1004
        $region80: #{tpu_custom_call.1} parent=47 // pred_fallthru
          _
        %v1022 = vld [vmem:[%s375] sm:$0xf]
        %v1023 = vld [vmem:[%s375 + $0x4] sm:$0xf]
        %v1024 = vld [vmem:[%s375 + $0x8] sm:$0xf]
        %v1025 = vld [vmem:[%s375 + $0xc] sm:$0xf]
        %v1026 = vld [vmem:[%s375 + $0x10] sm:$0xf]
        %v1027 = vld [vmem:[%s375 + $0x14] sm:$0xf]
        %v1028 = vld [vmem:[%s375 + $0x18] sm:$0xf]
        %v1029 = vld [vmem:[%s375 + $0x1c] sm:$0xf]
        %v1030 = vld [vmem:[%s375 + $0x20] sm:$0xf]
        %v1031 = vld [vmem:[%s375 + $0x24] sm:$0xf]
        %v1032 = vld [vmem:[%s375 + $0x28] sm:$0xf]
        %v1033 = vld [vmem:[%s375 + $0x2c] sm:$0xf]
        %v1034 = vld [vmem:[%s375 + $0x30] sm:$0xf]
        %v1035 = vld [vmem:[%s375 + $0x34] sm:$0xf]
        %v1036 = vld [vmem:[%s375 + $0x38] sm:$0xf]
        %v1037 = vld [vmem:[%s375 + $0x3c] sm:$0xf]
        %v1038 = vld [vmem:[%s375 + $0x40] sm:$0xf]
        %v1039 = vld [vmem:[%s375 + $0x44] sm:$0xf]
        %v1040 = vld [vmem:[%s375 + $0x48] sm:$0xf]
        %v1041 = vld [vmem:[%s375 + $0x4c] sm:$0xf]
        %v1042 = vld [vmem:[%s375 + $0x50] sm:$0xf]
        %v1043 = vld [vmem:[%s375 + $0x54] sm:$0xf]
        %v1044 = vld [vmem:[%s375 + $0x58] sm:$0xf]
        %v1045 = vld [vmem:[%s375 + $0x5c] sm:$0xf]
        %v1046 = vld [vmem:[%s375 + $0x60] sm:$0xf]
        %v1047 = vld [vmem:[%s375 + $0x64] sm:$0xf]
        %v1048 = vld [vmem:[%s375 + $0x68] sm:$0xf]
        %v1049 = vld [vmem:[%s375 + $0x6c] sm:$0xf]
        %v1050 = vld [vmem:[%s375 + $0x70] sm:$0xf]
        %v1051 = vld [vmem:[%s375 + $0x74] sm:$0xf]
        %v1052 = vld [vmem:[%s375 + $0x78] sm:$0xf]
        %v1053 = vld [vmem:[%s375 + $0x7c] sm:$0xf]
        %v1054 = vld [vmem:[#allocation11] sm:$0xf]
        %v1055 = vld [vmem:[#allocation11 + $0x4] sm:$0xf]
        %v1056 = vld [vmem:[#allocation11 + $0x8] sm:$0xf]
        %v1057 = vld [vmem:[#allocation11 + $0xc] sm:$0xf]
        %v1058 = vld [vmem:[#allocation11 + $0x10] sm:$0xf]
        %v1059 = vld [vmem:[#allocation11 + $0x14] sm:$0xf]
        %v1060 = vld [vmem:[#allocation11 + $0x18] sm:$0xf]
        %v1061 = vld [vmem:[#allocation11 + $0x1c] sm:$0xf]
        %v1062 = vld [vmem:[#allocation11 + $0x20] sm:$0xf]
        %v1063 = vld [vmem:[#allocation11 + $0x24] sm:$0xf]
        %v1064 = vld [vmem:[#allocation11 + $0x28] sm:$0xf]
        %v1065 = vld [vmem:[#allocation11 + $0x2c] sm:$0xf]
        %v1066 = vld [vmem:[#allocation11 + $0x30] sm:$0xf]
        %v1067 = vld [vmem:[#allocation11 + $0x34] sm:$0xf]
        %v1068 = vld [vmem:[#allocation11 + $0x38] sm:$0xf]
        %v1069 = vld [vmem:[#allocation11 + $0x3c] sm:$0xf]
        %v1102 = vunpack.c.l.b16 %v1022
        %v1103 = vunpack.c.l.b16 %v1023
        %v1104 = vunpack.c.l.b16 %v1024
        %v1105 = vunpack.c.l.b16 %v1025
        %v1106 = vunpack.c.l.b16 %v1026
        %v1107 = vunpack.c.l.b16 %v1027
        %v1108 = vunpack.c.l.b16 %v1028
        %v1109 = vunpack.c.l.b16 %v1029
        %v1110 = vunpack.c.l.b16 %v1030
        %v1111 = vunpack.c.l.b16 %v1031
        %v1112 = vunpack.c.l.b16 %v1032
        %v1113 = vunpack.c.l.b16 %v1033
        %v1114 = vunpack.c.l.b16 %v1034
        %v1115 = vunpack.c.l.b16 %v1035
        %v1116 = vunpack.c.l.b16 %v1036
        %v1117 = vunpack.c.l.b16 %v1037
        %v1118 = vunpack.c.l.b16 %v1038
        %v1119 = vunpack.c.l.b16 %v1039
        %v1120 = vunpack.c.l.b16 %v1040
        %v1121 = vunpack.c.l.b16 %v1041
        %v1122 = vunpack.c.l.b16 %v1042
        %v1123 = vunpack.c.l.b16 %v1043
        %v1124 = vunpack.c.l.b16 %v1044
        %v1125 = vunpack.c.l.b16 %v1045
        %v1126 = vunpack.c.l.b16 %v1046
        %v1127 = vunpack.c.l.b16 %v1047
        %v1128 = vunpack.c.l.b16 %v1048
        %v1129 = vunpack.c.l.b16 %v1049
        %v1130 = vunpack.c.l.b16 %v1050
        %v1131 = vunpack.c.l.b16 %v1051
        %v1132 = vunpack.c.l.b16 %v1052
        %v1133 = vunpack.c.l.b16 %v1053
        %v1134 = vpack.c.b16 %v1103, %v1102
        %v1135 = vpack.c.b16 %v1105, %v1104
        %v1136 = vpack.c.b16 %v1107, %v1106
        %v1137 = vpack.c.b16 %v1109, %v1108
        %v1138 = vpack.c.b16 %v1111, %v1110
        %v1139 = vpack.c.b16 %v1113, %v1112
        %v1140 = vpack.c.b16 %v1115, %v1114
        %v1141 = vpack.c.b16 %v1117, %v1116
        %v1142 = vpack.c.b16 %v1119, %v1118
        %v1143 = vpack.c.b16 %v1121, %v1120
        %v1144 = vpack.c.b16 %v1123, %v1122
        %v1145 = vpack.c.b16 %v1125, %v1124
        %v1146 = vpack.c.b16 %v1127, %v1126
        %v1147 = vpack.c.b16 %v1129, %v1128
        %v1148 = vpack.c.b16 %v1131, %v1130
        %v1149 = vpack.c.b16 %v1133, %v1132
        %v1182 = vunpack.c.l.b16 %v1054
        %v1183 = vunpack.c.l.b16 %v1055
        %v1184 = vunpack.c.l.b16 %v1056
        %v1185 = vunpack.c.l.b16 %v1057
        %v1186 = vunpack.c.l.b16 %v1058
        %v1187 = vunpack.c.l.b16 %v1059
        %v1188 = vunpack.c.l.b16 %v1060
        %v1189 = vunpack.c.l.b16 %v1061
        %v1190 = vunpack.c.l.b16 %v1062
        %v1191 = vunpack.c.l.b16 %v1063
        %v1192 = vunpack.c.l.b16 %v1064
        %v1193 = vunpack.c.l.b16 %v1065
        %v1194 = vunpack.c.l.b16 %v1066
        %v1195 = vunpack.c.l.b16 %v1067
        %v1196 = vunpack.c.l.b16 %v1068
        %v1197 = vunpack.c.l.b16 %v1069
        %v1198 = vpack.c.b16 %v1183, %v1182
        %v1199 = vpack.c.b16 %v1185, %v1184
        %v1200 = vpack.c.b16 %v1187, %v1186
        %v1201 = vpack.c.b16 %v1189, %v1188
        %v1202 = vpack.c.b16 %v1191, %v1190
        %v1203 = vpack.c.b16 %v1193, %v1192
        %v1204 = vpack.c.b16 %v1195, %v1194
        %v1205 = vpack.c.b16 %v1197, %v1196
        %1214 = vmatprep.subr.bf16.mxu0 0
        %1215 = vmatpush1.bf16.msra.mxu0 %v1198
        %1216 = vmatprep.subr.bf16.mxu0 0
        %1217 = vmatpush1.bf16.msra.mxu0 %v1199
        %1218 = vmatprep.subr.bf16.mxu0 0
        %1219 = vmatpush1.bf16.msra.mxu0 %v1200
        %1220 = vmatprep.subr.bf16.mxu0 0
        %1221 = vmatpush1.bf16.msra.mxu0 %v1201
        %1222 = vmatprep.subr.bf16.mxu0 0
        %1223 = vmatpush1.bf16.msra.mxu0 %v1202
        %1224 = vmatprep.subr.bf16.mxu0 0
        %1225 = vmatpush1.bf16.msra.mxu0 %v1203
        %1226 = vmatprep.subr.bf16.mxu0 0
        %1227 = vmatpush1.bf16.msra.mxu0 %v1204
        %1228 = vmatprep.subr.bf16.mxu0 0
        %1229 = vmatpush1.bf16.msra.mxu0 %v1205
        %1230 = vmatprep.subr.bf16.mxu0 0
        %1231 = vmatpush1.bf16.msra.mxu0 0
        %1232 = vmatprep.subr.bf16.mxu0 0
        %1233 = vmatpush1.bf16.msra.mxu0 0
        %1234 = vmatprep.subr.bf16.mxu0 0
        %1235 = vmatpush1.bf16.msra.mxu0 0
        %1236 = vmatprep.subr.bf16.mxu0 0
        %1237 = vmatpush1.bf16.msra.mxu0 0
        %1238 = vmatprep.subr.bf16.mxu0 0
        %1239 = vmatpush1.bf16.msra.mxu0 0
        %1240 = vmatprep.subr.bf16.mxu0 0
        %1241 = vmatpush1.bf16.msra.mxu0 0
        %1242 = vmatprep.subr.bf16.mxu0 0
        %1243 = vmatpush1.bf16.msra.mxu0 0
        %1244 = vmatprep.subr.bf16.mxu0 0
        %1245 = vmatpush1.bf16.msra.mxu0 0
        %1246 = vmatprep.mubr.bf16.mxu0 0
        %1247 = vmatmul.mubr.bf16.gmra.mrb[0].mxu0 %v1134
        %v1248 = vpop.f32.mrb[0].mxu0
        %v1249 = vadd.f32 0.0, %v1248
        %v1250 = vpop.f32.mrb[0].mxu0
        %v1251 = vpop.f32.mrb[0].mxu0
        %v1252 = vadd.f32 0.0, %v1251
        %v1253 = vpop.f32.mrb[0].mxu0
        %1254 = vmatprep.mubr.bf16.mxu0 0
        %1255 = vmatmul.mubr.bf16.gmra.mrb[0].mxu0 %v1135
        %v1256 = vpop.f32.mrb[0].mxu0
        %v1257 = vadd.f32 0.0, %v1256
        %v1258 = vpop.f32.mrb[0].mxu0
        %v1259 = vpop.f32.mrb[0].mxu0
        %v1260 = vadd.f32 0.0, %v1259
        %v1261 = vpop.f32.mrb[0].mxu0
        %1262 = vmatprep.mubr.bf16.mxu0 0
        %1263 = vmatmul.mubr.bf16.gmra.mrb[0].mxu0 %v1136
        %v1264 = vpop.f32.mrb[0].mxu0
        %v1265 = vadd.f32 0.0, %v1264
        %v1266 = vpop.f32.mrb[0].mxu0
        %v1267 = vpop.f32.mrb[0].mxu0
        %v1268 = vadd.f32 0.0, %v1267
        %v1269 = vpop.f32.mrb[0].mxu0
        %1270 = vmatprep.mubr.bf16.mxu0 0
        %1271 = vmatmul.mubr.bf16.gmra.mrb[0].mxu0 %v1137
        %v1272 = vpop.f32.mrb[0].mxu0
        %v1273 = vadd.f32 0.0, %v1272
        %v1274 = vpop.f32.mrb[0].mxu0
        %v1275 = vpop.f32.mrb[0].mxu0
        %v1276 = vadd.f32 0.0, %v1275
        %v1277 = vpop.f32.mrb[0].mxu0
        %1278 = vmatprep.mubr.bf16.mxu0 0
        %1279 = vmatmul.mubr.bf16.gmra.mrb[0].mxu0 %v1138
        %v1280 = vpop.f32.mrb[0].mxu0
        %v1281 = vadd.f32 0.0, %v1280
        %v1282 = vpop.f32.mrb[0].mxu0
        %v1283 = vpop.f32.mrb[0].mxu0
        %v1284 = vadd.f32 0.0, %v1283
        %v1285 = vpop.f32.mrb[0].mxu0
        %1286 = vmatprep.mubr.bf16.mxu0 0
        %1287 = vmatmul.mubr.bf16.gmra.mrb[0].mxu0 %v1139
        %v1288 = vpop.f32.mrb[0].mxu0
        %v1289 = vadd.f32 0.0, %v1288
        %v1290 = vpop.f32.mrb[0].mxu0
        %v1291 = vpop.f32.mrb[0].mxu0
        %v1292 = vadd.f32 0.0, %v1291
        %v1293 = vpop.f32.mrb[0].mxu0
        %1294 = vmatprep.mubr.bf16.mxu0 0
        %1295 = vmatmul.mubr.bf16.gmra.mrb[0].mxu0 %v1140
        %v1296 = vpop.f32.mrb[0].mxu0
        %v1297 = vadd.f32 0.0, %v1296
        %v1298 = vpop.f32.mrb[0].mxu0
        %v1299 = vpop.f32.mrb[0].mxu0
        %v1300 = vadd.f32 0.0, %v1299
        %v1301 = vpop.f32.mrb[0].mxu0
        %1302 = vmatprep.mubr.bf16.mxu0 0
        %1303 = vmatmul.mubr.bf16.gmra.mrb[0].mxu0 %v1141
        %v1304 = vpop.f32.mrb[0].mxu0
        %v1305 = vadd.f32 0.0, %v1304
        %v1306 = vpop.f32.mrb[0].mxu0
        %v1307 = vpop.f32.mrb[0].mxu0
        %v1308 = vadd.f32 0.0, %v1307
        %v1309 = vpop.f32.mrb[0].mxu0
        %1310 = vmatprep.mubr.bf16.mxu0 0
        %1311 = vmatmul.mubr.bf16.gmra.mrb[0].mxu0 %v1142
        %v1312 = vpop.f32.mrb[0].mxu0
        %v1313 = vadd.f32 0.0, %v1312
        %v1314 = vpop.f32.mrb[0].mxu0
        %v1315 = vpop.f32.mrb[0].mxu0
        %v1316 = vadd.f32 0.0, %v1315
        %v1317 = vpop.f32.mrb[0].mxu0
        %1318 = vmatprep.mubr.bf16.mxu0 0
        %1319 = vmatmul.mubr.bf16.gmra.mrb[0].mxu0 %v1143
        %v1320 = vpop.f32.mrb[0].mxu0
        %v1321 = vadd.f32 0.0, %v1320
        %v1322 = vpop.f32.mrb[0].mxu0
        %v1323 = vpop.f32.mrb[0].mxu0
        %v1324 = vadd.f32 0.0, %v1323
        %v1325 = vpop.f32.mrb[0].mxu0
        %1326 = vmatprep.mubr.bf16.mxu0 0
        %1327 = vmatmul.mubr.bf16.gmra.mrb[0].mxu0 %v1144
        %v1328 = vpop.f32.mrb[0].mxu0
        %v1329 = vadd.f32 0.0, %v1328
        %v1330 = vpop.f32.mrb[0].mxu0
        %v1331 = vpop.f32.mrb[0].mxu0
        %v1332 = vadd.f32 0.0, %v1331
        %v1333 = vpop.f32.mrb[0].mxu0
        %1334 = vmatprep.mubr.bf16.mxu0 0
        %1335 = vmatmul.mubr.bf16.gmra.mrb[0].mxu0 %v1145
        %v1336 = vpop.f32.mrb[0].mxu0
        %v1337 = vadd.f32 0.0, %v1336
        %v1338 = vpop.f32.mrb[0].mxu0
        %v1339 = vpop.f32.mrb[0].mxu0
        %v1340 = vadd.f32 0.0, %v1339
        %v1341 = vpop.f32.mrb[0].mxu0
        %1342 = vmatprep.mubr.bf16.mxu0 0
        %1343 = vmatmul.mubr.bf16.gmra.mrb[0].mxu0 %v1146
        %v1344 = vpop.f32.mrb[0].mxu0
        %v1345 = vadd.f32 0.0, %v1344
        %v1346 = vpop.f32.mrb[0].mxu0
        %v1347 = vpop.f32.mrb[0].mxu0
        %v1348 = vadd.f32 0.0, %v1347
        %v1349 = vpop.f32.mrb[0].mxu0
        %1350 = vmatprep.mubr.bf16.mxu0 0
        %1351 = vmatmul.mubr.bf16.gmra.mrb[0].mxu0 %v1147
        %v1352 = vpop.f32.mrb[0].mxu0
        %v1353 = vadd.f32 0.0, %v1352
        %v1354 = vpop.f32.mrb[0].mxu0
        %v1355 = vpop.f32.mrb[0].mxu0
        %v1356 = vadd.f32 0.0, %v1355
        %v1357 = vpop.f32.mrb[0].mxu0
        %1358 = vmatprep.mubr.bf16.mxu0 0
        %1359 = vmatmul.mubr.bf16.gmra.mrb[0].mxu0 %v1148
        %v1360 = vpop.f32.mrb[0].mxu0
        %v1361 = vadd.f32 0.0, %v1360
        %v1362 = vpop.f32.mrb[0].mxu0
        %v1363 = vpop.f32.mrb[0].mxu0
        %v1364 = vadd.f32 0.0, %v1363
        %v1365 = vpop.f32.mrb[0].mxu0
        %1366 = vmatprep.mubr.bf16.mxu0 0
        %1367 = vmatmul.mubr.bf16.gmra.mrb[0].mxu0 %v1149
        %v1368 = vpop.f32.mrb[0].mxu0
        %v1369 = vadd.f32 0.0, %v1368
        %v1370 = vpop.f32.mrb[0].mxu0
        %v1371 = vpop.f32.mrb[0].mxu0
        %v1372 = vadd.f32 0.0, %v1371
        %v1373 = vpop.f32.mrb[0].mxu0
        %1374 = vdwg.mxu0
        %v1375 = vpack.c.bf16 %v1252, %v1249
        %v1376 = vpack.c.bf16 %v1260, %v1257
        %v1377 = vpack.c.bf16 %v1268, %v1265
        %v1378 = vpack.c.bf16 %v1276, %v1273
        %v1379 = vpack.c.bf16 %v1284, %v1281
        %v1380 = vpack.c.bf16 %v1292, %v1289
        %v1381 = vpack.c.bf16 %v1300, %v1297
        %v1382 = vpack.c.bf16 %v1308, %v1305
        %v1383 = vpack.c.bf16 %v1316, %v1313
        %v1384 = vpack.c.bf16 %v1324, %v1321
        %v1385 = vpack.c.bf16 %v1332, %v1329
        %v1386 = vpack.c.bf16 %v1340, %v1337
        %v1387 = vpack.c.bf16 %v1348, %v1345
        %v1388 = vpack.c.bf16 %v1356, %v1353
        %v1389 = vpack.c.bf16 %v1364, %v1361
        %v1390 = vpack.c.bf16 %v1372, %v1369
        %1407 = vrot.lane.b32.xlu0 %v1375, 96
        %v1408 = vpop.permute.xlu0 %1407
        %1409 = vrot.lane.b32.xlu0 %v1376, 96
        %v1410 = vpop.permute.xlu0 %1409
        %1411 = vrot.lane.b32.xlu0 %v1377, 96
        %v1412 = vpop.permute.xlu0 %1411
        %1413 = vrot.lane.b32.xlu0 %v1378, 96
        %v1414 = vpop.permute.xlu0 %1413
        %1415 = vrot.lane.b32.xlu0 %v1379, 96
        %v1416 = vpop.permute.xlu0 %1415
        %1417 = vrot.lane.b32.xlu0 %v1380, 96
        %v1418 = vpop.permute.xlu0 %1417
        %1419 = vrot.lane.b32.xlu0 %v1381, 96
        %v1420 = vpop.permute.xlu0 %1419
        %1421 = vrot.lane.b32.xlu0 %v1382, 96
        %v1422 = vpop.permute.xlu0 %1421
        %1423 = vrot.lane.b32.xlu0 %v1383, 96
        %v1424 = vpop.permute.xlu0 %1423
        %1425 = vrot.lane.b32.xlu0 %v1384, 96
        %v1426 = vpop.permute.xlu0 %1425
        %1427 = vrot.lane.b32.xlu0 %v1385, 96
        %v1428 = vpop.permute.xlu0 %1427
        %1429 = vrot.lane.b32.xlu0 %v1386, 96
        %v1430 = vpop.permute.xlu0 %1429
        %1431 = vrot.lane.b32.xlu0 %v1387, 96
        %v1432 = vpop.permute.xlu0 %1431
        %1433 = vrot.lane.b32.xlu0 %v1388, 96
        %v1434 = vpop.permute.xlu0 %1433
        %1435 = vrot.lane.b32.xlu0 %v1389, 96
        %v1436 = vpop.permute.xlu0 %1435
        %1437 = vrot.lane.b32.xlu0 %v1390, 96
        %v1438 = vpop.permute.xlu0 %1437
        %1439 = vrot.lane.b32.xlu0 %v1375, 64
        %v1440 = vpop.permute.xlu0 %1439
        %1441 = vrot.lane.b32.xlu0 %v1376, 64
        %v1442 = vpop.permute.xlu0 %1441
        %1443 = vrot.lane.b32.xlu0 %v1377, 64
        %v1444 = vpop.permute.xlu0 %1443
        %1445 = vrot.lane.b32.xlu0 %v1378, 64
        %v1446 = vpop.permute.xlu0 %1445
        %1447 = vrot.lane.b32.xlu0 %v1379, 64
        %v1448 = vpop.permute.xlu0 %1447
        %1449 = vrot.lane.b32.xlu0 %v1380, 64
        %v1450 = vpop.permute.xlu0 %1449
        %1451 = vrot.lane.b32.xlu0 %v1381, 64
        %v1452 = vpop.permute.xlu0 %1451
        %1453 = vrot.lane.b32.xlu0 %v1382, 64
        %v1454 = vpop.permute.xlu0 %1453
        %1455 = vrot.lane.b32.xlu0 %v1383, 64
        %v1456 = vpop.permute.xlu0 %1455
        %1457 = vrot.lane.b32.xlu0 %v1384, 64
        %v1458 = vpop.permute.xlu0 %1457
        %1459 = vrot.lane.b32.xlu0 %v1385, 64
        %v1460 = vpop.permute.xlu0 %1459
        %1461 = vrot.lane.b32.xlu0 %v1386, 64
        %v1462 = vpop.permute.xlu0 %1461
        %1463 = vrot.lane.b32.xlu0 %v1387, 64
        %v1464 = vpop.permute.xlu0 %1463
        %1465 = vrot.lane.b32.xlu0 %v1388, 64
        %v1466 = vpop.permute.xlu0 %1465
        %1467 = vrot.lane.b32.xlu0 %v1389, 64
        %v1468 = vpop.permute.xlu0 %1467
        %1469 = vrot.lane.b32.xlu0 %v1390, 64
        %v1470 = vpop.permute.xlu0 %1469
        %1471 = vrot.lane.b32.xlu0 %v1375, 32
        %v1472 = vpop.permute.xlu0 %1471
        %1473 = vrot.lane.b32.xlu0 %v1376, 32
        %v1474 = vpop.permute.xlu0 %1473
        %1475 = vrot.lane.b32.xlu0 %v1377, 32
        %v1476 = vpop.permute.xlu0 %1475
        %1477 = vrot.lane.b32.xlu0 %v1378, 32
        %v1478 = vpop.permute.xlu0 %1477
        %1479 = vrot.lane.b32.xlu0 %v1379, 32
        %v1480 = vpop.permute.xlu0 %1479
        %1481 = vrot.lane.b32.xlu0 %v1380, 32
        %v1482 = vpop.permute.xlu0 %1481
        %1483 = vrot.lane.b32.xlu0 %v1381, 32
        %v1484 = vpop.permute.xlu0 %1483
        %1485 = vrot.lane.b32.xlu0 %v1382, 32
        %v1486 = vpop.permute.xlu0 %1485
        %1487 = vrot.lane.b32.xlu0 %v1383, 32
        %v1488 = vpop.permute.xlu0 %1487
        %1489 = vrot.lane.b32.xlu0 %v1384, 32
        %v1490 = vpop.permute.xlu0 %1489
        %1491 = vrot.lane.b32.xlu0 %v1385, 32
        %v1492 = vpop.permute.xlu0 %1491
        %1493 = vrot.lane.b32.xlu0 %v1386, 32
        %v1494 = vpop.permute.xlu0 %1493
        %1495 = vrot.lane.b32.xlu0 %v1387, 32
        %v1496 = vpop.permute.xlu0 %1495
        %1497 = vrot.lane.b32.xlu0 %v1388, 32
        %v1498 = vpop.permute.xlu0 %1497
        %1499 = vrot.lane.b32.xlu0 %v1389, 32
        %v1500 = vpop.permute.xlu0 %1499
        %1501 = vrot.lane.b32.xlu0 %v1390, 32
        %v1502 = vpop.permute.xlu0 %1501
        %v1503 = vld [vmem:[#allocation2] sm:$0xff]
        %v1504 = vld [vmem:[#allocation2 + $0x8] sm:$0xff]
        %v1505 = vld [vmem:[#allocation2 + $0x10] sm:$0xff]
        %v1506 = vld [vmem:[#allocation2 + $0x18] sm:$0xff]
        %v1507 = vld [vmem:[#allocation2 + $0x20] sm:$0xff]
        %v1508 = vld [vmem:[#allocation2 + $0x28] sm:$0xff]
        %v1509 = vld [vmem:[#allocation2 + $0x30] sm:$0xff]
        %v1510 = vld [vmem:[#allocation2 + $0x38] sm:$0xff]
        %v1511 = vld [vmem:[#allocation2 + $0x40] sm:$0xff]
        %v1512 = vld [vmem:[#allocation2 + $0x48] sm:$0xff]
        %v1513 = vld [vmem:[#allocation2 + $0x50] sm:$0xff]
        %v1514 = vld [vmem:[#allocation2 + $0x58] sm:$0xff]
        %v1515 = vld [vmem:[#allocation2 + $0x60] sm:$0xff]
        %v1516 = vld [vmem:[#allocation2 + $0x68] sm:$0xff]
        %v1517 = vld [vmem:[#allocation2 + $0x70] sm:$0xff]
        %v1518 = vld [vmem:[#allocation2 + $0x78] sm:$0xff]
        %vm1519 = vcmask 261120
        %v1521 = vsel %vm1519, %v1375, 0
        %v1524 = vsel %vm1519, %v1376, 0
        %v1527 = vsel %vm1519, %v1377, 0
        %v1530 = vsel %vm1519, %v1378, 0
        %v1533 = vsel %vm1519, %v1379, 0
        %v1536 = vsel %vm1519, %v1380, 0
        %v1539 = vsel %vm1519, %v1381, 0
        %v1542 = vsel %vm1519, %v1382, 0
        %v1545 = vsel %vm1519, %v1383, 0
        %v1548 = vsel %vm1519, %v1384, 0
        %v1551 = vsel %vm1519, %v1385, 0
        %v1554 = vsel %vm1519, %v1386, 0
        %v1557 = vsel %vm1519, %v1387, 0
        %v1560 = vsel %vm1519, %v1388, 0
        %v1563 = vsel %vm1519, %v1389, 0
        %v1566 = vsel %vm1519, %v1390, 0
        %v1569 = vsel %vm1519, %v1408, 0
        %v1572 = vsel %vm1519, %v1410, 0
        %v1575 = vsel %vm1519, %v1412, 0
        %v1578 = vsel %vm1519, %v1414, 0
        %v1581 = vsel %vm1519, %v1416, 0
        %v1584 = vsel %vm1519, %v1418, 0
        %v1587 = vsel %vm1519, %v1420, 0
        %v1590 = vsel %vm1519, %v1422, 0
        %v1593 = vsel %vm1519, %v1424, 0
        %v1596 = vsel %vm1519, %v1426, 0
        %v1599 = vsel %vm1519, %v1428, 0
        %v1602 = vsel %vm1519, %v1430, 0
        %v1605 = vsel %vm1519, %v1432, 0
        %v1608 = vsel %vm1519, %v1434, 0
        %v1611 = vsel %vm1519, %v1436, 0
        %v1614 = vsel %vm1519, %v1438, 0
        %v1617 = vsel %vm1519, %v1503, 0
        %v1620 = vsel %vm1519, %v1504, 0
        %v1623 = vsel %vm1519, %v1505, 0
        %v1626 = vsel %vm1519, %v1506, 0
        %v1629 = vsel %vm1519, %v1507, 0
        %v1632 = vsel %vm1519, %v1508, 0
        %v1635 = vsel %vm1519, %v1509, 0
        %v1638 = vsel %vm1519, %v1510, 0
        %1640 = vmatprep.subr.bf16.mxu0 0
        %1641 = vmatpush1.bf16.xpose.msra.mxu0 %v1617
        %1642 = vmatprep.subr.bf16.mxu0 0
        %1643 = vmatpush1.bf16.xpose.msra.mxu0 %v1620
        %1644 = vmatprep.subr.bf16.mxu0 0
        %1645 = vmatpush1.bf16.xpose.msra.mxu0 %v1623
        %1646 = vmatprep.subr.bf16.mxu0 0
        %1647 = vmatpush1.bf16.xpose.msra.mxu0 %v1626
        %1648 = vmatprep.subr.bf16.mxu0 0
        %1649 = vmatpush1.bf16.xpose.msra.mxu0 %v1629
        %1650 = vmatprep.subr.bf16.mxu0 0
        %1651 = vmatpush1.bf16.xpose.msra.mxu0 %v1632
        %1652 = vmatprep.subr.bf16.mxu0 0
        %1653 = vmatpush1.bf16.xpose.msra.mxu0 %v1635
        %1654 = vmatprep.subr.bf16.mxu0 0
        %1655 = vmatpush1.bf16.xpose.msra.mxu0 %v1638
        %1656 = vmatprep.subr.bf16.mxu0 0
        %1657 = vmatpush1.bf16.xpose.msra.mxu0 0
        %1658 = vmatprep.subr.bf16.mxu0 0
        %1659 = vmatpush1.bf16.xpose.msra.mxu0 0
        %1660 = vmatprep.subr.bf16.mxu0 0
        %1661 = vmatpush1.bf16.xpose.msra.mxu0 0
        %1662 = vmatprep.subr.bf16.mxu0 0
        %1663 = vmatpush1.bf16.xpose.msra.mxu0 0
        %1664 = vmatprep.subr.bf16.mxu0 0
        %1665 = vmatpush1.bf16.xpose.msra.mxu0 0
        %1666 = vmatprep.subr.bf16.mxu0 0
        %1667 = vmatpush1.bf16.xpose.msra.mxu0 0
        %1668 = vmatprep.subr.bf16.mxu0 0
        %1669 = vmatpush1.bf16.xpose.msra.mxu0 0
        %1670 = vmatprep.subr.bf16.mxu0 0
        %1671 = vmatpush1.bf16.xpose.msra.mxu0 0
        %1672 = vmatprep.mubr.bf16.mxu0 0
        %1673 = vmatmul.mubr.bf16.gmra.mrb[0].mxu0 %v1521
        %v1674 = vpop.f32.mrb[0].mxu0
        %v1675 = vadd.f32 0.0, %v1674
        %v1676 = vpop.f32.mrb[0].mxu0
        %v1677 = vpop.f32.mrb[0].mxu0
        %v1678 = vadd.f32 0.0, %v1677
        %v1679 = vpop.f32.mrb[0].mxu0
        %1680 = vmatprep.mubr.bf16.mxu0 0
        %1681 = vmatmul.mubr.bf16.gmra.mrb[0].mxu0 %v1524
        %v1682 = vpop.f32.mrb[0].mxu0
        %v1683 = vadd.f32 0.0, %v1682
        %v1684 = vpop.f32.mrb[0].mxu0
        %v1685 = vpop.f32.mrb[0].mxu0
        %v1686 = vadd.f32 0.0, %v1685
        %v1687 = vpop.f32.mrb[0].mxu0
        %1688 = vmatprep.mubr.bf16.mxu0 0
        %1689 = vmatmul.mubr.bf16.gmra.mrb[0].mxu0 %v1527
        %v1690 = vpop.f32.mrb[0].mxu0
        %v1691 = vadd.f32 0.0, %v1690
        %v1692 = vpop.f32.mrb[0].mxu0
        %v1693 = vpop.f32.mrb[0].mxu0
        %v1694 = vadd.f32 0.0, %v1693
        %v1695 = vpop.f32.mrb[0].mxu0
        %1696 = vmatprep.mubr.bf16.mxu0 0
        %1697 = vmatmul.mubr.bf16.gmra.mrb[0].mxu0 %v1530
        %v1698 = vpop.f32.mrb[0].mxu0
        %v1699 = vadd.f32 0.0, %v1698
        %v1700 = vpop.f32.mrb[0].mxu0
        %v1701 = vpop.f32.mrb[0].mxu0
        %v1702 = vadd.f32 0.0, %v1701
        %v1703 = vpop.f32.mrb[0].mxu0
        %1704 = vmatprep.mubr.bf16.mxu0 0
        %1705 = vmatmul.mubr.bf16.gmra.mrb[0].mxu0 %v1533
        %v1706 = vpop.f32.mrb[0].mxu0
        %v1707 = vadd.f32 0.0, %v1706
        %v1708 = vpop.f32.mrb[0].mxu0
        %v1709 = vpop.f32.mrb[0].mxu0
        %v1710 = vadd.f32 0.0, %v1709
        %v1711 = vpop.f32.mrb[0].mxu0
        %1712 = vmatprep.mubr.bf16.mxu0 0
        %1713 = vmatmul.mubr.bf16.gmra.mrb[0].mxu0 %v1536
        %v1714 = vpop.f32.mrb[0].mxu0
        %v1715 = vadd.f32 0.0, %v1714
        %v1716 = vpop.f32.mrb[0].mxu0
        %v1717 = vpop.f32.mrb[0].mxu0
        %v1718 = vadd.f32 0.0, %v1717
        %v1719 = vpop.f32.mrb[0].mxu0
        %1720 = vmatprep.mubr.bf16.mxu0 0
        %1721 = vmatmul.mubr.bf16.gmra.mrb[0].mxu0 %v1539
        %v1722 = vpop.f32.mrb[0].mxu0
        %v1723 = vadd.f32 0.0, %v1722
        %v1724 = vpop.f32.mrb[0].mxu0
        %v1725 = vpop.f32.mrb[0].mxu0
        %v1726 = vadd.f32 0.0, %v1725
        %v1727 = vpop.f32.mrb[0].mxu0
        %1728 = vmatprep.mubr.bf16.mxu0 0
        %1729 = vmatmul.mubr.bf16.gmra.mrb[0].mxu0 %v1542
        %v1730 = vpop.f32.mrb[0].mxu0
        %v1731 = vadd.f32 0.0, %v1730
        %v1732 = vpop.f32.mrb[0].mxu0
        %v1733 = vpop.f32.mrb[0].mxu0
        %v1734 = vadd.f32 0.0, %v1733
        %v1735 = vpop.f32.mrb[0].mxu0
        %1736 = vmatprep.mubr.bf16.mxu0 0
        %1737 = vmatmul.mubr.bf16.gmra.mrb[0].mxu0 %v1545
        %v1738 = vpop.f32.mrb[0].mxu0
        %v1739 = vadd.f32 0.0, %v1738
        %v1740 = vpop.f32.mrb[0].mxu0
        %v1741 = vpop.f32.mrb[0].mxu0
        %v1742 = vadd.f32 0.0, %v1741
        %v1743 = vpop.f32.mrb[0].mxu0
        %1744 = vmatprep.mubr.bf16.mxu0 0
        %1745 = vmatmul.mubr.bf16.gmra.mrb[0].mxu0 %v1548
        %v1746 = vpop.f32.mrb[0].mxu0
        %v1747 = vadd.f32 0.0, %v1746
        %v1748 = vpop.f32.mrb[0].mxu0
        %v1749 = vpop.f32.mrb[0].mxu0
        %v1750 = vadd.f32 0.0, %v1749
        %v1751 = vpop.f32.mrb[0].mxu0
        %1752 = vmatprep.mubr.bf16.mxu0 0
        %1753 = vmatmul.mubr.bf16.gmra.mrb[0].mxu0 %v1551
        %v1754 = vpop.f32.mrb[0].mxu0
        %v1755 = vadd.f32 0.0, %v1754
        %v1756 = vpop.f32.mrb[0].mxu0
        %v1757 = vpop.f32.mrb[0].mxu0
        %v1758 = vadd.f32 0.0, %v1757
        %v1759 = vpop.f32.mrb[0].mxu0
        %1760 = vmatprep.mubr.bf16.mxu0 0
        %1761 = vmatmul.mubr.bf16.gmra.mrb[0].mxu0 %v1554
        %v1762 = vpop.f32.mrb[0].mxu0
        %v1763 = vadd.f32 0.0, %v1762
        %v1764 = vpop.f32.mrb[0].mxu0
        %v1765 = vpop.f32.mrb[0].mxu0
        %v1766 = vadd.f32 0.0, %v1765
        %v1767 = vpop.f32.mrb[0].mxu0
        %1768 = vmatprep.mubr.bf16.mxu0 0
        %1769 = vmatmul.mubr.bf16.gmra.mrb[0].mxu0 %v1557
        %v1770 = vpop.f32.mrb[0].mxu0
        %v1771 = vadd.f32 0.0, %v1770
        %v1772 = vpop.f32.mrb[0].mxu0
        %v1773 = vpop.f32.mrb[0].mxu0
        %v1774 = vadd.f32 0.0, %v1773
        %v1775 = vpop.f32.mrb[0].mxu0
        %1776 = vmatprep.mubr.bf16.mxu0 0
        %1777 = vmatmul.mubr.bf16.gmra.mrb[0].mxu0 %v1560
        %v1778 = vpop.f32.mrb[0].mxu0
        %v1779 = vadd.f32 0.0, %v1778
        %v1780 = vpop.f32.mrb[0].mxu0
        %v1781 = vpop.f32.mrb[0].mxu0
        %v1782 = vadd.f32 0.0, %v1781
        %v1783 = vpop.f32.mrb[0].mxu0
        %1784 = vmatprep.mubr.bf16.mxu0 0
        %1785 = vmatmul.mubr.bf16.gmra.mrb[0].mxu0 %v1563
        %v1786 = vpop.f32.mrb[0].mxu0
        %v1787 = vadd.f32 0.0, %v1786
        %v1788 = vpop.f32.mrb[0].mxu0
        %v1789 = vpop.f32.mrb[0].mxu0
        %v1790 = vadd.f32 0.0, %v1789
        %v1791 = vpop.f32.mrb[0].mxu0
        %1792 = vmatprep.mubr.bf16.mxu0 0
        %1793 = vmatmul.mubr.bf16.gmra.mrb[0].mxu0 %v1566
        %v1794 = vpop.f32.mrb[0].mxu0
        %v1795 = vadd.f32 0.0, %v1794
        %v1796 = vpop.f32.mrb[0].mxu0
        %v1797 = vpop.f32.mrb[0].mxu0
        %v1798 = vadd.f32 0.0, %v1797
        %v1799 = vpop.f32.mrb[0].mxu0
        %1800 = vmatprep.mubr.bf16.mxu0 0
        %1801 = vmatmul.mubr.bf16.gmra.mrb[0].mxu0 %v1569
        %v1802 = vpop.f32.mrb[0].mxu0
        %v1803 = vadd.f32 0.0, %v1802
        %v1804 = vpop.f32.mrb[0].mxu0
        %v1805 = vpop.f32.mrb[0].mxu0
        %v1806 = vadd.f32 0.0, %v1805
        %v1807 = vpop.f32.mrb[0].mxu0
        %1808 = vmatprep.mubr.bf16.mxu0 0
        %1809 = vmatmul.mubr.bf16.gmra.mrb[0].mxu0 %v1572
        %v1810 = vpop.f32.mrb[0].mxu0
        %v1811 = vadd.f32 0.0, %v1810
        %v1812 = vpop.f32.mrb[0].mxu0
        %v1813 = vpop.f32.mrb[0].mxu0
        %v1814 = vadd.f32 0.0, %v1813
        %v1815 = vpop.f32.mrb[0].mxu0
        %1816 = vmatprep.mubr.bf16.mxu0 0
        %1817 = vmatmul.mubr.bf16.gmra.mrb[0].mxu0 %v1575
        %v1818 = vpop.f32.mrb[0].mxu0
        %v1819 = vadd.f32 0.0, %v1818
        %v1820 = vpop.f32.mrb[0].mxu0
        %v1821 = vpop.f32.mrb[0].mxu0
        %v1822 = vadd.f32 0.0, %v1821
        %v1823 = vpop.f32.mrb[0].mxu0
        %1824 = vmatprep.mubr.bf16.mxu0 0
        %1825 = vmatmul.mubr.bf16.gmra.mrb[0].mxu0 %v1578
        %v1826 = vpop.f32.mrb[0].mxu0
        %v1827 = vadd.f32 0.0, %v1826
        %v1828 = vpop.f32.mrb[0].mxu0
        %v1829 = vpop.f32.mrb[0].mxu0
        %v1830 = vadd.f32 0.0, %v1829
        %v1831 = vpop.f32.mrb[0].mxu0
        %1832 = vmatprep.mubr.bf16.mxu0 0
        %1833 = vmatmul.mubr.bf16.gmra.mrb[0].mxu0 %v1581
        %v1834 = vpop.f32.mrb[0].mxu0
        %v1835 = vadd.f32 0.0, %v1834
        %v1836 = vpop.f32.mrb[0].mxu0
        %v1837 = vpop.f32.mrb[0].mxu0
        %v1838 = vadd.f32 0.0, %v1837
        %v1839 = vpop.f32.mrb[0].mxu0
        %1840 = vmatprep.mubr.bf16.mxu0 0
        %1841 = vmatmul.mubr.bf16.gmra.mrb[0].mxu0 %v1584
        %v1842 = vpop.f32.mrb[0].mxu0
        %v1843 = vadd.f32 0.0, %v1842
        %v1844 = vpop.f32.mrb[0].mxu0
        %v1845 = vpop.f32.mrb[0].mxu0
        %v1846 = vadd.f32 0.0, %v1845
        %v1847 = vpop.f32.mrb[0].mxu0
        %1848 = vmatprep.mubr.bf16.mxu0 0
        %1849 = vmatmul.mubr.bf16.gmra.mrb[0].mxu0 %v1587
        %v1850 = vpop.f32.mrb[0].mxu0
        %v1851 = vadd.f32 0.0, %v1850
        %v1852 = vpop.f32.mrb[0].mxu0
        %v1853 = vpop.f32.mrb[0].mxu0
        %v1854 = vadd.f32 0.0, %v1853
        %v1855 = vpop.f32.mrb[0].mxu0
        %1856 = vmatprep.mubr.bf16.mxu0 0
        %1857 = vmatmul.mubr.bf16.gmra.mrb[0].mxu0 %v1590
        %v1858 = vpop.f32.mrb[0].mxu0
        %v1859 = vadd.f32 0.0, %v1858
        %v1860 = vpop.f32.mrb[0].mxu0
        %v1861 = vpop.f32.mrb[0].mxu0
        %v1862 = vadd.f32 0.0, %v1861
        %v1863 = vpop.f32.mrb[0].mxu0
        %1864 = vmatprep.mubr.bf16.mxu0 0
        %1865 = vmatmul.mubr.bf16.gmra.mrb[0].mxu0 %v1593
        %v1866 = vpop.f32.mrb[0].mxu0
        %v1867 = vadd.f32 0.0, %v1866
        %v1868 = vpop.f32.mrb[0].mxu0
        %v1869 = vpop.f32.mrb[0].mxu0
        %v1870 = vadd.f32 0.0, %v1869
        %v1871 = vpop.f32.mrb[0].mxu0
        %1872 = vmatprep.mubr.bf16.mxu0 0
        %1873 = vmatmul.mubr.bf16.gmra.mrb[0].mxu0 %v1596
        %v1874 = vpop.f32.mrb[0].mxu0
        %v1875 = vadd.f32 0.0, %v1874
        %v1876 = vpop.f32.mrb[0].mxu0
        %v1877 = vpop.f32.mrb[0].mxu0
        %v1878 = vadd.f32 0.0, %v1877
        %v1879 = vpop.f32.mrb[0].mxu0
        %1880 = vmatprep.mubr.bf16.mxu0 0
        %1881 = vmatmul.mubr.bf16.gmra.mrb[0].mxu0 %v1599
        %v1882 = vpop.f32.mrb[0].mxu0
        %v1883 = vadd.f32 0.0, %v1882
        %v1884 = vpop.f32.mrb[0].mxu0
        %v1885 = vpop.f32.mrb[0].mxu0
        %v1886 = vadd.f32 0.0, %v1885
        %v1887 = vpop.f32.mrb[0].mxu0
        %1888 = vmatprep.mubr.bf16.mxu0 0
        %1889 = vmatmul.mubr.bf16.gmra.mrb[0].mxu0 %v1602
        %v1890 = vpop.f32.mrb[0].mxu0
        %v1891 = vadd.f32 0.0, %v1890
        %v1892 = vpop.f32.mrb[0].mxu0
        %v1893 = vpop.f32.mrb[0].mxu0
        %v1894 = vadd.f32 0.0, %v1893
        %v1895 = vpop.f32.mrb[0].mxu0
        %1896 = vmatprep.mubr.bf16.mxu0 0
        %1897 = vmatmul.mubr.bf16.gmra.mrb[0].mxu0 %v1605
        %v1898 = vpop.f32.mrb[0].mxu0
        %v1899 = vadd.f32 0.0, %v1898
        %v1900 = vpop.f32.mrb[0].mxu0
        %v1901 = vpop.f32.mrb[0].mxu0
        %v1902 = vadd.f32 0.0, %v1901
        %v1903 = vpop.f32.mrb[0].mxu0
        %1904 = vmatprep.mubr.bf16.mxu0 0
        %1905 = vmatmul.mubr.bf16.gmra.mrb[0].mxu0 %v1608
        %v1906 = vpop.f32.mrb[0].mxu0
        %v1907 = vadd.f32 0.0, %v1906
        %v1908 = vpop.f32.mrb[0].mxu0
        %v1909 = vpop.f32.mrb[0].mxu0
        %v1910 = vadd.f32 0.0, %v1909
        %v1911 = vpop.f32.mrb[0].mxu0
        %1912 = vmatprep.mubr.bf16.mxu0 0
        %1913 = vmatmul.mubr.bf16.gmra.mrb[0].mxu0 %v1611
        %v1914 = vpop.f32.mrb[0].mxu0
        %v1915 = vadd.f32 0.0, %v1914
        %v1916 = vpop.f32.mrb[0].mxu0
        %v1917 = vpop.f32.mrb[0].mxu0
        %v1918 = vadd.f32 0.0, %v1917
        %v1919 = vpop.f32.mrb[0].mxu0
        %1920 = vmatprep.mubr.bf16.mxu0 0
        %1921 = vmatmul.mubr.bf16.gmra.mrb[0].mxu0 %v1614
        %v1922 = vpop.f32.mrb[0].mxu0
        %v1923 = vadd.f32 0.0, %v1922
        %v1924 = vpop.f32.mrb[0].mxu0
        %v1925 = vpop.f32.mrb[0].mxu0
        %v1926 = vadd.f32 0.0, %v1925
        %v1927 = vpop.f32.mrb[0].mxu0
        %1928 = vdwg.mxu0
        %v1930 = vsel %vm1519, %v1440, 0
        %v1933 = vsel %vm1519, %v1442, 0
        %v1936 = vsel %vm1519, %v1444, 0
        %v1939 = vsel %vm1519, %v1446, 0
        %v1942 = vsel %vm1519, %v1448, 0
        %v1945 = vsel %vm1519, %v1450, 0
        %v1948 = vsel %vm1519, %v1452, 0
        %v1951 = vsel %vm1519, %v1454, 0
        %v1954 = vsel %vm1519, %v1456, 0
        %v1957 = vsel %vm1519, %v1458, 0
        %v1960 = vsel %vm1519, %v1460, 0
        %v1963 = vsel %vm1519, %v1462, 0
        %v1966 = vsel %vm1519, %v1464, 0
        %v1969 = vsel %vm1519, %v1466, 0
        %v1972 = vsel %vm1519, %v1468, 0
        %v1975 = vsel %vm1519, %v1470, 0
        %v1978 = vsel %vm1519, %v1472, 0
        %v1981 = vsel %vm1519, %v1474, 0
        %v1984 = vsel %vm1519, %v1476, 0
        %v1987 = vsel %vm1519, %v1478, 0
        %v1990 = vsel %vm1519, %v1480, 0
        %v1993 = vsel %vm1519, %v1482, 0
        %v1996 = vsel %vm1519, %v1484, 0
        %v1999 = vsel %vm1519, %v1486, 0
        %v2002 = vsel %vm1519, %v1488, 0
        %v2005 = vsel %vm1519, %v1490, 0
        %v2008 = vsel %vm1519, %v1492, 0
        %v2011 = vsel %vm1519, %v1494, 0
        %v2014 = vsel %vm1519, %v1496, 0
        %v2017 = vsel %vm1519, %v1498, 0
        %v2020 = vsel %vm1519, %v1500, 0
        %v2023 = vsel %vm1519, %v1502, 0
        %v2026 = vsel %vm1519, %v1511, 0
        %v2029 = vsel %vm1519, %v1512, 0
        %v2032 = vsel %vm1519, %v1513, 0
        %v2035 = vsel %vm1519, %v1514, 0
        %v2038 = vsel %vm1519, %v1515, 0
        %v2041 = vsel %vm1519, %v1516, 0
        %v2044 = vsel %vm1519, %v1517, 0
        %v2047 = vsel %vm1519, %v1518, 0
        %2049 = vmatprep.subr.bf16.mxu0 0
        %2050 = vmatpush1.bf16.xpose.msra.mxu0 %v2026
        %2051 = vmatprep.subr.bf16.mxu0 0
        %2052 = vmatpush1.bf16.xpose.msra.mxu0 %v2029
        %2053 = vmatprep.subr.bf16.mxu0 0
        %2054 = vmatpush1.bf16.xpose.msra.mxu0 %v2032
        %2055 = vmatprep.subr.bf16.mxu0 0
        %2056 = vmatpush1.bf16.xpose.msra.mxu0 %v2035
        %2057 = vmatprep.subr.bf16.mxu0 0
        %2058 = vmatpush1.bf16.xpose.msra.mxu0 %v2038
        %2059 = vmatprep.subr.bf16.mxu0 0
        %2060 = vmatpush1.bf16.xpose.msra.mxu0 %v2041
        %2061 = vmatprep.subr.bf16.mxu0 0
        %2062 = vmatpush1.bf16.xpose.msra.mxu0 %v2044
        %2063 = vmatprep.subr.bf16.mxu0 0
        %2064 = vmatpush1.bf16.xpose.msra.mxu0 %v2047
        %2065 = vmatprep.subr.bf16.mxu0 0
        %2066 = vmatpush1.bf16.xpose.msra.mxu0 0
        %2067 = vmatprep.subr.bf16.mxu0 0
        %2068 = vmatpush1.bf16.xpose.msra.mxu0 0
        %2069 = vmatprep.subr.bf16.mxu0 0
        %2070 = vmatpush1.bf16.xpose.msra.mxu0 0
        %2071 = vmatprep.subr.bf16.mxu0 0
        %2072 = vmatpush1.bf16.xpose.msra.mxu0 0
        %2073 = vmatprep.subr.bf16.mxu0 0
        %2074 = vmatpush1.bf16.xpose.msra.mxu0 0
        %2075 = vmatprep.subr.bf16.mxu0 0
        %2076 = vmatpush1.bf16.xpose.msra.mxu0 0
        %2077 = vmatprep.subr.bf16.mxu0 0
        %2078 = vmatpush1.bf16.xpose.msra.mxu0 0
        %2079 = vmatprep.subr.bf16.mxu0 0
        %2080 = vmatpush1.bf16.xpose.msra.mxu0 0
        %2081 = vmatprep.mubr.bf16.mxu0 0
        %2082 = vmatmul.mubr.bf16.gmra.mrb[0].mxu0 %v1930
        %v2083 = vpop.f32.mrb[0].mxu0
        %v2084 = vadd.f32 0.0, %v2083
        %v2085 = vpop.f32.mrb[0].mxu0
        %v2086 = vpop.f32.mrb[0].mxu0
        %v2087 = vadd.f32 0.0, %v2086
        %v2088 = vpop.f32.mrb[0].mxu0
        %2089 = vmatprep.mubr.bf16.mxu0 0
        %2090 = vmatmul.mubr.bf16.gmra.mrb[0].mxu0 %v1933
        %v2091 = vpop.f32.mrb[0].mxu0
        %v2092 = vadd.f32 0.0, %v2091
        %v2093 = vpop.f32.mrb[0].mxu0
        %v2094 = vpop.f32.mrb[0].mxu0
        %v2095 = vadd.f32 0.0, %v2094
        %v2096 = vpop.f32.mrb[0].mxu0
        %2097 = vmatprep.mubr.bf16.mxu0 0
        %2098 = vmatmul.mubr.bf16.gmra.mrb[0].mxu0 %v1936
        %v2099 = vpop.f32.mrb[0].mxu0
        %v2100 = vadd.f32 0.0, %v2099
        %v2101 = vpop.f32.mrb[0].mxu0
        %v2102 = vpop.f32.mrb[0].mxu0
        %v2103 = vadd.f32 0.0, %v2102
        %v2104 = vpop.f32.mrb[0].mxu0
        %2105 = vmatprep.mubr.bf16.mxu0 0
        %2106 = vmatmul.mubr.bf16.gmra.mrb[0].mxu0 %v1939
        %v2107 = vpop.f32.mrb[0].mxu0
        %v2108 = vadd.f32 0.0, %v2107
        %v2109 = vpop.f32.mrb[0].mxu0
        %v2110 = vpop.f32.mrb[0].mxu0
        %v2111 = vadd.f32 0.0, %v2110
        %v2112 = vpop.f32.mrb[0].mxu0
        %2113 = vmatprep.mubr.bf16.mxu0 0
        %2114 = vmatmul.mubr.bf16.gmra.mrb[0].mxu0 %v1942
        %v2115 = vpop.f32.mrb[0].mxu0
        %v2116 = vadd.f32 0.0, %v2115
        %v2117 = vpop.f32.mrb[0].mxu0
        %v2118 = vpop.f32.mrb[0].mxu0
        %v2119 = vadd.f32 0.0, %v2118
        %v2120 = vpop.f32.mrb[0].mxu0
        %2121 = vmatprep.mubr.bf16.mxu0 0
        %2122 = vmatmul.mubr.bf16.gmra.mrb[0].mxu0 %v1945
        %v2123 = vpop.f32.mrb[0].mxu0
        %v2124 = vadd.f32 0.0, %v2123
        %v2125 = vpop.f32.mrb[0].mxu0
        %v2126 = vpop.f32.mrb[0].mxu0
        %v2127 = vadd.f32 0.0, %v2126
        %v2128 = vpop.f32.mrb[0].mxu0
        %2129 = vmatprep.mubr.bf16.mxu0 0
        %2130 = vmatmul.mubr.bf16.gmra.mrb[0].mxu0 %v1948
        %v2131 = vpop.f32.mrb[0].mxu0
        %v2132 = vadd.f32 0.0, %v2131
        %v2133 = vpop.f32.mrb[0].mxu0
        %v2134 = vpop.f32.mrb[0].mxu0
        %v2135 = vadd.f32 0.0, %v2134
        %v2136 = vpop.f32.mrb[0].mxu0
        %2137 = vmatprep.mubr.bf16.mxu0 0
        %2138 = vmatmul.mubr.bf16.gmra.mrb[0].mxu0 %v1951
        %v2139 = vpop.f32.mrb[0].mxu0
        %v2140 = vadd.f32 0.0, %v2139
        %v2141 = vpop.f32.mrb[0].mxu0
        %v2142 = vpop.f32.mrb[0].mxu0
        %v2143 = vadd.f32 0.0, %v2142
        %v2144 = vpop.f32.mrb[0].mxu0
        %2145 = vmatprep.mubr.bf16.mxu0 0
        %2146 = vmatmul.mubr.bf16.gmra.mrb[0].mxu0 %v1954
        %v2147 = vpop.f32.mrb[0].mxu0
        %v2148 = vadd.f32 0.0, %v2147
        %v2149 = vpop.f32.mrb[0].mxu0
        %v2150 = vpop.f32.mrb[0].mxu0
        %v2151 = vadd.f32 0.0, %v2150
        %v2152 = vpop.f32.mrb[0].mxu0
        %2153 = vmatprep.mubr.bf16.mxu0 0
        %2154 = vmatmul.mubr.bf16.gmra.mrb[0].mxu0 %v1957
        %v2155 = vpop.f32.mrb[0].mxu0
        %v2156 = vadd.f32 0.0, %v2155
        %v2157 = vpop.f32.mrb[0].mxu0
        %v2158 = vpop.f32.mrb[0].mxu0
        %v2159 = vadd.f32 0.0, %v2158
        %v2160 = vpop.f32.mrb[0].mxu0
        %2161 = vmatprep.mubr.bf16.mxu0 0
        %2162 = vmatmul.mubr.bf16.gmra.mrb[0].mxu0 %v1960
        %v2163 = vpop.f32.mrb[0].mxu0
        %v2164 = vadd.f32 0.0, %v2163
        %v2165 = vpop.f32.mrb[0].mxu0
        %v2166 = vpop.f32.mrb[0].mxu0
        %v2167 = vadd.f32 0.0, %v2166
        %v2168 = vpop.f32.mrb[0].mxu0
        %2169 = vmatprep.mubr.bf16.mxu0 0
        %2170 = vmatmul.mubr.bf16.gmra.mrb[0].mxu0 %v1963
        %v2171 = vpop.f32.mrb[0].mxu0
        %v2172 = vadd.f32 0.0, %v2171
        %v2173 = vpop.f32.mrb[0].mxu0
        %v2174 = vpop.f32.mrb[0].mxu0
        %v2175 = vadd.f32 0.0, %v2174
        %v2176 = vpop.f32.mrb[0].mxu0
        %2177 = vmatprep.mubr.bf16.mxu0 0
        %2178 = vmatmul.mubr.bf16.gmra.mrb[0].mxu0 %v1966
        %v2179 = vpop.f32.mrb[0].mxu0
        %v2180 = vadd.f32 0.0, %v2179
        %v2181 = vpop.f32.mrb[0].mxu0
        %v2182 = vpop.f32.mrb[0].mxu0
        %v2183 = vadd.f32 0.0, %v2182
        %v2184 = vpop.f32.mrb[0].mxu0
        %2185 = vmatprep.mubr.bf16.mxu0 0
        %2186 = vmatmul.mubr.bf16.gmra.mrb[0].mxu0 %v1969
        %v2187 = vpop.f32.mrb[0].mxu0
        %v2188 = vadd.f32 0.0, %v2187
        %v2189 = vpop.f32.mrb[0].mxu0
        %v2190 = vpop.f32.mrb[0].mxu0
        %v2191 = vadd.f32 0.0, %v2190
        %v2192 = vpop.f32.mrb[0].mxu0
        %2193 = vmatprep.mubr.bf16.mxu0 0
        %2194 = vmatmul.mubr.bf16.gmra.mrb[0].mxu0 %v1972
        %v2195 = vpop.f32.mrb[0].mxu0
        %v2196 = vadd.f32 0.0, %v2195
        %v2197 = vpop.f32.mrb[0].mxu0
        %v2198 = vpop.f32.mrb[0].mxu0
        %v2199 = vadd.f32 0.0, %v2198
        %v2200 = vpop.f32.mrb[0].mxu0
        %2201 = vmatprep.mubr.bf16.mxu0 0
        %2202 = vmatmul.mubr.bf16.gmra.mrb[0].mxu0 %v1975
        %v2203 = vpop.f32.mrb[0].mxu0
        %v2204 = vadd.f32 0.0, %v2203
        %v2205 = vpop.f32.mrb[0].mxu0
        %v2206 = vpop.f32.mrb[0].mxu0
        %v2207 = vadd.f32 0.0, %v2206
        %v2208 = vpop.f32.mrb[0].mxu0
        %2209 = vmatprep.mubr.bf16.mxu0 0
        %2210 = vmatmul.mubr.bf16.gmra.mrb[0].mxu0 %v1978
        %v2211 = vpop.f32.mrb[0].mxu0
        %v2212 = vadd.f32 0.0, %v2211
        %v2213 = vpop.f32.mrb[0].mxu0
        %v2214 = vpop.f32.mrb[0].mxu0
        %v2215 = vadd.f32 0.0, %v2214
        %v2216 = vpop.f32.mrb[0].mxu0
        %2217 = vmatprep.mubr.bf16.mxu0 0
        %2218 = vmatmul.mubr.bf16.gmra.mrb[0].mxu0 %v1981
        %v2219 = vpop.f32.mrb[0].mxu0
        %v2220 = vadd.f32 0.0, %v2219
        %v2221 = vpop.f32.mrb[0].mxu0
        %v2222 = vpop.f32.mrb[0].mxu0
        %v2223 = vadd.f32 0.0, %v2222
        %v2224 = vpop.f32.mrb[0].mxu0
        %2225 = vmatprep.mubr.bf16.mxu0 0
        %2226 = vmatmul.mubr.bf16.gmra.mrb[0].mxu0 %v1984
        %v2227 = vpop.f32.mrb[0].mxu0
        %v2228 = vadd.f32 0.0, %v2227
        %v2229 = vpop.f32.mrb[0].mxu0
        %v2230 = vpop.f32.mrb[0].mxu0
        %v2231 = vadd.f32 0.0, %v2230
        %v2232 = vpop.f32.mrb[0].mxu0
        %2233 = vmatprep.mubr.bf16.mxu0 0
        %2234 = vmatmul.mubr.bf16.gmra.mrb[0].mxu0 %v1987
        %v2235 = vpop.f32.mrb[0].mxu0
        %v2236 = vadd.f32 0.0, %v2235
        %v2237 = vpop.f32.mrb[0].mxu0
        %v2238 = vpop.f32.mrb[0].mxu0
        %v2239 = vadd.f32 0.0, %v2238
        %v2240 = vpop.f32.mrb[0].mxu0
        %2241 = vmatprep.mubr.bf16.mxu0 0
        %2242 = vmatmul.mubr.bf16.gmra.mrb[0].mxu0 %v1990
        %v2243 = vpop.f32.mrb[0].mxu0
        %v2244 = vadd.f32 0.0, %v2243
        %v2245 = vpop.f32.mrb[0].mxu0
        %v2246 = vpop.f32.mrb[0].mxu0
        %v2247 = vadd.f32 0.0, %v2246
        %v2248 = vpop.f32.mrb[0].mxu0
        %2249 = vmatprep.mubr.bf16.mxu0 0
        %2250 = vmatmul.mubr.bf16.gmra.mrb[0].mxu0 %v1993
        %v2251 = vpop.f32.mrb[0].mxu0
        %v2252 = vadd.f32 0.0, %v2251
        %v2253 = vpop.f32.mrb[0].mxu0
        %v2254 = vpop.f32.mrb[0].mxu0
        %v2255 = vadd.f32 0.0, %v2254
        %v2256 = vpop.f32.mrb[0].mxu0
        %2257 = vmatprep.mubr.bf16.mxu0 0
        %2258 = vmatmul.mubr.bf16.gmra.mrb[0].mxu0 %v1996
        %v2259 = vpop.f32.mrb[0].mxu0
        %v2260 = vadd.f32 0.0, %v2259
        %v2261 = vpop.f32.mrb[0].mxu0
        %v2262 = vpop.f32.mrb[0].mxu0
        %v2263 = vadd.f32 0.0, %v2262
        %v2264 = vpop.f32.mrb[0].mxu0
        %2265 = vmatprep.mubr.bf16.mxu0 0
        %2266 = vmatmul.mubr.bf16.gmra.mrb[0].mxu0 %v1999
        %v2267 = vpop.f32.mrb[0].mxu0
        %v2268 = vadd.f32 0.0, %v2267
        %v2269 = vpop.f32.mrb[0].mxu0
        %v2270 = vpop.f32.mrb[0].mxu0
        %v2271 = vadd.f32 0.0, %v2270
        %v2272 = vpop.f32.mrb[0].mxu0
        %2273 = vmatprep.mubr.bf16.mxu0 0
        %2274 = vmatmul.mubr.bf16.gmra.mrb[0].mxu0 %v2002
        %v2275 = vpop.f32.mrb[0].mxu0
        %v2276 = vadd.f32 0.0, %v2275
        %v2277 = vpop.f32.mrb[0].mxu0
        %v2278 = vpop.f32.mrb[0].mxu0
        %v2279 = vadd.f32 0.0, %v2278
        %v2280 = vpop.f32.mrb[0].mxu0
        %2281 = vmatprep.mubr.bf16.mxu0 0
        %2282 = vmatmul.mubr.bf16.gmra.mrb[0].mxu0 %v2005
        %v2283 = vpop.f32.mrb[0].mxu0
        %v2284 = vadd.f32 0.0, %v2283
        %v2285 = vpop.f32.mrb[0].mxu0
        %v2286 = vpop.f32.mrb[0].mxu0
        %v2287 = vadd.f32 0.0, %v2286
        %v2288 = vpop.f32.mrb[0].mxu0
        %2289 = vmatprep.mubr.bf16.mxu0 0
        %2290 = vmatmul.mubr.bf16.gmra.mrb[0].mxu0 %v2008
        %v2291 = vpop.f32.mrb[0].mxu0
        %v2292 = vadd.f32 0.0, %v2291
        %v2293 = vpop.f32.mrb[0].mxu0
        %v2294 = vpop.f32.mrb[0].mxu0
        %v2295 = vadd.f32 0.0, %v2294
        %v2296 = vpop.f32.mrb[0].mxu0
        %2297 = vmatprep.mubr.bf16.mxu0 0
        %2298 = vmatmul.mubr.bf16.gmra.mrb[0].mxu0 %v2011
        %v2299 = vpop.f32.mrb[0].mxu0
        %v2300 = vadd.f32 0.0, %v2299
        %v2301 = vpop.f32.mrb[0].mxu0
        %v2302 = vpop.f32.mrb[0].mxu0
        %v2303 = vadd.f32 0.0, %v2302
        %v2304 = vpop.f32.mrb[0].mxu0
        %2305 = vmatprep.mubr.bf16.mxu0 0
        %2306 = vmatmul.mubr.bf16.gmra.mrb[0].mxu0 %v2014
        %v2307 = vpop.f32.mrb[0].mxu0
        %v2308 = vadd.f32 0.0, %v2307
        %v2309 = vpop.f32.mrb[0].mxu0
        %v2310 = vpop.f32.mrb[0].mxu0
        %v2311 = vadd.f32 0.0, %v2310
        %v2312 = vpop.f32.mrb[0].mxu0
        %2313 = vmatprep.mubr.bf16.mxu0 0
        %2314 = vmatmul.mubr.bf16.gmra.mrb[0].mxu0 %v2017
        %v2315 = vpop.f32.mrb[0].mxu0
        %v2316 = vadd.f32 0.0, %v2315
        %v2317 = vpop.f32.mrb[0].mxu0
        %v2318 = vpop.f32.mrb[0].mxu0
        %v2319 = vadd.f32 0.0, %v2318
        %v2320 = vpop.f32.mrb[0].mxu0
        %2321 = vmatprep.mubr.bf16.mxu0 0
        %2322 = vmatmul.mubr.bf16.gmra.mrb[0].mxu0 %v2020
        %v2323 = vpop.f32.mrb[0].mxu0
        %v2324 = vadd.f32 0.0, %v2323
        %v2325 = vpop.f32.mrb[0].mxu0
        %v2326 = vpop.f32.mrb[0].mxu0
        %v2327 = vadd.f32 0.0, %v2326
        %v2328 = vpop.f32.mrb[0].mxu0
        %2329 = vmatprep.mubr.bf16.mxu0 0
        %2330 = vmatmul.mubr.bf16.gmra.mrb[0].mxu0 %v2023
        %v2331 = vpop.f32.mrb[0].mxu0
        %v2332 = vadd.f32 0.0, %v2331
        %v2333 = vpop.f32.mrb[0].mxu0
        %v2334 = vpop.f32.mrb[0].mxu0
        %v2335 = vadd.f32 0.0, %v2334
        %v2336 = vpop.f32.mrb[0].mxu0
        %2337 = vdwg.mxu0
        %2338 = vmax.xlane.f32.xlu0 %v1675
        %v2339 = vpop.xlane.xlu0 %2338
        %2340 = vmax.xlane.f32.xlu0 %v1678
        %v2341 = vpop.xlane.xlu0 %2340
        %2342 = vmax.xlane.f32.xlu0 %v1683
        %v2343 = vpop.xlane.xlu0 %2342
        %2344 = vmax.xlane.f32.xlu0 %v1686
        %v2345 = vpop.xlane.xlu0 %2344
        %2346 = vmax.xlane.f32.xlu0 %v1691
        %v2347 = vpop.xlane.xlu0 %2346
        %2348 = vmax.xlane.f32.xlu0 %v1694
        %v2349 = vpop.xlane.xlu0 %2348
        %2350 = vmax.xlane.f32.xlu0 %v1699
        %v2351 = vpop.xlane.xlu0 %2350
        %2352 = vmax.xlane.f32.xlu0 %v1702
        %v2353 = vpop.xlane.xlu0 %2352
        %2354 = vmax.xlane.f32.xlu0 %v1707
        %v2355 = vpop.xlane.xlu0 %2354
        %2356 = vmax.xlane.f32.xlu0 %v1710
        %v2357 = vpop.xlane.xlu0 %2356
        %2358 = vmax.xlane.f32.xlu0 %v1715
        %v2359 = vpop.xlane.xlu0 %2358
        %2360 = vmax.xlane.f32.xlu0 %v1718
        %v2361 = vpop.xlane.xlu0 %2360
        %2362 = vmax.xlane.f32.xlu0 %v1723
        %v2363 = vpop.xlane.xlu0 %2362
        %2364 = vmax.xlane.f32.xlu0 %v1726
        %v2365 = vpop.xlane.xlu0 %2364
        %2366 = vmax.xlane.f32.xlu0 %v1731
        %v2367 = vpop.xlane.xlu0 %2366
        %2368 = vmax.xlane.f32.xlu0 %v1734
        %v2369 = vpop.xlane.xlu0 %2368
        %2370 = vmax.xlane.f32.xlu0 %v1739
        %v2371 = vpop.xlane.xlu0 %2370
        %2372 = vmax.xlane.f32.xlu0 %v1742
        %v2373 = vpop.xlane.xlu0 %2372
        %2374 = vmax.xlane.f32.xlu0 %v1747
        %v2375 = vpop.xlane.xlu0 %2374
        %2376 = vmax.xlane.f32.xlu0 %v1750
        %v2377 = vpop.xlane.xlu0 %2376
        %2378 = vmax.xlane.f32.xlu0 %v1755
        %v2379 = vpop.xlane.xlu0 %2378
        %2380 = vmax.xlane.f32.xlu0 %v1758
        %v2381 = vpop.xlane.xlu0 %2380
        %2382 = vmax.xlane.f32.xlu0 %v1763
        %v2383 = vpop.xlane.xlu0 %2382
        %2384 = vmax.xlane.f32.xlu0 %v1766
        %v2385 = vpop.xlane.xlu0 %2384
        %2386 = vmax.xlane.f32.xlu0 %v1771
        %v2387 = vpop.xlane.xlu0 %2386
        %2388 = vmax.xlane.f32.xlu0 %v1774
        %v2389 = vpop.xlane.xlu0 %2388
        %2390 = vmax.xlane.f32.xlu0 %v1779
        %v2391 = vpop.xlane.xlu0 %2390
        %2392 = vmax.xlane.f32.xlu0 %v1782
        %v2393 = vpop.xlane.xlu0 %2392
        %2394 = vmax.xlane.f32.xlu0 %v1787
        %v2395 = vpop.xlane.xlu0 %2394
        %2396 = vmax.xlane.f32.xlu0 %v1790
        %v2397 = vpop.xlane.xlu0 %2396
        %2398 = vmax.xlane.f32.xlu0 %v1795
        %v2399 = vpop.xlane.xlu0 %2398
        %2400 = vmax.xlane.f32.xlu0 %v1798
        %v2401 = vpop.xlane.xlu0 %2400
        %2402 = vmax.xlane.f32.xlu0 %v1803
        %v2403 = vpop.xlane.xlu0 %2402
        %2404 = vmax.xlane.f32.xlu0 %v1806
        %v2405 = vpop.xlane.xlu0 %2404
        %2406 = vmax.xlane.f32.xlu0 %v1811
        %v2407 = vpop.xlane.xlu0 %2406
        %2408 = vmax.xlane.f32.xlu0 %v1814
        %v2409 = vpop.xlane.xlu0 %2408
        %2410 = vmax.xlane.f32.xlu0 %v1819
        %v2411 = vpop.xlane.xlu0 %2410
        %2412 = vmax.xlane.f32.xlu0 %v1822
        %v2413 = vpop.xlane.xlu0 %2412
        %2414 = vmax.xlane.f32.xlu0 %v1827
        %v2415 = vpop.xlane.xlu0 %2414
        %2416 = vmax.xlane.f32.xlu0 %v1830
        %v2417 = vpop.xlane.xlu0 %2416
        %2418 = vmax.xlane.f32.xlu0 %v1835
        %v2419 = vpop.xlane.xlu0 %2418
        %2420 = vmax.xlane.f32.xlu0 %v1838
        %v2421 = vpop.xlane.xlu0 %2420
        %2422 = vmax.xlane.f32.xlu0 %v1843
        %v2423 = vpop.xlane.xlu0 %2422
        %2424 = vmax.xlane.f32.xlu0 %v1846
        %v2425 = vpop.xlane.xlu0 %2424
        %2426 = vmax.xlane.f32.xlu0 %v1851
        %v2427 = vpop.xlane.xlu0 %2426
        %2428 = vmax.xlane.f32.xlu0 %v1854
        %v2429 = vpop.xlane.xlu0 %2428
        %2430 = vmax.xlane.f32.xlu0 %v1859
        %v2431 = vpop.xlane.xlu0 %2430
        %2432 = vmax.xlane.f32.xlu0 %v1862
        %v2433 = vpop.xlane.xlu0 %2432
        %2434 = vmax.xlane.f32.xlu0 %v1867
        %v2435 = vpop.xlane.xlu0 %2434
        %2436 = vmax.xlane.f32.xlu0 %v1870
        %v2437 = vpop.xlane.xlu0 %2436
        %2438 = vmax.xlane.f32.xlu0 %v1875
        %v2439 = vpop.xlane.xlu0 %2438
        %2440 = vmax.xlane.f32.xlu0 %v1878
        %v2441 = vpop.xlane.xlu0 %2440
        %2442 = vmax.xlane.f32.xlu0 %v1883
        %v2443 = vpop.xlane.xlu0 %2442
        %2444 = vmax.xlane.f32.xlu0 %v1886
        %v2445 = vpop.xlane.xlu0 %2444
        %2446 = vmax.xlane.f32.xlu0 %v1891
        %v2447 = vpop.xlane.xlu0 %2446
        %2448 = vmax.xlane.f32.xlu0 %v1894
        %v2449 = vpop.xlane.xlu0 %2448
        %2450 = vmax.xlane.f32.xlu0 %v1899
        %v2451 = vpop.xlane.xlu0 %2450
        %2452 = vmax.xlane.f32.xlu0 %v1902
        %v2453 = vpop.xlane.xlu0 %2452
        %2454 = vmax.xlane.f32.xlu0 %v1907
        %v2455 = vpop.xlane.xlu0 %2454
        %2456 = vmax.xlane.f32.xlu0 %v1910
        %v2457 = vpop.xlane.xlu0 %2456
        %2458 = vmax.xlane.f32.xlu0 %v1915
        %v2459 = vpop.xlane.xlu0 %2458
        %2460 = vmax.xlane.f32.xlu0 %v1918
        %v2461 = vpop.xlane.xlu0 %2460
        %2462 = vmax.xlane.f32.xlu0 %v1923
        %v2463 = vpop.xlane.xlu0 %2462
        %2464 = vmax.xlane.f32.xlu0 %v1926
        %v2465 = vpop.xlane.xlu0 %2464
        %2466 = vmax.xlane.f32.xlu0 %v2084
        %v2467 = vpop.xlane.xlu0 %2466
        %2468 = vmax.xlane.f32.xlu0 %v2087
        %v2469 = vpop.xlane.xlu0 %2468
        %2470 = vmax.xlane.f32.xlu0 %v2092
        %v2471 = vpop.xlane.xlu0 %2470
        %2472 = vmax.xlane.f32.xlu0 %v2095
        %v2473 = vpop.xlane.xlu0 %2472
        %2474 = vmax.xlane.f32.xlu0 %v2100
        %v2475 = vpop.xlane.xlu0 %2474
        %2476 = vmax.xlane.f32.xlu0 %v2103
        %v2477 = vpop.xlane.xlu0 %2476
        %2478 = vmax.xlane.f32.xlu0 %v2108
        %v2479 = vpop.xlane.xlu0 %2478
        %2480 = vmax.xlane.f32.xlu0 %v2111
        %v2481 = vpop.xlane.xlu0 %2480
        %2482 = vmax.xlane.f32.xlu0 %v2116
        %v2483 = vpop.xlane.xlu0 %2482
        %2484 = vmax.xlane.f32.xlu0 %v2119
        %v2485 = vpop.xlane.xlu0 %2484
        %2486 = vmax.xlane.f32.xlu0 %v2124
        %v2487 = vpop.xlane.xlu0 %2486
        %2488 = vmax.xlane.f32.xlu0 %v2127
        %v2489 = vpop.xlane.xlu0 %2488
        %2490 = vmax.xlane.f32.xlu0 %v2132
        %v2491 = vpop.xlane.xlu0 %2490
        %2492 = vmax.xlane.f32.xlu0 %v2135
        %v2493 = vpop.xlane.xlu0 %2492
        %2494 = vmax.xlane.f32.xlu0 %v2140
        %v2495 = vpop.xlane.xlu0 %2494
        %2496 = vmax.xlane.f32.xlu0 %v2143
        %v2497 = vpop.xlane.xlu0 %2496
        %2498 = vmax.xlane.f32.xlu0 %v2148
        %v2499 = vpop.xlane.xlu0 %2498
        %2500 = vmax.xlane.f32.xlu0 %v2151
        %v2501 = vpop.xlane.xlu0 %2500
        %2502 = vmax.xlane.f32.xlu0 %v2156
        %v2503 = vpop.xlane.xlu0 %2502
        %2504 = vmax.xlane.f32.xlu0 %v2159
        %v2505 = vpop.xlane.xlu0 %2504
        %2506 = vmax.xlane.f32.xlu0 %v2164
        %v2507 = vpop.xlane.xlu0 %2506
        %2508 = vmax.xlane.f32.xlu0 %v2167
        %v2509 = vpop.xlane.xlu0 %2508
        %2510 = vmax.xlane.f32.xlu0 %v2172
        %v2511 = vpop.xlane.xlu0 %2510
        %2512 = vmax.xlane.f32.xlu0 %v2175
        %v2513 = vpop.xlane.xlu0 %2512
        %2514 = vmax.xlane.f32.xlu0 %v2180
        %v2515 = vpop.xlane.xlu0 %2514
        %2516 = vmax.xlane.f32.xlu0 %v2183
        %v2517 = vpop.xlane.xlu0 %2516
        %2518 = vmax.xlane.f32.xlu0 %v2188
        %v2519 = vpop.xlane.xlu0 %2518
        %2520 = vmax.xlane.f32.xlu0 %v2191
        %v2521 = vpop.xlane.xlu0 %2520
        %2522 = vmax.xlane.f32.xlu0 %v2196
        %v2523 = vpop.xlane.xlu0 %2522
        %2524 = vmax.xlane.f32.xlu0 %v2199
        %v2525 = vpop.xlane.xlu0 %2524
        %2526 = vmax.xlane.f32.xlu0 %v2204
        %v2527 = vpop.xlane.xlu0 %2526
        %2528 = vmax.xlane.f32.xlu0 %v2207
        %v2529 = vpop.xlane.xlu0 %2528
        %2530 = vmax.xlane.f32.xlu0 %v2212
        %v2531 = vpop.xlane.xlu0 %2530
        %2532 = vmax.xlane.f32.xlu0 %v2215
        %v2533 = vpop.xlane.xlu0 %2532
        %2534 = vmax.xlane.f32.xlu0 %v2220
        %v2535 = vpop.xlane.xlu0 %2534
        %2536 = vmax.xlane.f32.xlu0 %v2223
        %v2537 = vpop.xlane.xlu0 %2536
        %2538 = vmax.xlane.f32.xlu0 %v2228
        %v2539 = vpop.xlane.xlu0 %2538
        %2540 = vmax.xlane.f32.xlu0 %v2231
        %v2541 = vpop.xlane.xlu0 %2540
        %2542 = vmax.xlane.f32.xlu0 %v2236
        %v2543 = vpop.xlane.xlu0 %2542
        %2544 = vmax.xlane.f32.xlu0 %v2239
        %v2545 = vpop.xlane.xlu0 %2544
        %2546 = vmax.xlane.f32.xlu0 %v2244
        %v2547 = vpop.xlane.xlu0 %2546
        %2548 = vmax.xlane.f32.xlu0 %v2247
        %v2549 = vpop.xlane.xlu0 %2548
        %2550 = vmax.xlane.f32.xlu0 %v2252
        %v2551 = vpop.xlane.xlu0 %2550
        %2552 = vmax.xlane.f32.xlu0 %v2255
        %v2553 = vpop.xlane.xlu0 %2552
        %2554 = vmax.xlane.f32.xlu0 %v2260
        %v2555 = vpop.xlane.xlu0 %2554
        %2556 = vmax.xlane.f32.xlu0 %v2263
        %v2557 = vpop.xlane.xlu0 %2556
        %2558 = vmax.xlane.f32.xlu0 %v2268
        %v2559 = vpop.xlane.xlu0 %2558
        %2560 = vmax.xlane.f32.xlu0 %v2271
        %v2561 = vpop.xlane.xlu0 %2560
        %2562 = vmax.xlane.f32.xlu0 %v2276
        %v2563 = vpop.xlane.xlu0 %2562
        %2564 = vmax.xlane.f32.xlu0 %v2279
        %v2565 = vpop.xlane.xlu0 %2564
        %2566 = vmax.xlane.f32.xlu0 %v2284
        %v2567 = vpop.xlane.xlu0 %2566
        %2568 = vmax.xlane.f32.xlu0 %v2287
        %v2569 = vpop.xlane.xlu0 %2568
        %2570 = vmax.xlane.f32.xlu0 %v2292
        %v2571 = vpop.xlane.xlu0 %2570
        %2572 = vmax.xlane.f32.xlu0 %v2295
        %v2573 = vpop.xlane.xlu0 %2572
        %2574 = vmax.xlane.f32.xlu0 %v2300
        %v2575 = vpop.xlane.xlu0 %2574
        %2576 = vmax.xlane.f32.xlu0 %v2303
        %v2577 = vpop.xlane.xlu0 %2576
        %2578 = vmax.xlane.f32.xlu0 %v2308
        %v2579 = vpop.xlane.xlu0 %2578
        %2580 = vmax.xlane.f32.xlu0 %v2311
        %v2581 = vpop.xlane.xlu0 %2580
        %2582 = vmax.xlane.f32.xlu0 %v2316
        %v2583 = vpop.xlane.xlu0 %2582
        %2584 = vmax.xlane.f32.xlu0 %v2319
        %v2585 = vpop.xlane.xlu0 %2584
        %2586 = vmax.xlane.f32.xlu0 %v2324
        %v2587 = vpop.xlane.xlu0 %2586
        %2588 = vmax.xlane.f32.xlu0 %v2327
        %v2589 = vpop.xlane.xlu0 %2588
        %2590 = vmax.xlane.f32.xlu0 %v2332
        %v2591 = vpop.xlane.xlu0 %2590
        %2592 = vmax.xlane.f32.xlu0 %v2335
        %v2593 = vpop.xlane.xlu0 %2592
        %v2594 = vsub.f32 %v1675, %v2339
        %v2595 = vsub.f32 %v1678, %v2341
        %v2596 = vsub.f32 %v1683, %v2343
        %v2597 = vsub.f32 %v1686, %v2345
        %v2598 = vsub.f32 %v1691, %v2347
        %v2599 = vsub.f32 %v1694, %v2349
        %v2600 = vsub.f32 %v1699, %v2351
        %v2601 = vsub.f32 %v1702, %v2353
        %v2602 = vsub.f32 %v1707, %v2355
        %v2603 = vsub.f32 %v1710, %v2357
        %v2604 = vsub.f32 %v1715, %v2359
        %v2605 = vsub.f32 %v1718, %v2361
        %v2606 = vsub.f32 %v1723, %v2363
        %v2607 = vsub.f32 %v1726, %v2365
        %v2608 = vsub.f32 %v1731, %v2367
        %v2609 = vsub.f32 %v1734, %v2369
        %v2610 = vsub.f32 %v1739, %v2371
        %v2611 = vsub.f32 %v1742, %v2373
        %v2612 = vsub.f32 %v1747, %v2375
        %v2613 = vsub.f32 %v1750, %v2377
        %v2614 = vsub.f32 %v1755, %v2379
        %v2615 = vsub.f32 %v1758, %v2381
        %v2616 = vsub.f32 %v1763, %v2383
        %v2617 = vsub.f32 %v1766, %v2385
        %v2618 = vsub.f32 %v1771, %v2387
        %v2619 = vsub.f32 %v1774, %v2389
        %v2620 = vsub.f32 %v1779, %v2391
        %v2621 = vsub.f32 %v1782, %v2393
        %v2622 = vsub.f32 %v1787, %v2395
        %v2623 = vsub.f32 %v1790, %v2397
        %v2624 = vsub.f32 %v1795, %v2399
        %v2625 = vsub.f32 %v1798, %v2401
        %v2626 = vsub.f32 %v1803, %v2403
        %v2627 = vsub.f32 %v1806, %v2405
        %v2628 = vsub.f32 %v1811, %v2407
        %v2629 = vsub.f32 %v1814, %v2409
        %v2630 = vsub.f32 %v1819, %v2411
        %v2631 = vsub.f32 %v1822, %v2413
        %v2632 = vsub.f32 %v1827, %v2415
        %v2633 = vsub.f32 %v1830, %v2417
        %v2634 = vsub.f32 %v1835, %v2419
        %v2635 = vsub.f32 %v1838, %v2421
        %v2636 = vsub.f32 %v1843, %v2423
        %v2637 = vsub.f32 %v1846, %v2425
        %v2638 = vsub.f32 %v1851, %v2427
        %v2639 = vsub.f32 %v1854, %v2429
        %v2640 = vsub.f32 %v1859, %v2431
        %v2641 = vsub.f32 %v1862, %v2433
        %v2642 = vsub.f32 %v1867, %v2435
        %v2643 = vsub.f32 %v1870, %v2437
        %v2644 = vsub.f32 %v1875, %v2439
        %v2645 = vsub.f32 %v1878, %v2441
        %v2646 = vsub.f32 %v1883, %v2443
        %v2647 = vsub.f32 %v1886, %v2445
        %v2648 = vsub.f32 %v1891, %v2447
        %v2649 = vsub.f32 %v1894, %v2449
        %v2650 = vsub.f32 %v1899, %v2451
        %v2651 = vsub.f32 %v1902, %v2453
        %v2652 = vsub.f32 %v1907, %v2455
        %v2653 = vsub.f32 %v1910, %v2457
        %v2654 = vsub.f32 %v1915, %v2459
        %v2655 = vsub.f32 %v1918, %v2461
        %v2656 = vsub.f32 %v1923, %v2463
        %v2657 = vsub.f32 %v1926, %v2465
        %v2658 = vsub.f32 %v2084, %v2467
        %v2659 = vsub.f32 %v2087, %v2469
        %v2660 = vsub.f32 %v2092, %v2471
        %v2661 = vsub.f32 %v2095, %v2473
        %v2662 = vsub.f32 %v2100, %v2475
        %v2663 = vsub.f32 %v2103, %v2477
        %v2664 = vsub.f32 %v2108, %v2479
        %v2665 = vsub.f32 %v2111, %v2481
        %v2666 = vsub.f32 %v2116, %v2483
        %v2667 = vsub.f32 %v2119, %v2485
        %v2668 = vsub.f32 %v2124, %v2487
        %v2669 = vsub.f32 %v2127, %v2489
        %v2670 = vsub.f32 %v2132, %v2491
        %v2671 = vsub.f32 %v2135, %v2493
        %v2672 = vsub.f32 %v2140, %v2495
        %v2673 = vsub.f32 %v2143, %v2497
        %v2674 = vsub.f32 %v2148, %v2499
        %v2675 = vsub.f32 %v2151, %v2501
        %v2676 = vsub.f32 %v2156, %v2503
        %v2677 = vsub.f32 %v2159, %v2505
        %v2678 = vsub.f32 %v2164, %v2507
        %v2679 = vsub.f32 %v2167, %v2509
        %v2680 = vsub.f32 %v2172, %v2511
        %v2681 = vsub.f32 %v2175, %v2513
        %v2682 = vsub.f32 %v2180, %v2515
        %v2683 = vsub.f32 %v2183, %v2517
        %v2684 = vsub.f32 %v2188, %v2519
        %v2685 = vsub.f32 %v2191, %v2521
        %v2686 = vsub.f32 %v2196, %v2523
        %v2687 = vsub.f32 %v2199, %v2525
        %v2688 = vsub.f32 %v2204, %v2527
        %v2689 = vsub.f32 %v2207, %v2529
        %v2690 = vsub.f32 %v2212, %v2531
        %v2691 = vsub.f32 %v2215, %v2533
        %v2692 = vsub.f32 %v2220, %v2535
        %v2693 = vsub.f32 %v2223, %v2537
        %v2694 = vsub.f32 %v2228, %v2539
        %v2695 = vsub.f32 %v2231, %v2541
        %v2696 = vsub.f32 %v2236, %v2543
        %v2697 = vsub.f32 %v2239, %v2545
        %v2698 = vsub.f32 %v2244, %v2547
        %v2699 = vsub.f32 %v2247, %v2549
        %v2700 = vsub.f32 %v2252, %v2551
        %v2701 = vsub.f32 %v2255, %v2553
        %v2702 = vsub.f32 %v2260, %v2555
        %v2703 = vsub.f32 %v2263, %v2557
        %v2704 = vsub.f32 %v2268, %v2559
        %v2705 = vsub.f32 %v2271, %v2561
        %v2706 = vsub.f32 %v2276, %v2563
        %v2707 = vsub.f32 %v2279, %v2565
        %v2708 = vsub.f32 %v2284, %v2567
        %v2709 = vsub.f32 %v2287, %v2569
        %v2710 = vsub.f32 %v2292, %v2571
        %v2711 = vsub.f32 %v2295, %v2573
        %v2712 = vsub.f32 %v2300, %v2575
        %v2713 = vsub.f32 %v2303, %v2577
        %v2714 = vsub.f32 %v2308, %v2579
        %v2715 = vsub.f32 %v2311, %v2581
        %v2716 = vsub.f32 %v2316, %v2583
        %v2717 = vsub.f32 %v2319, %v2585
        %v2718 = vsub.f32 %v2324, %v2587
        %v2719 = vsub.f32 %v2327, %v2589
        %v2720 = vsub.f32 %v2332, %v2591
        %v2721 = vsub.f32 %v2335, %v2593
        %v2722 = vmul.f32 %v2594, 1.442695
        %v2723 = vpow.pop %v2722
        %v2724 = vmul.f32 %v2595, 1.442695
        %v2725 = vpow.pop %v2724
        %v2726 = vmul.f32 %v2596, 1.442695
        %v2727 = vpow.pop %v2726
        %v2728 = vmul.f32 %v2597, 1.442695
        %v2729 = vpow.pop %v2728
        %v2730 = vmul.f32 %v2598, 1.442695
        %v2731 = vpow.pop %v2730
        %v2732 = vmul.f32 %v2599, 1.442695
        %v2733 = vpow.pop %v2732
        %v2734 = vmul.f32 %v2600, 1.442695
        %v2735 = vpow.pop %v2734
        %v2736 = vmul.f32 %v2601, 1.442695
        %v2737 = vpow.pop %v2736
        %v2738 = vmul.f32 %v2602, 1.442695
        %v2739 = vpow.pop %v2738
        %v2740 = vmul.f32 %v2603, 1.442695
        %v2741 = vpow.pop %v2740
        %v2742 = vmul.f32 %v2604, 1.442695
        %v2743 = vpow.pop %v2742
        %v2744 = vmul.f32 %v2605, 1.442695
        %v2745 = vpow.pop %v2744
        %v2746 = vmul.f32 %v2606, 1.442695
        %v2747 = vpow.pop %v2746
        %v2748 = vmul.f32 %v2607, 1.442695
        %v2749 = vpow.pop %v2748
        %v2750 = vmul.f32 %v2608, 1.442695
        %v2751 = vpow.pop %v2750
        %v2752 = vmul.f32 %v2609, 1.442695
        %v2753 = vpow.pop %v2752
        %v2754 = vmul.f32 %v2610, 1.442695
        %v2755 = vpow.pop %v2754
        %v2756 = vmul.f32 %v2611, 1.442695
        %v2757 = vpow.pop %v2756
        %v2758 = vmul.f32 %v2612, 1.442695
        %v2759 = vpow.pop %v2758
        %v2760 = vmul.f32 %v2613, 1.442695
        %v2761 = vpow.pop %v2760
        %v2762 = vmul.f32 %v2614, 1.442695
        %v2763 = vpow.pop %v2762
        %v2764 = vmul.f32 %v2615, 1.442695
        %v2765 = vpow.pop %v2764
        %v2766 = vmul.f32 %v2616, 1.442695
        %v2767 = vpow.pop %v2766
        %v2768 = vmul.f32 %v2617, 1.442695
        %v2769 = vpow.pop %v2768
        %v2770 = vmul.f32 %v2618, 1.442695
        %v2771 = vpow.pop %v2770
        %v2772 = vmul.f32 %v2619, 1.442695
        %v2773 = vpow.pop %v2772
        %v2774 = vmul.f32 %v2620, 1.442695
        %v2775 = vpow.pop %v2774
        %v2776 = vmul.f32 %v2621, 1.442695
        %v2777 = vpow.pop %v2776
        %v2778 = vmul.f32 %v2622, 1.442695
        %v2779 = vpow.pop %v2778
        %v2780 = vmul.f32 %v2623, 1.442695
        %v2781 = vpow.pop %v2780
        %v2782 = vmul.f32 %v2624, 1.442695
        %v2783 = vpow.pop %v2782
        %v2784 = vmul.f32 %v2625, 1.442695
        %v2785 = vpow.pop %v2784
        %v2786 = vmul.f32 %v2626, 1.442695
        %v2787 = vpow.pop %v2786
        %v2788 = vmul.f32 %v2627, 1.442695
        %v2789 = vpow.pop %v2788
        %v2790 = vmul.f32 %v2628, 1.442695
        %v2791 = vpow.pop %v2790
        %v2792 = vmul.f32 %v2629, 1.442695
        %v2793 = vpow.pop %v2792
        %v2794 = vmul.f32 %v2630, 1.442695
        %v2795 = vpow.pop %v2794
        %v2796 = vmul.f32 %v2631, 1.442695
        %v2797 = vpow.pop %v2796
        %v2798 = vmul.f32 %v2632, 1.442695
        %v2799 = vpow.pop %v2798
        %v2800 = vmul.f32 %v2633, 1.442695
        %v2801 = vpow.pop %v2800
        %v2802 = vmul.f32 %v2634, 1.442695
        %v2803 = vpow.pop %v2802
        %v2804 = vmul.f32 %v2635, 1.442695
        %v2805 = vpow.pop %v2804
        %v2806 = vmul.f32 %v2636, 1.442695
        %v2807 = vpow.pop %v2806
        %v2808 = vmul.f32 %v2637, 1.442695
        %v2809 = vpow.pop %v2808
        %v2810 = vmul.f32 %v2638, 1.442695
        %v2811 = vpow.pop %v2810
        %v2812 = vmul.f32 %v2639, 1.442695
        %v2813 = vpow.pop %v2812
        %v2814 = vmul.f32 %v2640, 1.442695
        %v2815 = vpow.pop %v2814
        %v2816 = vmul.f32 %v2641, 1.442695
        %v2817 = vpow.pop %v2816
        %v2818 = vmul.f32 %v2642, 1.442695
        %v2819 = vpow.pop %v2818
        %v2820 = vmul.f32 %v2643, 1.442695
        %v2821 = vpow.pop %v2820
        %v2822 = vmul.f32 %v2644, 1.442695
        %v2823 = vpow.pop %v2822
        %v2824 = vmul.f32 %v2645, 1.442695
        %v2825 = vpow.pop %v2824
        %v2826 = vmul.f32 %v2646, 1.442695
        %v2827 = vpow.pop %v2826
        %v2828 = vmul.f32 %v2647, 1.442695
        %v2829 = vpow.pop %v2828
        %v2830 = vmul.f32 %v2648, 1.442695
        %v2831 = vpow.pop %v2830
        %v2832 = vmul.f32 %v2649, 1.442695
        %v2833 = vpow.pop %v2832
        %v2834 = vmul.f32 %v2650, 1.442695
        %v2835 = vpow.pop %v2834
        %v2836 = vmul.f32 %v2651, 1.442695
        %v2837 = vpow.pop %v2836
        %v2838 = vmul.f32 %v2652, 1.442695
        %v2839 = vpow.pop %v2838
        %v2840 = vmul.f32 %v2653, 1.442695
        %v2841 = vpow.pop %v2840
        %v2842 = vmul.f32 %v2654, 1.442695
        %v2843 = vpow.pop %v2842
        %v2844 = vmul.f32 %v2655, 1.442695
        %v2845 = vpow.pop %v2844
        %v2846 = vmul.f32 %v2656, 1.442695
        %v2847 = vpow.pop %v2846
        %v2848 = vmul.f32 %v2657, 1.442695
        %v2849 = vpow.pop %v2848
        %v2850 = vmul.f32 %v2658, 1.442695
        %v2851 = vpow.pop %v2850
        %v2852 = vmul.f32 %v2659, 1.442695
        %v2853 = vpow.pop %v2852
        %v2854 = vmul.f32 %v2660, 1.442695
        %v2855 = vpow.pop %v2854
        %v2856 = vmul.f32 %v2661, 1.442695
        %v2857 = vpow.pop %v2856
        %v2858 = vmul.f32 %v2662, 1.442695
        %v2859 = vpow.pop %v2858
        %v2860 = vmul.f32 %v2663, 1.442695
        %v2861 = vpow.pop %v2860
        %v2862 = vmul.f32 %v2664, 1.442695
        %v2863 = vpow.pop %v2862
        %v2864 = vmul.f32 %v2665, 1.442695
        %v2865 = vpow.pop %v2864
        %v2866 = vmul.f32 %v2666, 1.442695
        %v2867 = vpow.pop %v2866
        %v2868 = vmul.f32 %v2667, 1.442695
        %v2869 = vpow.pop %v2868
        %v2870 = vmul.f32 %v2668, 1.442695
        %v2871 = vpow.pop %v2870
        %v2872 = vmul.f32 %v2669, 1.442695
        %v2873 = vpow.pop %v2872
        %v2874 = vmul.f32 %v2670, 1.442695
        %v2875 = vpow.pop %v2874
        %v2876 = vmul.f32 %v2671, 1.442695
        %v2877 = vpow.pop %v2876
        %v2878 = vmul.f32 %v2672, 1.442695
        %v2879 = vpow.pop %v2878
        %v2880 = vmul.f32 %v2673, 1.442695
        %v2881 = vpow.pop %v2880
        %v2882 = vmul.f32 %v2674, 1.442695
        %v2883 = vpow.pop %v2882
        %v2884 = vmul.f32 %v2675, 1.442695
        %v2885 = vpow.pop %v2884
        %v2886 = vmul.f32 %v2676, 1.442695
        %v2887 = vpow.pop %v2886
        %v2888 = vmul.f32 %v2677, 1.442695
        %v2889 = vpow.pop %v2888
        %v2890 = vmul.f32 %v2678, 1.442695
        %v2891 = vpow.pop %v2890
        %v2892 = vmul.f32 %v2679, 1.442695
        %v2893 = vpow.pop %v2892
        %v2894 = vmul.f32 %v2680, 1.442695
        %v2895 = vpow.pop %v2894
        %v2896 = vmul.f32 %v2681, 1.442695
        %v2897 = vpow.pop %v2896
        %v2898 = vmul.f32 %v2682, 1.442695
        %v2899 = vpow.pop %v2898
        %v2900 = vmul.f32 %v2683, 1.442695
        %v2901 = vpow.pop %v2900
        %v2902 = vmul.f32 %v2684, 1.442695
        %v2903 = vpow.pop %v2902
        %v2904 = vmul.f32 %v2685, 1.442695
        %v2905 = vpow.pop %v2904
        %v2906 = vmul.f32 %v2686, 1.442695
        %v2907 = vpow.pop %v2906
        %v2908 = vmul.f32 %v2687, 1.442695
        %v2909 = vpow.pop %v2908
        %v2910 = vmul.f32 %v2688, 1.442695
        %v2911 = vpow.pop %v2910
        %v2912 = vmul.f32 %v2689, 1.442695
        %v2913 = vpow.pop %v2912
        %v2914 = vmul.f32 %v2690, 1.442695
        %v2915 = vpow.pop %v2914
        %v2916 = vmul.f32 %v2691, 1.442695
        %v2917 = vpow.pop %v2916
        %v2918 = vmul.f32 %v2692, 1.442695
        %v2919 = vpow.pop %v2918
        %v2920 = vmul.f32 %v2693, 1.442695
        %v2921 = vpow.pop %v2920
        %v2922 = vmul.f32 %v2694, 1.442695
        %v2923 = vpow.pop %v2922
        %v2924 = vmul.f32 %v2695, 1.442695
        %v2925 = vpow.pop %v2924
        %v2926 = vmul.f32 %v2696, 1.442695
        %v2927 = vpow.pop %v2926
        %v2928 = vmul.f32 %v2697, 1.442695
        %v2929 = vpow.pop %v2928
        %v2930 = vmul.f32 %v2698, 1.442695
        %v2931 = vpow.pop %v2930
        %v2932 = vmul.f32 %v2699, 1.442695
        %v2933 = vpow.pop %v2932
        %v2934 = vmul.f32 %v2700, 1.442695
        %v2935 = vpow.pop %v2934
        %v2936 = vmul.f32 %v2701, 1.442695
        %v2937 = vpow.pop %v2936
        %v2938 = vmul.f32 %v2702, 1.442695
        %v2939 = vpow.pop %v2938
        %v2940 = vmul.f32 %v2703, 1.442695
        %v2941 = vpow.pop %v2940
        %v2942 = vmul.f32 %v2704, 1.442695
        %v2943 = vpow.pop %v2942
        %v2944 = vmul.f32 %v2705, 1.442695
        %v2945 = vpow.pop %v2944
        %v2946 = vmul.f32 %v2706, 1.442695
        %v2947 = vpow.pop %v2946
        %v2948 = vmul.f32 %v2707, 1.442695
        %v2949 = vpow.pop %v2948
        %v2950 = vmul.f32 %v2708, 1.442695
        %v2951 = vpow.pop %v2950
        %v2952 = vmul.f32 %v2709, 1.442695
        %v2953 = vpow.pop %v2952
        %v2954 = vmul.f32 %v2710, 1.442695
        %v2955 = vpow.pop %v2954
        %v2956 = vmul.f32 %v2711, 1.442695
        %v2957 = vpow.pop %v2956
        %v2958 = vmul.f32 %v2712, 1.442695
        %v2959 = vpow.pop %v2958
        %v2960 = vmul.f32 %v2713, 1.442695
        %v2961 = vpow.pop %v2960
        %v2962 = vmul.f32 %v2714, 1.442695
        %v2963 = vpow.pop %v2962
        %v2964 = vmul.f32 %v2715, 1.442695
        %v2965 = vpow.pop %v2964
        %v2966 = vmul.f32 %v2716, 1.442695
        %v2967 = vpow.pop %v2966
        %v2968 = vmul.f32 %v2717, 1.442695
        %v2969 = vpow.pop %v2968
        %v2970 = vmul.f32 %v2718, 1.442695
        %v2971 = vpow.pop %v2970
        %v2972 = vmul.f32 %v2719, 1.442695
        %v2973 = vpow.pop %v2972
        %v2974 = vmul.f32 %v2720, 1.442695
        %v2975 = vpow.pop %v2974
        %v2976 = vmul.f32 %v2721, 1.442695
        %v2977 = vpow.pop %v2976
        %2978 = vadd.xlane.f32.xlu0 %v2723
        %v2979 = vpop.xlane.xlu0 %2978
        %2980 = vadd.xlane.f32.xlu0 %v2725
        %v2981 = vpop.xlane.xlu0 %2980
        %2982 = vadd.xlane.f32.xlu0 %v2727
        %v2983 = vpop.xlane.xlu0 %2982
        %2984 = vadd.xlane.f32.xlu0 %v2729
        %v2985 = vpop.xlane.xlu0 %2984
        %2986 = vadd.xlane.f32.xlu0 %v2731
        %v2987 = vpop.xlane.xlu0 %2986
        %2988 = vadd.xlane.f32.xlu0 %v2733
        %v2989 = vpop.xlane.xlu0 %2988
        %2990 = vadd.xlane.f32.xlu0 %v2735
        %v2991 = vpop.xlane.xlu0 %2990
        %2992 = vadd.xlane.f32.xlu0 %v2737
        %v2993 = vpop.xlane.xlu0 %2992
        %2994 = vadd.xlane.f32.xlu0 %v2739
        %v2995 = vpop.xlane.xlu0 %2994
        %2996 = vadd.xlane.f32.xlu0 %v2741
        %v2997 = vpop.xlane.xlu0 %2996
        %2998 = vadd.xlane.f32.xlu0 %v2743
        %v2999 = vpop.xlane.xlu0 %2998
        %3000 = vadd.xlane.f32.xlu0 %v2745
        %v3001 = vpop.xlane.xlu0 %3000
        %3002 = vadd.xlane.f32.xlu0 %v2747
        %v3003 = vpop.xlane.xlu0 %3002
        %3004 = vadd.xlane.f32.xlu0 %v2749
        %v3005 = vpop.xlane.xlu0 %3004
        %3006 = vadd.xlane.f32.xlu0 %v2751
        %v3007 = vpop.xlane.xlu0 %3006
        %3008 = vadd.xlane.f32.xlu0 %v2753
        %v3009 = vpop.xlane.xlu0 %3008
        %3010 = vadd.xlane.f32.xlu0 %v2755
        %v3011 = vpop.xlane.xlu0 %3010
        %3012 = vadd.xlane.f32.xlu0 %v2757
        %v3013 = vpop.xlane.xlu0 %3012
        %3014 = vadd.xlane.f32.xlu0 %v2759
        %v3015 = vpop.xlane.xlu0 %3014
        %3016 = vadd.xlane.f32.xlu0 %v2761
        %v3017 = vpop.xlane.xlu0 %3016
        %3018 = vadd.xlane.f32.xlu0 %v2763
        %v3019 = vpop.xlane.xlu0 %3018
        %3020 = vadd.xlane.f32.xlu0 %v2765
        %v3021 = vpop.xlane.xlu0 %3020
        %3022 = vadd.xlane.f32.xlu0 %v2767
        %v3023 = vpop.xlane.xlu0 %3022
        %3024 = vadd.xlane.f32.xlu0 %v2769
        %v3025 = vpop.xlane.xlu0 %3024
        %3026 = vadd.xlane.f32.xlu0 %v2771
        %v3027 = vpop.xlane.xlu0 %3026
        %3028 = vadd.xlane.f32.xlu0 %v2773
        %v3029 = vpop.xlane.xlu0 %3028
        %3030 = vadd.xlane.f32.xlu0 %v2775
        %v3031 = vpop.xlane.xlu0 %3030
        %3032 = vadd.xlane.f32.xlu0 %v2777
        %v3033 = vpop.xlane.xlu0 %3032
        %3034 = vadd.xlane.f32.xlu0 %v2779
        %v3035 = vpop.xlane.xlu0 %3034
        %3036 = vadd.xlane.f32.xlu0 %v2781
        %v3037 = vpop.xlane.xlu0 %3036
        %3038 = vadd.xlane.f32.xlu0 %v2783
        %v3039 = vpop.xlane.xlu0 %3038
        %3040 = vadd.xlane.f32.xlu0 %v2785
        %v3041 = vpop.xlane.xlu0 %3040
        %3042 = vadd.xlane.f32.xlu0 %v2787
        %v3043 = vpop.xlane.xlu0 %3042
        %3044 = vadd.xlane.f32.xlu0 %v2789
        %v3045 = vpop.xlane.xlu0 %3044
        %3046 = vadd.xlane.f32.xlu0 %v2791
        %v3047 = vpop.xlane.xlu0 %3046
        %3048 = vadd.xlane.f32.xlu0 %v2793
        %v3049 = vpop.xlane.xlu0 %3048
        %3050 = vadd.xlane.f32.xlu0 %v2795
        %v3051 = vpop.xlane.xlu0 %3050
        %3052 = vadd.xlane.f32.xlu0 %v2797
        %v3053 = vpop.xlane.xlu0 %3052
        %3054 = vadd.xlane.f32.xlu0 %v2799
        %v3055 = vpop.xlane.xlu0 %3054
        %3056 = vadd.xlane.f32.xlu0 %v2801
        %v3057 = vpop.xlane.xlu0 %3056
        %3058 = vadd.xlane.f32.xlu0 %v2803
        %v3059 = vpop.xlane.xlu0 %3058
        %3060 = vadd.xlane.f32.xlu0 %v2805
        %v3061 = vpop.xlane.xlu0 %3060
        %3062 = vadd.xlane.f32.xlu0 %v2807
        %v3063 = vpop.xlane.xlu0 %3062
        %3064 = vadd.xlane.f32.xlu0 %v2809
        %v3065 = vpop.xlane.xlu0 %3064
        %3066 = vadd.xlane.f32.xlu0 %v2811
        %v3067 = vpop.xlane.xlu0 %3066
        %3068 = vadd.xlane.f32.xlu0 %v2813
        %v3069 = vpop.xlane.xlu0 %3068
        %3070 = vadd.xlane.f32.xlu0 %v2815
        %v3071 = vpop.xlane.xlu0 %3070
        %3072 = vadd.xlane.f32.xlu0 %v2817
        %v3073 = vpop.xlane.xlu0 %3072
        %3074 = vadd.xlane.f32.xlu0 %v2819
        %v3075 = vpop.xlane.xlu0 %3074
        %3076 = vadd.xlane.f32.xlu0 %v2821
        %v3077 = vpop.xlane.xlu0 %3076
        %3078 = vadd.xlane.f32.xlu0 %v2823
        %v3079 = vpop.xlane.xlu0 %3078
        %3080 = vadd.xlane.f32.xlu0 %v2825
        %v3081 = vpop.xlane.xlu0 %3080
        %3082 = vadd.xlane.f32.xlu0 %v2827
        %v3083 = vpop.xlane.xlu0 %3082
        %3084 = vadd.xlane.f32.xlu0 %v2829
        %v3085 = vpop.xlane.xlu0 %3084
        %3086 = vadd.xlane.f32.xlu0 %v2831
        %v3087 = vpop.xlane.xlu0 %3086
        %3088 = vadd.xlane.f32.xlu0 %v2833
        %v3089 = vpop.xlane.xlu0 %3088
        %3090 = vadd.xlane.f32.xlu0 %v2835
        %v3091 = vpop.xlane.xlu0 %3090
        %3092 = vadd.xlane.f32.xlu0 %v2837
        %v3093 = vpop.xlane.xlu0 %3092
        %3094 = vadd.xlane.f32.xlu0 %v2839
        %v3095 = vpop.xlane.xlu0 %3094
        %3096 = vadd.xlane.f32.xlu0 %v2841
        %v3097 = vpop.xlane.xlu0 %3096
        %3098 = vadd.xlane.f32.xlu0 %v2843
        %v3099 = vpop.xlane.xlu0 %3098
        %3100 = vadd.xlane.f32.xlu0 %v2845
        %v3101 = vpop.xlane.xlu0 %3100
        %3102 = vadd.xlane.f32.xlu0 %v2847
        %v3103 = vpop.xlane.xlu0 %3102
        %3104 = vadd.xlane.f32.xlu0 %v2849
        %v3105 = vpop.xlane.xlu0 %3104
        %3106 = vadd.xlane.f32.xlu0 %v2851
        %v3107 = vpop.xlane.xlu0 %3106
        %3108 = vadd.xlane.f32.xlu0 %v2853
        %v3109 = vpop.xlane.xlu0 %3108
        %3110 = vadd.xlane.f32.xlu0 %v2855
        %v3111 = vpop.xlane.xlu0 %3110
        %3112 = vadd.xlane.f32.xlu0 %v2857
        %v3113 = vpop.xlane.xlu0 %3112
        %3114 = vadd.xlane.f32.xlu0 %v2859
        %v3115 = vpop.xlane.xlu0 %3114
        %3116 = vadd.xlane.f32.xlu0 %v2861
        %v3117 = vpop.xlane.xlu0 %3116
        %3118 = vadd.xlane.f32.xlu0 %v2863
        %v3119 = vpop.xlane.xlu0 %3118
        %3120 = vadd.xlane.f32.xlu0 %v2865
        %v3121 = vpop.xlane.xlu0 %3120
        %3122 = vadd.xlane.f32.xlu0 %v2867
        %v3123 = vpop.xlane.xlu0 %3122
        %3124 = vadd.xlane.f32.xlu0 %v2869
        %v3125 = vpop.xlane.xlu0 %3124
        %3126 = vadd.xlane.f32.xlu0 %v2871
        %v3127 = vpop.xlane.xlu0 %3126
        %3128 = vadd.xlane.f32.xlu0 %v2873
        %v3129 = vpop.xlane.xlu0 %3128
        %3130 = vadd.xlane.f32.xlu0 %v2875
        %v3131 = vpop.xlane.xlu0 %3130
        %3132 = vadd.xlane.f32.xlu0 %v2877
        %v3133 = vpop.xlane.xlu0 %3132
        %3134 = vadd.xlane.f32.xlu0 %v2879
        %v3135 = vpop.xlane.xlu0 %3134
        %3136 = vadd.xlane.f32.xlu0 %v2881
        %v3137 = vpop.xlane.xlu0 %3136
        %3138 = vadd.xlane.f32.xlu0 %v2883
        %v3139 = vpop.xlane.xlu0 %3138
        %3140 = vadd.xlane.f32.xlu0 %v2885
        %v3141 = vpop.xlane.xlu0 %3140
        %3142 = vadd.xlane.f32.xlu0 %v2887
        %v3143 = vpop.xlane.xlu0 %3142
        %3144 = vadd.xlane.f32.xlu0 %v2889
        %v3145 = vpop.xlane.xlu0 %3144
        %3146 = vadd.xlane.f32.xlu0 %v2891
        %v3147 = vpop.xlane.xlu0 %3146
        %3148 = vadd.xlane.f32.xlu0 %v2893
        %v3149 = vpop.xlane.xlu0 %3148
        %3150 = vadd.xlane.f32.xlu0 %v2895
        %v3151 = vpop.xlane.xlu0 %3150
        %3152 = vadd.xlane.f32.xlu0 %v2897
        %v3153 = vpop.xlane.xlu0 %3152
        %3154 = vadd.xlane.f32.xlu0 %v2899
        %v3155 = vpop.xlane.xlu0 %3154
        %3156 = vadd.xlane.f32.xlu0 %v2901
        %v3157 = vpop.xlane.xlu0 %3156
        %3158 = vadd.xlane.f32.xlu0 %v2903
        %v3159 = vpop.xlane.xlu0 %3158
        %3160 = vadd.xlane.f32.xlu0 %v2905
        %v3161 = vpop.xlane.xlu0 %3160
        %3162 = vadd.xlane.f32.xlu0 %v2907
        %v3163 = vpop.xlane.xlu0 %3162
        %3164 = vadd.xlane.f32.xlu0 %v2909
        %v3165 = vpop.xlane.xlu0 %3164
        %3166 = vadd.xlane.f32.xlu0 %v2911
        %v3167 = vpop.xlane.xlu0 %3166
        %3168 = vadd.xlane.f32.xlu0 %v2913
        %v3169 = vpop.xlane.xlu0 %3168
        %3170 = vadd.xlane.f32.xlu0 %v2915
        %v3171 = vpop.xlane.xlu0 %3170
        %3172 = vadd.xlane.f32.xlu0 %v2917
        %v3173 = vpop.xlane.xlu0 %3172
        %3174 = vadd.xlane.f32.xlu0 %v2919
        %v3175 = vpop.xlane.xlu0 %3174
        %3176 = vadd.xlane.f32.xlu0 %v2921
        %v3177 = vpop.xlane.xlu0 %3176
        %3178 = vadd.xlane.f32.xlu0 %v2923
        %v3179 = vpop.xlane.xlu0 %3178
        %3180 = vadd.xlane.f32.xlu0 %v2925
        %v3181 = vpop.xlane.xlu0 %3180
        %3182 = vadd.xlane.f32.xlu0 %v2927
        %v3183 = vpop.xlane.xlu0 %3182
        %3184 = vadd.xlane.f32.xlu0 %v2929
        %v3185 = vpop.xlane.xlu0 %3184
        %3186 = vadd.xlane.f32.xlu0 %v2931
        %v3187 = vpop.xlane.xlu0 %3186
        %3188 = vadd.xlane.f32.xlu0 %v2933
        %v3189 = vpop.xlane.xlu0 %3188
        %3190 = vadd.xlane.f32.xlu0 %v2935
        %v3191 = vpop.xlane.xlu0 %3190
        %3192 = vadd.xlane.f32.xlu0 %v2937
        %v3193 = vpop.xlane.xlu0 %3192
        %3194 = vadd.xlane.f32.xlu0 %v2939
        %v3195 = vpop.xlane.xlu0 %3194
        %3196 = vadd.xlane.f32.xlu0 %v2941
        %v3197 = vpop.xlane.xlu0 %3196
        %3198 = vadd.xlane.f32.xlu0 %v2943
        %v3199 = vpop.xlane.xlu0 %3198
        %3200 = vadd.xlane.f32.xlu0 %v2945
        %v3201 = vpop.xlane.xlu0 %3200
        %3202 = vadd.xlane.f32.xlu0 %v2947
        %v3203 = vpop.xlane.xlu0 %3202
        %3204 = vadd.xlane.f32.xlu0 %v2949
        %v3205 = vpop.xlane.xlu0 %3204
        %3206 = vadd.xlane.f32.xlu0 %v2951
        %v3207 = vpop.xlane.xlu0 %3206
        %3208 = vadd.xlane.f32.xlu0 %v2953
        %v3209 = vpop.xlane.xlu0 %3208
        %3210 = vadd.xlane.f32.xlu0 %v2955
        %v3211 = vpop.xlane.xlu0 %3210
        %3212 = vadd.xlane.f32.xlu0 %v2957
        %v3213 = vpop.xlane.xlu0 %3212
        %3214 = vadd.xlane.f32.xlu0 %v2959
        %v3215 = vpop.xlane.xlu0 %3214
        %3216 = vadd.xlane.f32.xlu0 %v2961
        %v3217 = vpop.xlane.xlu0 %3216
        %3218 = vadd.xlane.f32.xlu0 %v2963
        %v3219 = vpop.xlane.xlu0 %3218
        %3220 = vadd.xlane.f32.xlu0 %v2965
        %v3221 = vpop.xlane.xlu0 %3220
        %3222 = vadd.xlane.f32.xlu0 %v2967
        %v3223 = vpop.xlane.xlu0 %3222
        %3224 = vadd.xlane.f32.xlu0 %v2969
        %v3225 = vpop.xlane.xlu0 %3224
        %3226 = vadd.xlane.f32.xlu0 %v2971
        %v3227 = vpop.xlane.xlu0 %3226
        %3228 = vadd.xlane.f32.xlu0 %v2973
        %v3229 = vpop.xlane.xlu0 %3228
        %3230 = vadd.xlane.f32.xlu0 %v2975
        %v3231 = vpop.xlane.xlu0 %3230
        %3232 = vadd.xlane.f32.xlu0 %v2977
        %v3233 = vpop.xlane.xlu0 %3232
        %v3234 = vpack.c.bf16 %v2725, %v2723
        %v3235 = vpack.c.bf16 %v2729, %v2727
        %v3236 = vpack.c.bf16 %v2733, %v2731
        %v3237 = vpack.c.bf16 %v2737, %v2735
        %v3238 = vpack.c.bf16 %v2741, %v2739
        %v3239 = vpack.c.bf16 %v2745, %v2743
        %v3240 = vpack.c.bf16 %v2749, %v2747
        %v3241 = vpack.c.bf16 %v2753, %v2751
        %v3242 = vpack.c.bf16 %v2757, %v2755
        %v3243 = vpack.c.bf16 %v2761, %v2759
        %v3244 = vpack.c.bf16 %v2765, %v2763
        %v3245 = vpack.c.bf16 %v2769, %v2767
        %v3246 = vpack.c.bf16 %v2773, %v2771
        %v3247 = vpack.c.bf16 %v2777, %v2775
        %v3248 = vpack.c.bf16 %v2781, %v2779
        %v3249 = vpack.c.bf16 %v2785, %v2783
        %v3250 = vpack.c.bf16 %v2789, %v2787
        %v3251 = vpack.c.bf16 %v2793, %v2791
        %v3252 = vpack.c.bf16 %v2797, %v2795
        %v3253 = vpack.c.bf16 %v2801, %v2799
        %v3254 = vpack.c.bf16 %v2805, %v2803
        %v3255 = vpack.c.bf16 %v2809, %v2807
        %v3256 = vpack.c.bf16 %v2813, %v2811
        %v3257 = vpack.c.bf16 %v2817, %v2815
        %v3258 = vpack.c.bf16 %v2821, %v2819
        %v3259 = vpack.c.bf16 %v2825, %v2823
        %v3260 = vpack.c.bf16 %v2829, %v2827
        %v3261 = vpack.c.bf16 %v2833, %v2831
        %v3262 = vpack.c.bf16 %v2837, %v2835
        %v3263 = vpack.c.bf16 %v2841, %v2839
        %v3264 = vpack.c.bf16 %v2845, %v2843
        %v3265 = vpack.c.bf16 %v2849, %v2847
        %v3266 = vpack.c.bf16 %v2853, %v2851
        %v3267 = vpack.c.bf16 %v2857, %v2855
        %v3268 = vpack.c.bf16 %v2861, %v2859
        %v3269 = vpack.c.bf16 %v2865, %v2863
        %v3270 = vpack.c.bf16 %v2869, %v2867
        %v3271 = vpack.c.bf16 %v2873, %v2871
        %v3272 = vpack.c.bf16 %v2877, %v2875
        %v3273 = vpack.c.bf16 %v2881, %v2879
        %v3274 = vpack.c.bf16 %v2885, %v2883
        %v3275 = vpack.c.bf16 %v2889, %v2887
        %v3276 = vpack.c.bf16 %v2893, %v2891
        %v3277 = vpack.c.bf16 %v2897, %v2895
        %v3278 = vpack.c.bf16 %v2901, %v2899
        %v3279 = vpack.c.bf16 %v2905, %v2903
        %v3280 = vpack.c.bf16 %v2909, %v2907
        %v3281 = vpack.c.bf16 %v2913, %v2911
        %v3282 = vpack.c.bf16 %v2917, %v2915
        %v3283 = vpack.c.bf16 %v2921, %v2919
        %v3284 = vpack.c.bf16 %v2925, %v2923
        %v3285 = vpack.c.bf16 %v2929, %v2927
        %v3286 = vpack.c.bf16 %v2933, %v2931
        %v3287 = vpack.c.bf16 %v2937, %v2935
        %v3288 = vpack.c.bf16 %v2941, %v2939
        %v3289 = vpack.c.bf16 %v2945, %v2943
        %v3290 = vpack.c.bf16 %v2949, %v2947
        %v3291 = vpack.c.bf16 %v2953, %v2951
        %v3292 = vpack.c.bf16 %v2957, %v2955
        %v3293 = vpack.c.bf16 %v2961, %v2959
        %v3294 = vpack.c.bf16 %v2965, %v2963
        %v3295 = vpack.c.bf16 %v2969, %v2967
        %v3296 = vpack.c.bf16 %v2973, %v2971
        %v3297 = vpack.c.bf16 %v2977, %v2975
        %v3298 = vld [vmem:[#allocation3] sm:$0xff]
        %v3299 = vld [vmem:[#allocation3 + $0x8] sm:$0xff]
        %v3300 = vld [vmem:[#allocation3 + $0x10] sm:$0xff]
        %v3301 = vld [vmem:[#allocation3 + $0x18] sm:$0xff]
        %v3302 = vld [vmem:[#allocation3 + $0x20] sm:$0xff]
        %v3303 = vld [vmem:[#allocation3 + $0x28] sm:$0xff]
        %v3304 = vld [vmem:[#allocation3 + $0x30] sm:$0xff]
        %v3305 = vld [vmem:[#allocation3 + $0x38] sm:$0xff]
        %v3306 = vld [vmem:[#allocation3 + $0x40] sm:$0xff]
        %v3307 = vld [vmem:[#allocation3 + $0x48] sm:$0xff]
        %v3308 = vld [vmem:[#allocation3 + $0x50] sm:$0xff]
        %v3309 = vld [vmem:[#allocation3 + $0x58] sm:$0xff]
        %v3310 = vld [vmem:[#allocation3 + $0x60] sm:$0xff]
        %v3311 = vld [vmem:[#allocation3 + $0x68] sm:$0xff]
        %v3312 = vld [vmem:[#allocation3 + $0x70] sm:$0xff]
        %v3313 = vld [vmem:[#allocation3 + $0x78] sm:$0xff]
        %3314 = vmatprep.subr.bf16.mxu0 0
        %3315 = vmatpush1.bf16.msra.mxu0 %v3298
        %3316 = vmatprep.subr.bf16.mxu0 0
        %3317 = vmatpush1.bf16.msra.mxu0 %v3299
        %3318 = vmatprep.subr.bf16.mxu0 0
        %3319 = vmatpush1.bf16.msra.mxu0 %v3300
        %3320 = vmatprep.subr.bf16.mxu0 0
        %3321 = vmatpush1.bf16.msra.mxu0 %v3301
        %3322 = vmatprep.subr.bf16.mxu0 0
        %3323 = vmatpush1.bf16.msra.mxu0 %v3302
        %3324 = vmatprep.subr.bf16.mxu0 0
        %3325 = vmatpush1.bf16.msra.mxu0 %v3303
        %3326 = vmatprep.subr.bf16.mxu0 0
        %3327 = vmatpush1.bf16.msra.mxu0 %v3304
        %3328 = vmatprep.subr.bf16.mxu0 0
        %3329 = vmatpush1.bf16.msra.mxu0 %v3305
        %3330 = vmatprep.subr.bf16.mxu0 0
        %3331 = vmatpush1.bf16.msra.mxu0 0
        %3332 = vmatprep.subr.bf16.mxu0 0
        %3333 = vmatpush1.bf16.msra.mxu0 0
        %3334 = vmatprep.subr.bf16.mxu0 0
        %3335 = vmatpush1.bf16.msra.mxu0 0
        %3336 = vmatprep.subr.bf16.mxu0 0
        %3337 = vmatpush1.bf16.msra.mxu0 0
        %3338 = vmatprep.subr.bf16.mxu0 0
        %3339 = vmatpush1.bf16.msra.mxu0 0
        %3340 = vmatprep.subr.bf16.mxu0 0
        %3341 = vmatpush1.bf16.msra.mxu0 0
        %3342 = vmatprep.subr.bf16.mxu0 0
        %3343 = vmatpush1.bf16.msra.mxu0 0
        %3344 = vmatprep.subr.bf16.mxu0 0
        %3345 = vmatpush1.bf16.msra.mxu0 0
        %3346 = vmatprep.mubr.bf16.mxu0 0
        %3347 = vmatmul.mubr.bf16.gmra.mrb[0].mxu0 %v3234
        %v3348 = vpop.f32.mrb[0].mxu0
        %v3349 = vadd.f32 0.0, %v3348
        %v3350 = vpop.f32.mrb[0].mxu0
        %v3351 = vpop.f32.mrb[0].mxu0
        %v3352 = vadd.f32 0.0, %v3351
        %v3353 = vpop.f32.mrb[0].mxu0
        %3354 = vmatprep.mubr.bf16.mxu0 0
        %3355 = vmatmul.mubr.bf16.gmra.mrb[0].mxu0 %v3235
        %v3356 = vpop.f32.mrb[0].mxu0
        %v3357 = vadd.f32 0.0, %v3356
        %v3358 = vpop.f32.mrb[0].mxu0
        %v3359 = vpop.f32.mrb[0].mxu0
        %v3360 = vadd.f32 0.0, %v3359
        %v3361 = vpop.f32.mrb[0].mxu0
        %3362 = vmatprep.mubr.bf16.mxu0 0
        %3363 = vmatmul.mubr.bf16.gmra.mrb[0].mxu0 %v3236
        %v3364 = vpop.f32.mrb[0].mxu0
        %v3365 = vadd.f32 0.0, %v3364
        %v3366 = vpop.f32.mrb[0].mxu0
        %v3367 = vpop.f32.mrb[0].mxu0
        %v3368 = vadd.f32 0.0, %v3367
        %v3369 = vpop.f32.mrb[0].mxu0
        %3370 = vmatprep.mubr.bf16.mxu0 0
        %3371 = vmatmul.mubr.bf16.gmra.mrb[0].mxu0 %v3237
        %v3372 = vpop.f32.mrb[0].mxu0
        %v3373 = vadd.f32 0.0, %v3372
        %v3374 = vpop.f32.mrb[0].mxu0
        %v3375 = vpop.f32.mrb[0].mxu0
        %v3376 = vadd.f32 0.0, %v3375
        %v3377 = vpop.f32.mrb[0].mxu0
        %3378 = vmatprep.mubr.bf16.mxu0 0
        %3379 = vmatmul.mubr.bf16.gmra.mrb[0].mxu0 %v3238
        %v3380 = vpop.f32.mrb[0].mxu0
        %v3381 = vadd.f32 0.0, %v3380
        %v3382 = vpop.f32.mrb[0].mxu0
        %v3383 = vpop.f32.mrb[0].mxu0
        %v3384 = vadd.f32 0.0, %v3383
        %v3385 = vpop.f32.mrb[0].mxu0
        %3386 = vmatprep.mubr.bf16.mxu0 0
        %3387 = vmatmul.mubr.bf16.gmra.mrb[0].mxu0 %v3239
        %v3388 = vpop.f32.mrb[0].mxu0
        %v3389 = vadd.f32 0.0, %v3388
        %v3390 = vpop.f32.mrb[0].mxu0
        %v3391 = vpop.f32.mrb[0].mxu0
        %v3392 = vadd.f32 0.0, %v3391
        %v3393 = vpop.f32.mrb[0].mxu0
        %3394 = vmatprep.mubr.bf16.mxu0 0
        %3395 = vmatmul.mubr.bf16.gmra.mrb[0].mxu0 %v3240
        %v3396 = vpop.f32.mrb[0].mxu0
        %v3397 = vadd.f32 0.0, %v3396
        %v3398 = vpop.f32.mrb[0].mxu0
        %v3399 = vpop.f32.mrb[0].mxu0
        %v3400 = vadd.f32 0.0, %v3399
        %v3401 = vpop.f32.mrb[0].mxu0
        %3402 = vmatprep.mubr.bf16.mxu0 0
        %3403 = vmatmul.mubr.bf16.gmra.mrb[0].mxu0 %v3241
        %v3404 = vpop.f32.mrb[0].mxu0
        %v3405 = vadd.f32 0.0, %v3404
        %v3406 = vpop.f32.mrb[0].mxu0
        %v3407 = vpop.f32.mrb[0].mxu0
        %v3408 = vadd.f32 0.0, %v3407
        %v3409 = vpop.f32.mrb[0].mxu0
        %3410 = vmatprep.mubr.bf16.mxu0 0
        %3411 = vmatmul.mubr.bf16.gmra.mrb[0].mxu0 %v3242
        %v3412 = vpop.f32.mrb[0].mxu0
        %v3413 = vadd.f32 0.0, %v3412
        %v3414 = vpop.f32.mrb[0].mxu0
        %v3415 = vpop.f32.mrb[0].mxu0
        %v3416 = vadd.f32 0.0, %v3415
        %v3417 = vpop.f32.mrb[0].mxu0
        %3418 = vmatprep.mubr.bf16.mxu0 0
        %3419 = vmatmul.mubr.bf16.gmra.mrb[0].mxu0 %v3243
        %v3420 = vpop.f32.mrb[0].mxu0
        %v3421 = vadd.f32 0.0, %v3420
        %v3422 = vpop.f32.mrb[0].mxu0
        %v3423 = vpop.f32.mrb[0].mxu0
        %v3424 = vadd.f32 0.0, %v3423
        %v3425 = vpop.f32.mrb[0].mxu0
        %3426 = vmatprep.mubr.bf16.mxu0 0
        %3427 = vmatmul.mubr.bf16.gmra.mrb[0].mxu0 %v3244
        %v3428 = vpop.f32.mrb[0].mxu0
        %v3429 = vadd.f32 0.0, %v3428
        %v3430 = vpop.f32.mrb[0].mxu0
        %v3431 = vpop.f32.mrb[0].mxu0
        %v3432 = vadd.f32 0.0, %v3431
        %v3433 = vpop.f32.mrb[0].mxu0
        %3434 = vmatprep.mubr.bf16.mxu0 0
        %3435 = vmatmul.mubr.bf16.gmra.mrb[0].mxu0 %v3245
        %v3436 = vpop.f32.mrb[0].mxu0
        %v3437 = vadd.f32 0.0, %v3436
        %v3438 = vpop.f32.mrb[0].mxu0
        %v3439 = vpop.f32.mrb[0].mxu0
        %v3440 = vadd.f32 0.0, %v3439
        %v3441 = vpop.f32.mrb[0].mxu0
        %3442 = vmatprep.mubr.bf16.mxu0 0
        %3443 = vmatmul.mubr.bf16.gmra.mrb[0].mxu0 %v3246
        %v3444 = vpop.f32.mrb[0].mxu0
        %v3445 = vadd.f32 0.0, %v3444
        %v3446 = vpop.f32.mrb[0].mxu0
        %v3447 = vpop.f32.mrb[0].mxu0
        %v3448 = vadd.f32 0.0, %v3447
        %v3449 = vpop.f32.mrb[0].mxu0
        %3450 = vmatprep.mubr.bf16.mxu0 0
        %3451 = vmatmul.mubr.bf16.gmra.mrb[0].mxu0 %v3247
        %v3452 = vpop.f32.mrb[0].mxu0
        %v3453 = vadd.f32 0.0, %v3452
        %v3454 = vpop.f32.mrb[0].mxu0
        %v3455 = vpop.f32.mrb[0].mxu0
        %v3456 = vadd.f32 0.0, %v3455
        %v3457 = vpop.f32.mrb[0].mxu0
        %3458 = vmatprep.mubr.bf16.mxu0 0
        %3459 = vmatmul.mubr.bf16.gmra.mrb[0].mxu0 %v3248
        %v3460 = vpop.f32.mrb[0].mxu0
        %v3461 = vadd.f32 0.0, %v3460
        %v3462 = vpop.f32.mrb[0].mxu0
        %v3463 = vpop.f32.mrb[0].mxu0
        %v3464 = vadd.f32 0.0, %v3463
        %v3465 = vpop.f32.mrb[0].mxu0
        %3466 = vmatprep.mubr.bf16.mxu0 0
        %3467 = vmatmul.mubr.bf16.gmra.mrb[0].mxu0 %v3249
        %v3468 = vpop.f32.mrb[0].mxu0
        %v3469 = vadd.f32 0.0, %v3468
        %v3470 = vpop.f32.mrb[0].mxu0
        %v3471 = vpop.f32.mrb[0].mxu0
        %v3472 = vadd.f32 0.0, %v3471
        %v3473 = vpop.f32.mrb[0].mxu0
        %3474 = vmatprep.mubr.bf16.mxu0 0
        %3475 = vmatmul.mubr.bf16.gmra.mrb[0].mxu0 %v3250
        %v3476 = vpop.f32.mrb[0].mxu0
        %v3477 = vadd.f32 0.0, %v3476
        %v3478 = vpop.f32.mrb[0].mxu0
        %v3479 = vpop.f32.mrb[0].mxu0
        %v3480 = vadd.f32 0.0, %v3479
        %v3481 = vpop.f32.mrb[0].mxu0
        %3482 = vmatprep.mubr.bf16.mxu0 0
        %3483 = vmatmul.mubr.bf16.gmra.mrb[0].mxu0 %v3251
        %v3484 = vpop.f32.mrb[0].mxu0
        %v3485 = vadd.f32 0.0, %v3484
        %v3486 = vpop.f32.mrb[0].mxu0
        %v3487 = vpop.f32.mrb[0].mxu0
        %v3488 = vadd.f32 0.0, %v3487
        %v3489 = vpop.f32.mrb[0].mxu0
        %3490 = vmatprep.mubr.bf16.mxu0 0
        %3491 = vmatmul.mubr.bf16.gmra.mrb[0].mxu0 %v3252
        %v3492 = vpop.f32.mrb[0].mxu0
        %v3493 = vadd.f32 0.0, %v3492
        %v3494 = vpop.f32.mrb[0].mxu0
        %v3495 = vpop.f32.mrb[0].mxu0
        %v3496 = vadd.f32 0.0, %v3495
        %v3497 = vpop.f32.mrb[0].mxu0
        %3498 = vmatprep.mubr.bf16.mxu0 0
        %3499 = vmatmul.mubr.bf16.gmra.mrb[0].mxu0 %v3253
        %v3500 = vpop.f32.mrb[0].mxu0
        %v3501 = vadd.f32 0.0, %v3500
        %v3502 = vpop.f32.mrb[0].mxu0
        %v3503 = vpop.f32.mrb[0].mxu0
        %v3504 = vadd.f32 0.0, %v3503
        %v3505 = vpop.f32.mrb[0].mxu0
        %3506 = vmatprep.mubr.bf16.mxu0 0
        %3507 = vmatmul.mubr.bf16.gmra.mrb[0].mxu0 %v3254
        %v3508 = vpop.f32.mrb[0].mxu0
        %v3509 = vadd.f32 0.0, %v3508
        %v3510 = vpop.f32.mrb[0].mxu0
        %v3511 = vpop.f32.mrb[0].mxu0
        %v3512 = vadd.f32 0.0, %v3511
        %v3513 = vpop.f32.mrb[0].mxu0
        %3514 = vmatprep.mubr.bf16.mxu0 0
        %3515 = vmatmul.mubr.bf16.gmra.mrb[0].mxu0 %v3255
        %v3516 = vpop.f32.mrb[0].mxu0
        %v3517 = vadd.f32 0.0, %v3516
        %v3518 = vpop.f32.mrb[0].mxu0
        %v3519 = vpop.f32.mrb[0].mxu0
        %v3520 = vadd.f32 0.0, %v3519
        %v3521 = vpop.f32.mrb[0].mxu0
        %3522 = vmatprep.mubr.bf16.mxu0 0
        %3523 = vmatmul.mubr.bf16.gmra.mrb[0].mxu0 %v3256
        %v3524 = vpop.f32.mrb[0].mxu0
        %v3525 = vadd.f32 0.0, %v3524
        %v3526 = vpop.f32.mrb[0].mxu0
        %v3527 = vpop.f32.mrb[0].mxu0
        %v3528 = vadd.f32 0.0, %v3527
        %v3529 = vpop.f32.mrb[0].mxu0
        %3530 = vmatprep.mubr.bf16.mxu0 0
        %3531 = vmatmul.mubr.bf16.gmra.mrb[0].mxu0 %v3257
        %v3532 = vpop.f32.mrb[0].mxu0
        %v3533 = vadd.f32 0.0, %v3532
        %v3534 = vpop.f32.mrb[0].mxu0
        %v3535 = vpop.f32.mrb[0].mxu0
        %v3536 = vadd.f32 0.0, %v3535
        %v3537 = vpop.f32.mrb[0].mxu0
        %3538 = vmatprep.mubr.bf16.mxu0 0
        %3539 = vmatmul.mubr.bf16.gmra.mrb[0].mxu0 %v3258
        %v3540 = vpop.f32.mrb[0].mxu0
        %v3541 = vadd.f32 0.0, %v3540
        %v3542 = vpop.f32.mrb[0].mxu0
        %v3543 = vpop.f32.mrb[0].mxu0
        %v3544 = vadd.f32 0.0, %v3543
        %v3545 = vpop.f32.mrb[0].mxu0
        %3546 = vmatprep.mubr.bf16.mxu0 0
        %3547 = vmatmul.mubr.bf16.gmra.mrb[0].mxu0 %v3259
        %v3548 = vpop.f32.mrb[0].mxu0
        %v3549 = vadd.f32 0.0, %v3548
        %v3550 = vpop.f32.mrb[0].mxu0
        %v3551 = vpop.f32.mrb[0].mxu0
        %v3552 = vadd.f32 0.0, %v3551
        %v3553 = vpop.f32.mrb[0].mxu0
        %3554 = vmatprep.mubr.bf16.mxu0 0
        %3555 = vmatmul.mubr.bf16.gmra.mrb[0].mxu0 %v3260
        %v3556 = vpop.f32.mrb[0].mxu0
        %v3557 = vadd.f32 0.0, %v3556
        %v3558 = vpop.f32.mrb[0].mxu0
        %v3559 = vpop.f32.mrb[0].mxu0
        %v3560 = vadd.f32 0.0, %v3559
        %v3561 = vpop.f32.mrb[0].mxu0
        %3562 = vmatprep.mubr.bf16.mxu0 0
        %3563 = vmatmul.mubr.bf16.gmra.mrb[0].mxu0 %v3261
        %v3564 = vpop.f32.mrb[0].mxu0
        %v3565 = vadd.f32 0.0, %v3564
        %v3566 = vpop.f32.mrb[0].mxu0
        %v3567 = vpop.f32.mrb[0].mxu0
        %v3568 = vadd.f32 0.0, %v3567
        %v3569 = vpop.f32.mrb[0].mxu0
        %3570 = vmatprep.mubr.bf16.mxu0 0
        %3571 = vmatmul.mubr.bf16.gmra.mrb[0].mxu0 %v3262
        %v3572 = vpop.f32.mrb[0].mxu0
        %v3573 = vadd.f32 0.0, %v3572
        %v3574 = vpop.f32.mrb[0].mxu0
        %v3575 = vpop.f32.mrb[0].mxu0
        %v3576 = vadd.f32 0.0, %v3575
        %v3577 = vpop.f32.mrb[0].mxu0
        %3578 = vmatprep.mubr.bf16.mxu0 0
        %3579 = vmatmul.mubr.bf16.gmra.mrb[0].mxu0 %v3263
        %v3580 = vpop.f32.mrb[0].mxu0
        %v3581 = vadd.f32 0.0, %v3580
        %v3582 = vpop.f32.mrb[0].mxu0
        %v3583 = vpop.f32.mrb[0].mxu0
        %v3584 = vadd.f32 0.0, %v3583
        %v3585 = vpop.f32.mrb[0].mxu0
        %3586 = vmatprep.mubr.bf16.mxu0 0
        %3587 = vmatmul.mubr.bf16.gmra.mrb[0].mxu0 %v3264
        %v3588 = vpop.f32.mrb[0].mxu0
        %v3589 = vadd.f32 0.0, %v3588
        %v3590 = vpop.f32.mrb[0].mxu0
        %v3591 = vpop.f32.mrb[0].mxu0
        %v3592 = vadd.f32 0.0, %v3591
        %v3593 = vpop.f32.mrb[0].mxu0
        %3594 = vmatprep.mubr.bf16.mxu0 0
        %3595 = vmatmul.mubr.bf16.gmra.mrb[0].mxu0 %v3265
        %v3596 = vpop.f32.mrb[0].mxu0
        %v3597 = vadd.f32 0.0, %v3596
        %v3598 = vpop.f32.mrb[0].mxu0
        %v3599 = vpop.f32.mrb[0].mxu0
        %v3600 = vadd.f32 0.0, %v3599
        %v3601 = vpop.f32.mrb[0].mxu0
        %3602 = vdwg.mxu0
        %3603 = vmatprep.subr.bf16.mxu0 0
        %3604 = vmatpush1.bf16.msra.mxu0 %v3306
        %3605 = vmatprep.subr.bf16.mxu0 0
        %3606 = vmatpush1.bf16.msra.mxu0 %v3307
        %3607 = vmatprep.subr.bf16.mxu0 0
        %3608 = vmatpush1.bf16.msra.mxu0 %v3308
        %3609 = vmatprep.subr.bf16.mxu0 0
        %3610 = vmatpush1.bf16.msra.mxu0 %v3309
        %3611 = vmatprep.subr.bf16.mxu0 0
        %3612 = vmatpush1.bf16.msra.mxu0 %v3310
        %3613 = vmatprep.subr.bf16.mxu0 0
        %3614 = vmatpush1.bf16.msra.mxu0 %v3311
        %3615 = vmatprep.subr.bf16.mxu0 0
        %3616 = vmatpush1.bf16.msra.mxu0 %v3312
        %3617 = vmatprep.subr.bf16.mxu0 0
        %3618 = vmatpush1.bf16.msra.mxu0 %v3313
        %3619 = vmatprep.subr.bf16.mxu0 0
        %3620 = vmatpush1.bf16.msra.mxu0 0
        %3621 = vmatprep.subr.bf16.mxu0 0
        %3622 = vmatpush1.bf16.msra.mxu0 0
        %3623 = vmatprep.subr.bf16.mxu0 0
        %3624 = vmatpush1.bf16.msra.mxu0 0
        %3625 = vmatprep.subr.bf16.mxu0 0
        %3626 = vmatpush1.bf16.msra.mxu0 0
        %3627 = vmatprep.subr.bf16.mxu0 0
        %3628 = vmatpush1.bf16.msra.mxu0 0
        %3629 = vmatprep.subr.bf16.mxu0 0
        %3630 = vmatpush1.bf16.msra.mxu0 0
        %3631 = vmatprep.subr.bf16.mxu0 0
        %3632 = vmatpush1.bf16.msra.mxu0 0
        %3633 = vmatprep.subr.bf16.mxu0 0
        %3634 = vmatpush1.bf16.msra.mxu0 0
        %3635 = vmatprep.mubr.bf16.mxu0 0
        %3636 = vmatmul.mubr.bf16.gmra.mrb[0].mxu0 %v3266
        %v3637 = vpop.f32.mrb[0].mxu0
        %v3638 = vadd.f32 0.0, %v3637
        %v3639 = vpop.f32.mrb[0].mxu0
        %v3640 = vpop.f32.mrb[0].mxu0
        %v3641 = vadd.f32 0.0, %v3640
        %v3642 = vpop.f32.mrb[0].mxu0
        %3643 = vmatprep.mubr.bf16.mxu0 0
        %3644 = vmatmul.mubr.bf16.gmra.mrb[0].mxu0 %v3267
        %v3645 = vpop.f32.mrb[0].mxu0
        %v3646 = vadd.f32 0.0, %v3645
        %v3647 = vpop.f32.mrb[0].mxu0
        %v3648 = vpop.f32.mrb[0].mxu0
        %v3649 = vadd.f32 0.0, %v3648
        %v3650 = vpop.f32.mrb[0].mxu0
        %3651 = vmatprep.mubr.bf16.mxu0 0
        %3652 = vmatmul.mubr.bf16.gmra.mrb[0].mxu0 %v3268
        %v3653 = vpop.f32.mrb[0].mxu0
        %v3654 = vadd.f32 0.0, %v3653
        %v3655 = vpop.f32.mrb[0].mxu0
        %v3656 = vpop.f32.mrb[0].mxu0
        %v3657 = vadd.f32 0.0, %v3656
        %v3658 = vpop.f32.mrb[0].mxu0
        %3659 = vmatprep.mubr.bf16.mxu0 0
        %3660 = vmatmul.mubr.bf16.gmra.mrb[0].mxu0 %v3269
        %v3661 = vpop.f32.mrb[0].mxu0
        %v3662 = vadd.f32 0.0, %v3661
        %v3663 = vpop.f32.mrb[0].mxu0
        %v3664 = vpop.f32.mrb[0].mxu0
        %v3665 = vadd.f32 0.0, %v3664
        %v3666 = vpop.f32.mrb[0].mxu0
        %3667 = vmatprep.mubr.bf16.mxu0 0
        %3668 = vmatmul.mubr.bf16.gmra.mrb[0].mxu0 %v3270
        %v3669 = vpop.f32.mrb[0].mxu0
        %v3670 = vadd.f32 0.0, %v3669
        %v3671 = vpop.f32.mrb[0].mxu0
        %v3672 = vpop.f32.mrb[0].mxu0
        %v3673 = vadd.f32 0.0, %v3672
        %v3674 = vpop.f32.mrb[0].mxu0
        %3675 = vmatprep.mubr.bf16.mxu0 0
        %3676 = vmatmul.mubr.bf16.gmra.mrb[0].mxu0 %v3271
        %v3677 = vpop.f32.mrb[0].mxu0
        %v3678 = vadd.f32 0.0, %v3677
        %v3679 = vpop.f32.mrb[0].mxu0
        %v3680 = vpop.f32.mrb[0].mxu0
        %v3681 = vadd.f32 0.0, %v3680
        %v3682 = vpop.f32.mrb[0].mxu0
        %3683 = vmatprep.mubr.bf16.mxu0 0
        %3684 = vmatmul.mubr.bf16.gmra.mrb[0].mxu0 %v3272
        %v3685 = vpop.f32.mrb[0].mxu0
        %v3686 = vadd.f32 0.0, %v3685
        %v3687 = vpop.f32.mrb[0].mxu0
        %v3688 = vpop.f32.mrb[0].mxu0
        %v3689 = vadd.f32 0.0, %v3688
        %v3690 = vpop.f32.mrb[0].mxu0
        %3691 = vmatprep.mubr.bf16.mxu0 0
        %3692 = vmatmul.mubr.bf16.gmra.mrb[0].mxu0 %v3273
        %v3693 = vpop.f32.mrb[0].mxu0
        %v3694 = vadd.f32 0.0, %v3693
        %v3695 = vpop.f32.mrb[0].mxu0
        %v3696 = vpop.f32.mrb[0].mxu0
        %v3697 = vadd.f32 0.0, %v3696
        %v3698 = vpop.f32.mrb[0].mxu0
        %3699 = vmatprep.mubr.bf16.mxu0 0
        %3700 = vmatmul.mubr.bf16.gmra.mrb[0].mxu0 %v3274
        %v3701 = vpop.f32.mrb[0].mxu0
        %v3702 = vadd.f32 0.0, %v3701
        %v3703 = vpop.f32.mrb[0].mxu0
        %v3704 = vpop.f32.mrb[0].mxu0
        %v3705 = vadd.f32 0.0, %v3704
        %v3706 = vpop.f32.mrb[0].mxu0
        %3707 = vmatprep.mubr.bf16.mxu0 0
        %3708 = vmatmul.mubr.bf16.gmra.mrb[0].mxu0 %v3275
        %v3709 = vpop.f32.mrb[0].mxu0
        %v3710 = vadd.f32 0.0, %v3709
        %v3711 = vpop.f32.mrb[0].mxu0
        %v3712 = vpop.f32.mrb[0].mxu0
        %v3713 = vadd.f32 0.0, %v3712
        %v3714 = vpop.f32.mrb[0].mxu0
        %3715 = vmatprep.mubr.bf16.mxu0 0
        %3716 = vmatmul.mubr.bf16.gmra.mrb[0].mxu0 %v3276
        %v3717 = vpop.f32.mrb[0].mxu0
        %v3718 = vadd.f32 0.0, %v3717
        %v3719 = vpop.f32.mrb[0].mxu0
        %v3720 = vpop.f32.mrb[0].mxu0
        %v3721 = vadd.f32 0.0, %v3720
        %v3722 = vpop.f32.mrb[0].mxu0
        %3723 = vmatprep.mubr.bf16.mxu0 0
        %3724 = vmatmul.mubr.bf16.gmra.mrb[0].mxu0 %v3277
        %v3725 = vpop.f32.mrb[0].mxu0
        %v3726 = vadd.f32 0.0, %v3725
        %v3727 = vpop.f32.mrb[0].mxu0
        %v3728 = vpop.f32.mrb[0].mxu0
        %v3729 = vadd.f32 0.0, %v3728
        %v3730 = vpop.f32.mrb[0].mxu0
        %3731 = vmatprep.mubr.bf16.mxu0 0
        %3732 = vmatmul.mubr.bf16.gmra.mrb[0].mxu0 %v3278
        %v3733 = vpop.f32.mrb[0].mxu0
        %v3734 = vadd.f32 0.0, %v3733
        %v3735 = vpop.f32.mrb[0].mxu0
        %v3736 = vpop.f32.mrb[0].mxu0
        %v3737 = vadd.f32 0.0, %v3736
        %v3738 = vpop.f32.mrb[0].mxu0
        %3739 = vmatprep.mubr.bf16.mxu0 0
        %3740 = vmatmul.mubr.bf16.gmra.mrb[0].mxu0 %v3279
        %v3741 = vpop.f32.mrb[0].mxu0
        %v3742 = vadd.f32 0.0, %v3741
        %v3743 = vpop.f32.mrb[0].mxu0
        %v3744 = vpop.f32.mrb[0].mxu0
        %v3745 = vadd.f32 0.0, %v3744
        %v3746 = vpop.f32.mrb[0].mxu0
        %3747 = vmatprep.mubr.bf16.mxu0 0
        %3748 = vmatmul.mubr.bf16.gmra.mrb[0].mxu0 %v3280
        %v3749 = vpop.f32.mrb[0].mxu0
        %v3750 = vadd.f32 0.0, %v3749
        %v3751 = vpop.f32.mrb[0].mxu0
        %v3752 = vpop.f32.mrb[0].mxu0
        %v3753 = vadd.f32 0.0, %v3752
        %v3754 = vpop.f32.mrb[0].mxu0
        %3755 = vmatprep.mubr.bf16.mxu0 0
        %3756 = vmatmul.mubr.bf16.gmra.mrb[0].mxu0 %v3281
        %v3757 = vpop.f32.mrb[0].mxu0
        %v3758 = vadd.f32 0.0, %v3757
        %v3759 = vpop.f32.mrb[0].mxu0
        %v3760 = vpop.f32.mrb[0].mxu0
        %v3761 = vadd.f32 0.0, %v3760
        %v3762 = vpop.f32.mrb[0].mxu0
        %3763 = vmatprep.mubr.bf16.mxu0 0
        %3764 = vmatmul.mubr.bf16.gmra.mrb[0].mxu0 %v3282
        %v3765 = vpop.f32.mrb[0].mxu0
        %v3766 = vadd.f32 0.0, %v3765
        %v3767 = vpop.f32.mrb[0].mxu0
        %v3768 = vpop.f32.mrb[0].mxu0
        %v3769 = vadd.f32 0.0, %v3768
        %v3770 = vpop.f32.mrb[0].mxu0
        %3771 = vmatprep.mubr.bf16.mxu0 0
        %3772 = vmatmul.mubr.bf16.gmra.mrb[0].mxu0 %v3283
        %v3773 = vpop.f32.mrb[0].mxu0
        %v3774 = vadd.f32 0.0, %v3773
        %v3775 = vpop.f32.mrb[0].mxu0
        %v3776 = vpop.f32.mrb[0].mxu0
        %v3777 = vadd.f32 0.0, %v3776
        %v3778 = vpop.f32.mrb[0].mxu0
        %3779 = vmatprep.mubr.bf16.mxu0 0
        %3780 = vmatmul.mubr.bf16.gmra.mrb[0].mxu0 %v3284
        %v3781 = vpop.f32.mrb[0].mxu0
        %v3782 = vadd.f32 0.0, %v3781
        %v3783 = vpop.f32.mrb[0].mxu0
        %v3784 = vpop.f32.mrb[0].mxu0
        %v3785 = vadd.f32 0.0, %v3784
        %v3786 = vpop.f32.mrb[0].mxu0
        %3787 = vmatprep.mubr.bf16.mxu0 0
        %3788 = vmatmul.mubr.bf16.gmra.mrb[0].mxu0 %v3285
        %v3789 = vpop.f32.mrb[0].mxu0
        %v3790 = vadd.f32 0.0, %v3789
        %v3791 = vpop.f32.mrb[0].mxu0
        %v3792 = vpop.f32.mrb[0].mxu0
        %v3793 = vadd.f32 0.0, %v3792
        %v3794 = vpop.f32.mrb[0].mxu0
        %3795 = vmatprep.mubr.bf16.mxu0 0
        %3796 = vmatmul.mubr.bf16.gmra.mrb[0].mxu0 %v3286
        %v3797 = vpop.f32.mrb[0].mxu0
        %v3798 = vadd.f32 0.0, %v3797
        %v3799 = vpop.f32.mrb[0].mxu0
        %v3800 = vpop.f32.mrb[0].mxu0
        %v3801 = vadd.f32 0.0, %v3800
        %v3802 = vpop.f32.mrb[0].mxu0
        %3803 = vmatprep.mubr.bf16.mxu0 0
        %3804 = vmatmul.mubr.bf16.gmra.mrb[0].mxu0 %v3287
        %v3805 = vpop.f32.mrb[0].mxu0
        %v3806 = vadd.f32 0.0, %v3805
        %v3807 = vpop.f32.mrb[0].mxu0
        %v3808 = vpop.f32.mrb[0].mxu0
        %v3809 = vadd.f32 0.0, %v3808
        %v3810 = vpop.f32.mrb[0].mxu0
        %3811 = vmatprep.mubr.bf16.mxu0 0
        %3812 = vmatmul.mubr.bf16.gmra.mrb[0].mxu0 %v3288
        %v3813 = vpop.f32.mrb[0].mxu0
        %v3814 = vadd.f32 0.0, %v3813
        %v3815 = vpop.f32.mrb[0].mxu0
        %v3816 = vpop.f32.mrb[0].mxu0
        %v3817 = vadd.f32 0.0, %v3816
        %v3818 = vpop.f32.mrb[0].mxu0
        %3819 = vmatprep.mubr.bf16.mxu0 0
        %3820 = vmatmul.mubr.bf16.gmra.mrb[0].mxu0 %v3289
        %v3821 = vpop.f32.mrb[0].mxu0
        %v3822 = vadd.f32 0.0, %v3821
        %v3823 = vpop.f32.mrb[0].mxu0
        %v3824 = vpop.f32.mrb[0].mxu0
        %v3825 = vadd.f32 0.0, %v3824
        %v3826 = vpop.f32.mrb[0].mxu0
        %3827 = vmatprep.mubr.bf16.mxu0 0
        %3828 = vmatmul.mubr.bf16.gmra.mrb[0].mxu0 %v3290
        %v3829 = vpop.f32.mrb[0].mxu0
        %v3830 = vadd.f32 0.0, %v3829
        %v3831 = vpop.f32.mrb[0].mxu0
        %v3832 = vpop.f32.mrb[0].mxu0
        %v3833 = vadd.f32 0.0, %v3832
        %v3834 = vpop.f32.mrb[0].mxu0
        %3835 = vmatprep.mubr.bf16.mxu0 0
        %3836 = vmatmul.mubr.bf16.gmra.mrb[0].mxu0 %v3291
        %v3837 = vpop.f32.mrb[0].mxu0
        %v3838 = vadd.f32 0.0, %v3837
        %v3839 = vpop.f32.mrb[0].mxu0
        %v3840 = vpop.f32.mrb[0].mxu0
        %v3841 = vadd.f32 0.0, %v3840
        %v3842 = vpop.f32.mrb[0].mxu0
        %3843 = vmatprep.mubr.bf16.mxu0 0
        %3844 = vmatmul.mubr.bf16.gmra.mrb[0].mxu0 %v3292
        %v3845 = vpop.f32.mrb[0].mxu0
        %v3846 = vadd.f32 0.0, %v3845
        %v3847 = vpop.f32.mrb[0].mxu0
        %v3848 = vpop.f32.mrb[0].mxu0
        %v3849 = vadd.f32 0.0, %v3848
        %v3850 = vpop.f32.mrb[0].mxu0
        %3851 = vmatprep.mubr.bf16.mxu0 0
        %3852 = vmatmul.mubr.bf16.gmra.mrb[0].mxu0 %v3293
        %v3853 = vpop.f32.mrb[0].mxu0
        %v3854 = vadd.f32 0.0, %v3853
        %v3855 = vpop.f32.mrb[0].mxu0
        %v3856 = vpop.f32.mrb[0].mxu0
        %v3857 = vadd.f32 0.0, %v3856
        %v3858 = vpop.f32.mrb[0].mxu0
        %3859 = vmatprep.mubr.bf16.mxu0 0
        %3860 = vmatmul.mubr.bf16.gmra.mrb[0].mxu0 %v3294
        %v3861 = vpop.f32.mrb[0].mxu0
        %v3862 = vadd.f32 0.0, %v3861
        %v3863 = vpop.f32.mrb[0].mxu0
        %v3864 = vpop.f32.mrb[0].mxu0
        %v3865 = vadd.f32 0.0, %v3864
        %v3866 = vpop.f32.mrb[0].mxu0
        %3867 = vmatprep.mubr.bf16.mxu0 0
        %3868 = vmatmul.mubr.bf16.gmra.mrb[0].mxu0 %v3295
        %v3869 = vpop.f32.mrb[0].mxu0
        %v3870 = vadd.f32 0.0, %v3869
        %v3871 = vpop.f32.mrb[0].mxu0
        %v3872 = vpop.f32.mrb[0].mxu0
        %v3873 = vadd.f32 0.0, %v3872
        %v3874 = vpop.f32.mrb[0].mxu0
        %3875 = vmatprep.mubr.bf16.mxu0 0
        %3876 = vmatmul.mubr.bf16.gmra.mrb[0].mxu0 %v3296
        %v3877 = vpop.f32.mrb[0].mxu0
        %v3878 = vadd.f32 0.0, %v3877
        %v3879 = vpop.f32.mrb[0].mxu0
        %v3880 = vpop.f32.mrb[0].mxu0
        %v3881 = vadd.f32 0.0, %v3880
        %v3882 = vpop.f32.mrb[0].mxu0
        %3883 = vmatprep.mubr.bf16.mxu0 0
        %3884 = vmatmul.mubr.bf16.gmra.mrb[0].mxu0 %v3297
        %v3885 = vpop.f32.mrb[0].mxu0
        %v3886 = vadd.f32 0.0, %v3885
        %v3887 = vpop.f32.mrb[0].mxu0
        %v3888 = vpop.f32.mrb[0].mxu0
        %v3889 = vadd.f32 0.0, %v3888
        %v3890 = vpop.f32.mrb[0].mxu0
        %3891 = vdwg.mxu0
        %v3892 = vrcp.pop %v2979
        %v3893 = vrcp.pop %v2981
        %v3894 = vrcp.pop %v2983
        %v3895 = vrcp.pop %v2985
        %v3896 = vrcp.pop %v2987
        %v3897 = vrcp.pop %v2989
        %v3898 = vrcp.pop %v2991
        %v3899 = vrcp.pop %v2993
        %v3900 = vrcp.pop %v2995
        %v3901 = vrcp.pop %v2997
        %v3902 = vrcp.pop %v2999
        %v3903 = vrcp.pop %v3001
        %v3904 = vrcp.pop %v3003
        %v3905 = vrcp.pop %v3005
        %v3906 = vrcp.pop %v3007
        %v3907 = vrcp.pop %v3009
        %v3908 = vrcp.pop %v3011
        %v3909 = vrcp.pop %v3013
        %v3910 = vrcp.pop %v3015
        %v3911 = vrcp.pop %v3017
        %v3912 = vrcp.pop %v3019
        %v3913 = vrcp.pop %v3021
        %v3914 = vrcp.pop %v3023
        %v3915 = vrcp.pop %v3025
        %v3916 = vrcp.pop %v3027
        %v3917 = vrcp.pop %v3029
        %v3918 = vrcp.pop %v3031
        %v3919 = vrcp.pop %v3033
        %v3920 = vrcp.pop %v3035
        %v3921 = vrcp.pop %v3037
        %v3922 = vrcp.pop %v3039
        %v3923 = vrcp.pop %v3041
        %v3924 = vrcp.pop %v3043
        %v3925 = vrcp.pop %v3045
        %v3926 = vrcp.pop %v3047
        %v3927 = vrcp.pop %v3049
        %v3928 = vrcp.pop %v3051
        %v3929 = vrcp.pop %v3053
        %v3930 = vrcp.pop %v3055
        %v3931 = vrcp.pop %v3057
        %v3932 = vrcp.pop %v3059
        %v3933 = vrcp.pop %v3061
        %v3934 = vrcp.pop %v3063
        %v3935 = vrcp.pop %v3065
        %v3936 = vrcp.pop %v3067
        %v3937 = vrcp.pop %v3069
        %v3938 = vrcp.pop %v3071
        %v3939 = vrcp.pop %v3073
        %v3940 = vrcp.pop %v3075
        %v3941 = vrcp.pop %v3077
        %v3942 = vrcp.pop %v3079
        %v3943 = vrcp.pop %v3081
        %v3944 = vrcp.pop %v3083
        %v3945 = vrcp.pop %v3085
        %v3946 = vrcp.pop %v3087
        %v3947 = vrcp.pop %v3089
        %v3948 = vrcp.pop %v3091
        %v3949 = vrcp.pop %v3093
        %v3950 = vrcp.pop %v3095
        %v3951 = vrcp.pop %v3097
        %v3952 = vrcp.pop %v3099
        %v3953 = vrcp.pop %v3101
        %v3954 = vrcp.pop %v3103
        %v3955 = vrcp.pop %v3105
        %v3956 = vrcp.pop %v3107
        %v3957 = vrcp.pop %v3109
        %v3958 = vrcp.pop %v3111
        %v3959 = vrcp.pop %v3113
        %v3960 = vrcp.pop %v3115
        %v3961 = vrcp.pop %v3117
        %v3962 = vrcp.pop %v3119
        %v3963 = vrcp.pop %v3121
        %v3964 = vrcp.pop %v3123
        %v3965 = vrcp.pop %v3125
        %v3966 = vrcp.pop %v3127
        %v3967 = vrcp.pop %v3129
        %v3968 = vrcp.pop %v3131
        %v3969 = vrcp.pop %v3133
        %v3970 = vrcp.pop %v3135
        %v3971 = vrcp.pop %v3137
        %v3972 = vrcp.pop %v3139
        %v3973 = vrcp.pop %v3141
        %v3974 = vrcp.pop %v3143
        %v3975 = vrcp.pop %v3145
        %v3976 = vrcp.pop %v3147
        %v3977 = vrcp.pop %v3149
        %v3978 = vrcp.pop %v3151
        %v3979 = vrcp.pop %v3153
        %v3980 = vrcp.pop %v3155
        %v3981 = vrcp.pop %v3157
        %v3982 = vrcp.pop %v3159
        %v3983 = vrcp.pop %v3161
        %v3984 = vrcp.pop %v3163
        %v3985 = vrcp.pop %v3165
        %v3986 = vrcp.pop %v3167
        %v3987 = vrcp.pop %v3169
        %v3988 = vrcp.pop %v3171
        %v3989 = vrcp.pop %v3173
        %v3990 = vrcp.pop %v3175
        %v3991 = vrcp.pop %v3177
        %v3992 = vrcp.pop %v3179
        %v3993 = vrcp.pop %v3181
        %v3994 = vrcp.pop %v3183
        %v3995 = vrcp.pop %v3185
        %v3996 = vrcp.pop %v3187
        %v3997 = vrcp.pop %v3189
        %v3998 = vrcp.pop %v3191
        %v3999 = vrcp.pop %v3193
        %v4000 = vrcp.pop %v3195
        %v4001 = vrcp.pop %v3197
        %v4002 = vrcp.pop %v3199
        %v4003 = vrcp.pop %v3201
        %v4004 = vrcp.pop %v3203
        %v4005 = vrcp.pop %v3205
        %v4006 = vrcp.pop %v3207
        %v4007 = vrcp.pop %v3209
        %v4008 = vrcp.pop %v3211
        %v4009 = vrcp.pop %v3213
        %v4010 = vrcp.pop %v3215
        %v4011 = vrcp.pop %v3217
        %v4012 = vrcp.pop %v3219
        %v4013 = vrcp.pop %v3221
        %v4014 = vrcp.pop %v3223
        %v4015 = vrcp.pop %v3225
        %v4016 = vrcp.pop %v3227
        %v4017 = vrcp.pop %v3229
        %v4018 = vrcp.pop %v3231
        %v4019 = vrcp.pop %v3233
        %v4020 = vmul.f32 %v3349, %v3892
        %v4021 = vmul.f32 %v3352, %v3893
        %v4022 = vmul.f32 %v3357, %v3894
        %v4023 = vmul.f32 %v3360, %v3895
        %v4024 = vmul.f32 %v3365, %v3896
        %v4025 = vmul.f32 %v3368, %v3897
        %v4026 = vmul.f32 %v3373, %v3898
        %v4027 = vmul.f32 %v3376, %v3899
        %v4028 = vmul.f32 %v3381, %v3900
        %v4029 = vmul.f32 %v3384, %v3901
        %v4030 = vmul.f32 %v3389, %v3902
        %v4031 = vmul.f32 %v3392, %v3903
        %v4032 = vmul.f32 %v3397, %v3904
        %v4033 = vmul.f32 %v3400, %v3905
        %v4034 = vmul.f32 %v3405, %v3906
        %v4035 = vmul.f32 %v3408, %v3907
        %v4036 = vmul.f32 %v3413, %v3908
        %v4037 = vmul.f32 %v3416, %v3909
        %v4038 = vmul.f32 %v3421, %v3910
        %v4039 = vmul.f32 %v3424, %v3911
        %v4040 = vmul.f32 %v3429, %v3912
        %v4041 = vmul.f32 %v3432, %v3913
        %v4042 = vmul.f32 %v3437, %v3914
        %v4043 = vmul.f32 %v3440, %v3915
        %v4044 = vmul.f32 %v3445, %v3916
        %v4045 = vmul.f32 %v3448, %v3917
        %v4046 = vmul.f32 %v3453, %v3918
        %v4047 = vmul.f32 %v3456, %v3919
        %v4048 = vmul.f32 %v3461, %v3920
        %v4049 = vmul.f32 %v3464, %v3921
        %v4050 = vmul.f32 %v3469, %v3922
        %v4051 = vmul.f32 %v3472, %v3923
        %v4052 = vmul.f32 %v3477, %v3924
        %v4053 = vmul.f32 %v3480, %v3925
        %v4054 = vmul.f32 %v3485, %v3926
        %v4055 = vmul.f32 %v3488, %v3927
        %v4056 = vmul.f32 %v3493, %v3928
        %v4057 = vmul.f32 %v3496, %v3929
        %v4058 = vmul.f32 %v3501, %v3930
        %v4059 = vmul.f32 %v3504, %v3931
        %v4060 = vmul.f32 %v3509, %v3932
        %v4061 = vmul.f32 %v3512, %v3933
        %v4062 = vmul.f32 %v3517, %v3934
        %v4063 = vmul.f32 %v3520, %v3935
        %v4064 = vmul.f32 %v3525, %v3936
        %v4065 = vmul.f32 %v3528, %v3937
        %v4066 = vmul.f32 %v3533, %v3938
        %v4067 = vmul.f32 %v3536, %v3939
        %v4068 = vmul.f32 %v3541, %v3940
        %v4069 = vmul.f32 %v3544, %v3941
        %v4070 = vmul.f32 %v3549, %v3942
        %v4071 = vmul.f32 %v3552, %v3943
        %v4072 = vmul.f32 %v3557, %v3944
        %v4073 = vmul.f32 %v3560, %v3945
        %v4074 = vmul.f32 %v3565, %v3946
        %v4075 = vmul.f32 %v3568, %v3947
        %v4076 = vmul.f32 %v3573, %v3948
        %v4077 = vmul.f32 %v3576, %v3949
        %v4078 = vmul.f32 %v3581, %v3950
        %v4079 = vmul.f32 %v3584, %v3951
        %v4080 = vmul.f32 %v3589, %v3952
        %v4081 = vmul.f32 %v3592, %v3953
        %v4082 = vmul.f32 %v3597, %v3954
        %v4083 = vmul.f32 %v3600, %v3955
        %v4084 = vmul.f32 %v3638, %v3956
        %v4085 = vmul.f32 %v3641, %v3957
        %v4086 = vmul.f32 %v3646, %v3958
        %v4087 = vmul.f32 %v3649, %v3959
        %v4088 = vmul.f32 %v3654, %v3960
        %v4089 = vmul.f32 %v3657, %v3961
        %v4090 = vmul.f32 %v3662, %v3962
        %v4091 = vmul.f32 %v3665, %v3963
        %v4092 = vmul.f32 %v3670, %v3964
        %v4093 = vmul.f32 %v3673, %v3965
        %v4094 = vmul.f32 %v3678, %v3966
        %v4095 = vmul.f32 %v3681, %v3967
        %v4096 = vmul.f32 %v3686, %v3968
        %v4097 = vmul.f32 %v3689, %v3969
        %v4098 = vmul.f32 %v3694, %v3970
        %v4099 = vmul.f32 %v3697, %v3971
        %v4100 = vmul.f32 %v3702, %v3972
        %v4101 = vmul.f32 %v3705, %v3973
        %v4102 = vmul.f32 %v3710, %v3974
        %v4103 = vmul.f32 %v3713, %v3975
        %v4104 = vmul.f32 %v3718, %v3976
        %v4105 = vmul.f32 %v3721, %v3977
        %v4106 = vmul.f32 %v3726, %v3978
        %v4107 = vmul.f32 %v3729, %v3979
        %v4108 = vmul.f32 %v3734, %v3980
        %v4109 = vmul.f32 %v3737, %v3981
        %v4110 = vmul.f32 %v3742, %v3982
        %v4111 = vmul.f32 %v3745, %v3983
        %v4112 = vmul.f32 %v3750, %v3984
        %v4113 = vmul.f32 %v3753, %v3985
        %v4114 = vmul.f32 %v3758, %v3986
        %v4115 = vmul.f32 %v3761, %v3987
        %v4116 = vmul.f32 %v3766, %v3988
        %v4117 = vmul.f32 %v3769, %v3989
        %v4118 = vmul.f32 %v3774, %v3990
        %v4119 = vmul.f32 %v3777, %v3991
        %v4120 = vmul.f32 %v3782, %v3992
        %v4121 = vmul.f32 %v3785, %v3993
        %v4122 = vmul.f32 %v3790, %v3994
        %v4123 = vmul.f32 %v3793, %v3995
        %v4124 = vmul.f32 %v3798, %v3996
        %v4125 = vmul.f32 %v3801, %v3997
        %v4126 = vmul.f32 %v3806, %v3998
        %v4127 = vmul.f32 %v3809, %v3999
        %v4128 = vmul.f32 %v3814, %v4000
        %v4129 = vmul.f32 %v3817, %v4001
        %v4130 = vmul.f32 %v3822, %v4002
        %v4131 = vmul.f32 %v3825, %v4003
        %v4132 = vmul.f32 %v3830, %v4004
        %v4133 = vmul.f32 %v3833, %v4005
        %v4134 = vmul.f32 %v3838, %v4006
        %v4135 = vmul.f32 %v3841, %v4007
        %v4136 = vmul.f32 %v3846, %v4008
        %v4137 = vmul.f32 %v3849, %v4009
        %v4138 = vmul.f32 %v3854, %v4010
        %v4139 = vmul.f32 %v3857, %v4011
        %v4140 = vmul.f32 %v3862, %v4012
        %v4141 = vmul.f32 %v3865, %v4013
        %v4142 = vmul.f32 %v3870, %v4014
        %v4143 = vmul.f32 %v3873, %v4015
        %v4144 = vmul.f32 %v3878, %v4016
        %v4145 = vmul.f32 %v3881, %v4017
        %v4146 = vmul.f32 %v3886, %v4018
        %v4147 = vmul.f32 %v3889, %v4019
        %v4148 = vpack.c.bf16 %v4021, %v4020
        %v4149 = vpack.c.bf16 %v4023, %v4022
        %v4150 = vpack.c.bf16 %v4025, %v4024
        %v4151 = vpack.c.bf16 %v4027, %v4026
        %v4152 = vpack.c.bf16 %v4029, %v4028
        %v4153 = vpack.c.bf16 %v4031, %v4030
        %v4154 = vpack.c.bf16 %v4033, %v4032
        %v4155 = vpack.c.bf16 %v4035, %v4034
        %v4156 = vpack.c.bf16 %v4037, %v4036
        %v4157 = vpack.c.bf16 %v4039, %v4038
        %v4158 = vpack.c.bf16 %v4041, %v4040
        %v4159 = vpack.c.bf16 %v4043, %v4042
        %v4160 = vpack.c.bf16 %v4045, %v4044
        %v4161 = vpack.c.bf16 %v4047, %v4046
        %v4162 = vpack.c.bf16 %v4049, %v4048
        %v4163 = vpack.c.bf16 %v4051, %v4050
        %4164 = vst.msk [vmem:[#allocation4] sm:$0xff] %vm1519, %v4148
        %4165 = vst.msk [vmem:[#allocation4 + $0x8] sm:$0xff] %vm1519, %v4149
        %4166 = vst.msk [vmem:[#allocation4 + $0x10] sm:$0xff] %vm1519, %v4150
        %4167 = vst.msk [vmem:[#allocation4 + $0x18] sm:$0xff] %vm1519, %v4151
        %4168 = vst.msk [vmem:[#allocation4 + $0x20] sm:$0xff] %vm1519, %v4152
        %4169 = vst.msk [vmem:[#allocation4 + $0x28] sm:$0xff] %vm1519, %v4153
        %4170 = vst.msk [vmem:[#allocation4 + $0x30] sm:$0xff] %vm1519, %v4154
        %4171 = vst.msk [vmem:[#allocation4 + $0x38] sm:$0xff] %vm1519, %v4155
        %4172 = vst.msk [vmem:[#allocation4 + $0x40] sm:$0xff] %vm1519, %v4156
        %4173 = vst.msk [vmem:[#allocation4 + $0x48] sm:$0xff] %vm1519, %v4157
        %4174 = vst.msk [vmem:[#allocation4 + $0x50] sm:$0xff] %vm1519, %v4158
        %4175 = vst.msk [vmem:[#allocation4 + $0x58] sm:$0xff] %vm1519, %v4159
        %4176 = vst.msk [vmem:[#allocation4 + $0x60] sm:$0xff] %vm1519, %v4160
        %4177 = vst.msk [vmem:[#allocation4 + $0x68] sm:$0xff] %vm1519, %v4161
        %4178 = vst.msk [vmem:[#allocation4 + $0x70] sm:$0xff] %vm1519, %v4162
        %4179 = vst.msk [vmem:[#allocation4 + $0x78] sm:$0xff] %vm1519, %v4163
        %v4180 = vpack.c.bf16 %v4053, %v4052
        %v4181 = vpack.c.bf16 %v4055, %v4054
        %v4182 = vpack.c.bf16 %v4057, %v4056
        %v4183 = vpack.c.bf16 %v4059, %v4058
        %v4184 = vpack.c.bf16 %v4061, %v4060
        %v4185 = vpack.c.bf16 %v4063, %v4062
        %v4186 = vpack.c.bf16 %v4065, %v4064
        %v4187 = vpack.c.bf16 %v4067, %v4066
        %v4188 = vpack.c.bf16 %v4069, %v4068
        %v4189 = vpack.c.bf16 %v4071, %v4070
        %v4190 = vpack.c.bf16 %v4073, %v4072
        %v4191 = vpack.c.bf16 %v4075, %v4074
        %v4192 = vpack.c.bf16 %v4077, %v4076
        %v4193 = vpack.c.bf16 %v4079, %v4078
        %v4194 = vpack.c.bf16 %v4081, %v4080
        %v4195 = vpack.c.bf16 %v4083, %v4082
        %4212 = vrot.lane.b32.xlu0 %v4180, 32
        %v4213 = vpop.permute.xlu0 %4212
        %4214 = vrot.lane.b32.xlu0 %v4181, 32
        %v4215 = vpop.permute.xlu0 %4214
        %4216 = vrot.lane.b32.xlu0 %v4182, 32
        %v4217 = vpop.permute.xlu0 %4216
        %4218 = vrot.lane.b32.xlu0 %v4183, 32
        %v4219 = vpop.permute.xlu0 %4218
        %4220 = vrot.lane.b32.xlu0 %v4184, 32
        %v4221 = vpop.permute.xlu0 %4220
        %4222 = vrot.lane.b32.xlu0 %v4185, 32
        %v4223 = vpop.permute.xlu0 %4222
        %4224 = vrot.lane.b32.xlu0 %v4186, 32
        %v4225 = vpop.permute.xlu0 %4224
        %4226 = vrot.lane.b32.xlu0 %v4187, 32
        %v4227 = vpop.permute.xlu0 %4226
        %4228 = vrot.lane.b32.xlu0 %v4188, 32
        %v4229 = vpop.permute.xlu0 %4228
        %4230 = vrot.lane.b32.xlu0 %v4189, 32
        %v4231 = vpop.permute.xlu0 %4230
        %4232 = vrot.lane.b32.xlu0 %v4190, 32
        %v4233 = vpop.permute.xlu0 %4232
        %4234 = vrot.lane.b32.xlu0 %v4191, 32
        %v4235 = vpop.permute.xlu0 %4234
        %4236 = vrot.lane.b32.xlu0 %v4192, 32
        %v4237 = vpop.permute.xlu0 %4236
        %4238 = vrot.lane.b32.xlu0 %v4193, 32
        %v4239 = vpop.permute.xlu0 %4238
        %4240 = vrot.lane.b32.xlu0 %v4194, 32
        %v4241 = vpop.permute.xlu0 %4240
        %4242 = vrot.lane.b32.xlu0 %v4195, 32
        %v4243 = vpop.permute.xlu0 %4242
        %vm4260 = vcmask 523520
        %4261 = vst.msk [vmem:[#allocation4] sm:$0xff] %vm4260, %v4213
        %4262 = vst.msk [vmem:[#allocation4 + $0x8] sm:$0xff] %vm4260, %v4215
        %4263 = vst.msk [vmem:[#allocation4 + $0x10] sm:$0xff] %vm4260, %v4217
        %4264 = vst.msk [vmem:[#allocation4 + $0x18] sm:$0xff] %vm4260, %v4219
        %4265 = vst.msk [vmem:[#allocation4 + $0x20] sm:$0xff] %vm4260, %v4221
        %4266 = vst.msk [vmem:[#allocation4 + $0x28] sm:$0xff] %vm4260, %v4223
        %4267 = vst.msk [vmem:[#allocation4 + $0x30] sm:$0xff] %vm4260, %v4225
        %4268 = vst.msk [vmem:[#allocation4 + $0x38] sm:$0xff] %vm4260, %v4227
        %4269 = vst.msk [vmem:[#allocation4 + $0x40] sm:$0xff] %vm4260, %v4229
        %4270 = vst.msk [vmem:[#allocation4 + $0x48] sm:$0xff] %vm4260, %v4231
        %4271 = vst.msk [vmem:[#allocation4 + $0x50] sm:$0xff] %vm4260, %v4233
        %4272 = vst.msk [vmem:[#allocation4 + $0x58] sm:$0xff] %vm4260, %v4235
        %4273 = vst.msk [vmem:[#allocation4 + $0x60] sm:$0xff] %vm4260, %v4237
        %4274 = vst.msk [vmem:[#allocation4 + $0x68] sm:$0xff] %vm4260, %v4239
        %4275 = vst.msk [vmem:[#allocation4 + $0x70] sm:$0xff] %vm4260, %v4241
        %4276 = vst.msk [vmem:[#allocation4 + $0x78] sm:$0xff] %vm4260, %v4243
        %v4277 = vpack.c.bf16 %v4085, %v4084
        %v4278 = vpack.c.bf16 %v4087, %v4086
        %v4279 = vpack.c.bf16 %v4089, %v4088
        %v4280 = vpack.c.bf16 %v4091, %v4090
        %v4281 = vpack.c.bf16 %v4093, %v4092
        %v4282 = vpack.c.bf16 %v4095, %v4094
        %v4283 = vpack.c.bf16 %v4097, %v4096
        %v4284 = vpack.c.bf16 %v4099, %v4098
        %v4285 = vpack.c.bf16 %v4101, %v4100
        %v4286 = vpack.c.bf16 %v4103, %v4102
        %v4287 = vpack.c.bf16 %v4105, %v4104
        %v4288 = vpack.c.bf16 %v4107, %v4106
        %v4289 = vpack.c.bf16 %v4109, %v4108
        %v4290 = vpack.c.bf16 %v4111, %v4110
        %v4291 = vpack.c.bf16 %v4113, %v4112
        %v4292 = vpack.c.bf16 %v4115, %v4114
        %4309 = vrot.lane.b32.xlu0 %v4277, 64
        %v4310 = vpop.permute.xlu0 %4309
        %4311 = vrot.lane.b32.xlu0 %v4278, 64
        %v4312 = vpop.permute.xlu0 %4311
        %4313 = vrot.lane.b32.xlu0 %v4279, 64
        %v4314 = vpop.permute.xlu0 %4313
        %4315 = vrot.lane.b32.xlu0 %v4280, 64
        %v4316 = vpop.permute.xlu0 %4315
        %4317 = vrot.lane.b32.xlu0 %v4281, 64
        %v4318 = vpop.permute.xlu0 %4317
        %4319 = vrot.lane.b32.xlu0 %v4282, 64
        %v4320 = vpop.permute.xlu0 %4319
        %4321 = vrot.lane.b32.xlu0 %v4283, 64
        %v4322 = vpop.permute.xlu0 %4321
        %4323 = vrot.lane.b32.xlu0 %v4284, 64
        %v4324 = vpop.permute.xlu0 %4323
        %4325 = vrot.lane.b32.xlu0 %v4285, 64
        %v4326 = vpop.permute.xlu0 %4325
        %4327 = vrot.lane.b32.xlu0 %v4286, 64
        %v4328 = vpop.permute.xlu0 %4327
        %4329 = vrot.lane.b32.xlu0 %v4287, 64
        %v4330 = vpop.permute.xlu0 %4329
        %4331 = vrot.lane.b32.xlu0 %v4288, 64
        %v4332 = vpop.permute.xlu0 %4331
        %4333 = vrot.lane.b32.xlu0 %v4289, 64
        %v4334 = vpop.permute.xlu0 %4333
        %4335 = vrot.lane.b32.xlu0 %v4290, 64
        %v4336 = vpop.permute.xlu0 %4335
        %4337 = vrot.lane.b32.xlu0 %v4291, 64
        %v4338 = vpop.permute.xlu0 %4337
        %4339 = vrot.lane.b32.xlu0 %v4292, 64
        %v4340 = vpop.permute.xlu0 %4339
        %vm4357 = vcmask 785920
        %4358 = vst.msk [vmem:[#allocation4] sm:$0xff] %vm4357, %v4310
        %4359 = vst.msk [vmem:[#allocation4 + $0x8] sm:$0xff] %vm4357, %v4312
        %4360 = vst.msk [vmem:[#allocation4 + $0x10] sm:$0xff] %vm4357, %v4314
        %4361 = vst.msk [vmem:[#allocation4 + $0x18] sm:$0xff] %vm4357, %v4316
        %4362 = vst.msk [vmem:[#allocation4 + $0x20] sm:$0xff] %vm4357, %v4318
        %4363 = vst.msk [vmem:[#allocation4 + $0x28] sm:$0xff] %vm4357, %v4320
        %4364 = vst.msk [vmem:[#allocation4 + $0x30] sm:$0xff] %vm4357, %v4322
        %4365 = vst.msk [vmem:[#allocation4 + $0x38] sm:$0xff] %vm4357, %v4324
        %4366 = vst.msk [vmem:[#allocation4 + $0x40] sm:$0xff] %vm4357, %v4326
        %4367 = vst.msk [vmem:[#allocation4 + $0x48] sm:$0xff] %vm4357, %v4328
        %4368 = vst.msk [vmem:[#allocation4 + $0x50] sm:$0xff] %vm4357, %v4330
        %4369 = vst.msk [vmem:[#allocation4 + $0x58] sm:$0xff] %vm4357, %v4332
        %4370 = vst.msk [vmem:[#allocation4 + $0x60] sm:$0xff] %vm4357, %v4334
        %4371 = vst.msk [vmem:[#allocation4 + $0x68] sm:$0xff] %vm4357, %v4336
        %4372 = vst.msk [vmem:[#allocation4 + $0x70] sm:$0xff] %vm4357, %v4338
        %4373 = vst.msk [vmem:[#allocation4 + $0x78] sm:$0xff] %vm4357, %v4340
        %v4374 = vpack.c.bf16 %v4117, %v4116
        %v4375 = vpack.c.bf16 %v4119, %v4118
        %v4376 = vpack.c.bf16 %v4121, %v4120
        %v4377 = vpack.c.bf16 %v4123, %v4122
        %v4378 = vpack.c.bf16 %v4125, %v4124
        %v4379 = vpack.c.bf16 %v4127, %v4126
        %v4380 = vpack.c.bf16 %v4129, %v4128
        %v4381 = vpack.c.bf16 %v4131, %v4130
        %v4382 = vpack.c.bf16 %v4133, %v4132
        %v4383 = vpack.c.bf16 %v4135, %v4134
        %v4384 = vpack.c.bf16 %v4137, %v4136
        %v4385 = vpack.c.bf16 %v4139, %v4138
        %v4386 = vpack.c.bf16 %v4141, %v4140
        %v4387 = vpack.c.bf16 %v4143, %v4142
        %v4388 = vpack.c.bf16 %v4145, %v4144
        %v4389 = vpack.c.bf16 %v4147, %v4146
        %4406 = vrot.lane.b32.xlu0 %v4374, 96
        %v4407 = vpop.permute.xlu0 %4406
        %4408 = vrot.lane.b32.xlu0 %v4375, 96
        %v4409 = vpop.permute.xlu0 %4408
        %4410 = vrot.lane.b32.xlu0 %v4376, 96
        %v4411 = vpop.permute.xlu0 %4410
        %4412 = vrot.lane.b32.xlu0 %v4377, 96
        %v4413 = vpop.permute.xlu0 %4412
        %4414 = vrot.lane.b32.xlu0 %v4378, 96
        %v4415 = vpop.permute.xlu0 %4414
        %4416 = vrot.lane.b32.xlu0 %v4379, 96
        %v4417 = vpop.permute.xlu0 %4416
        %4418 = vrot.lane.b32.xlu0 %v4380, 96
        %v4419 = vpop.permute.xlu0 %4418
        %4420 = vrot.lane.b32.xlu0 %v4381, 96
        %v4421 = vpop.permute.xlu0 %4420
        %4422 = vrot.lane.b32.xlu0 %v4382, 96
        %v4423 = vpop.permute.xlu0 %4422
        %4424 = vrot.lane.b32.xlu0 %v4383, 96
        %v4425 = vpop.permute.xlu0 %4424
        %4426 = vrot.lane.b32.xlu0 %v4384, 96
        %v4427 = vpop.permute.xlu0 %4426
        %4428 = vrot.lane.b32.xlu0 %v4385, 96
        %v4429 = vpop.permute.xlu0 %4428
        %4430 = vrot.lane.b32.xlu0 %v4386, 96
        %v4431 = vpop.permute.xlu0 %4430
        %4432 = vrot.lane.b32.xlu0 %v4387, 96
        %v4433 = vpop.permute.xlu0 %4432
        %4434 = vrot.lane.b32.xlu0 %v4388, 96
        %v4435 = vpop.permute.xlu0 %4434
        %4436 = vrot.lane.b32.xlu0 %v4389, 96
        %v4437 = vpop.permute.xlu0 %4436
        %vm4454 = vcmask 1048320
        %4455 = vst.msk [vmem:[#allocation4] sm:$0xff] %vm4454, %v4407
        %4456 = vst.msk [vmem:[#allocation4 + $0x8] sm:$0xff] %vm4454, %v4409
        %4457 = vst.msk [vmem:[#allocation4 + $0x10] sm:$0xff] %vm4454, %v4411
        %4458 = vst.msk [vmem:[#allocation4 + $0x18] sm:$0xff] %vm4454, %v4413
        %4459 = vst.msk [vmem:[#allocation4 + $0x20] sm:$0xff] %vm4454, %v4415
        %4460 = vst.msk [vmem:[#allocation4 + $0x28] sm:$0xff] %vm4454, %v4417
        %4461 = vst.msk [vmem:[#allocation4 + $0x30] sm:$0xff] %vm4454, %v4419
        %4462 = vst.msk [vmem:[#allocation4 + $0x38] sm:$0xff] %vm4454, %v4421
        %4463 = vst.msk [vmem:[#allocation4 + $0x40] sm:$0xff] %vm4454, %v4423
        %4464 = vst.msk [vmem:[#allocation4 + $0x48] sm:$0xff] %vm4454, %v4425
        %4465 = vst.msk [vmem:[#allocation4 + $0x50] sm:$0xff] %vm4454, %v4427
        %4466 = vst.msk [vmem:[#allocation4 + $0x58] sm:$0xff] %vm4454, %v4429
        %4467 = vst.msk [vmem:[#allocation4 + $0x60] sm:$0xff] %vm4454, %v4431
        %4468 = vst.msk [vmem:[#allocation4 + $0x68] sm:$0xff] %vm4454, %v4433
        %4469 = vst.msk [vmem:[#allocation4 + $0x70] sm:$0xff] %vm4454, %v4435
        %4470 = vst.msk [vmem:[#allocation4 + $0x78] sm:$0xff] %vm4454, %v4437
        %v4471 = vld [vmem:[#allocation4] sm:$0xff]
        %v4472 = vld [vmem:[#allocation4 + $0x8] sm:$0xff]
        %v4473 = vld [vmem:[#allocation4 + $0x10] sm:$0xff]
        %v4474 = vld [vmem:[#allocation4 + $0x18] sm:$0xff]
        %v4475 = vld [vmem:[#allocation4 + $0x20] sm:$0xff]
        %v4476 = vld [vmem:[#allocation4 + $0x28] sm:$0xff]
        %v4477 = vld [vmem:[#allocation4 + $0x30] sm:$0xff]
        %v4478 = vld [vmem:[#allocation4 + $0x38] sm:$0xff]
        %v4479 = vld [vmem:[#allocation4 + $0x40] sm:$0xff]
        %v4480 = vld [vmem:[#allocation4 + $0x48] sm:$0xff]
        %v4481 = vld [vmem:[#allocation4 + $0x50] sm:$0xff]
        %v4482 = vld [vmem:[#allocation4 + $0x58] sm:$0xff]
        %v4483 = vld [vmem:[#allocation4 + $0x60] sm:$0xff]
        %v4484 = vld [vmem:[#allocation4 + $0x68] sm:$0xff]
        %v4485 = vld [vmem:[#allocation4 + $0x70] sm:$0xff]
        %v4486 = vld [vmem:[#allocation4 + $0x78] sm:$0xff]
        %v4487 = vld [vmem:[#allocation16] sm:$0xf]
        %v4488 = vld [vmem:[#allocation16 + $0x4] sm:$0xf]
        %v4489 = vld [vmem:[#allocation16 + $0x8] sm:$0xf]
        %v4490 = vld [vmem:[#allocation16 + $0xc] sm:$0xf]
        %v4491 = vld [vmem:[#allocation16 + $0x10] sm:$0xf]
        %v4492 = vld [vmem:[#allocation16 + $0x14] sm:$0xf]
        %v4493 = vld [vmem:[#allocation16 + $0x18] sm:$0xf]
        %v4494 = vld [vmem:[#allocation16 + $0x1c] sm:$0xf]
        %v4495 = vld [vmem:[#allocation16 + $0x20] sm:$0xf]
        %v4496 = vld [vmem:[#allocation16 + $0x24] sm:$0xf]
        %v4497 = vld [vmem:[#allocation16 + $0x28] sm:$0xf]
        %v4498 = vld [vmem:[#allocation16 + $0x2c] sm:$0xf]
        %v4499 = vld [vmem:[#allocation16 + $0x30] sm:$0xf]
        %v4500 = vld [vmem:[#allocation16 + $0x34] sm:$0xf]
        %v4501 = vld [vmem:[#allocation16 + $0x38] sm:$0xf]
        %v4502 = vld [vmem:[#allocation16 + $0x3c] sm:$0xf]
        %v4519 = vunpack.c.l.b16 %v4487
        %v4520 = vunpack.c.l.b16 %v4488
        %v4521 = vunpack.c.l.b16 %v4489
        %v4522 = vunpack.c.l.b16 %v4490
        %v4523 = vunpack.c.l.b16 %v4491
        %v4524 = vunpack.c.l.b16 %v4492
        %v4525 = vunpack.c.l.b16 %v4493
        %v4526 = vunpack.c.l.b16 %v4494
        %v4527 = vunpack.c.l.b16 %v4495
        %v4528 = vunpack.c.l.b16 %v4496
        %v4529 = vunpack.c.l.b16 %v4497
        %v4530 = vunpack.c.l.b16 %v4498
        %v4531 = vunpack.c.l.b16 %v4499
        %v4532 = vunpack.c.l.b16 %v4500
        %v4533 = vunpack.c.l.b16 %v4501
        %v4534 = vunpack.c.l.b16 %v4502
        %v4535 = vpack.c.b16 %v4520, %v4519
        %v4536 = vpack.c.b16 %v4522, %v4521
        %v4537 = vpack.c.b16 %v4524, %v4523
        %v4538 = vpack.c.b16 %v4526, %v4525
        %v4539 = vpack.c.b16 %v4528, %v4527
        %v4540 = vpack.c.b16 %v4530, %v4529
        %v4541 = vpack.c.b16 %v4532, %v4531
        %v4542 = vpack.c.b16 %v4534, %v4533
        %4551 = vmatprep.subr.bf16.mxu0 0
        %4552 = vmatpush1.bf16.msra.mxu0 %v4535
        %4553 = vmatprep.subr.bf16.mxu0 0
        %4554 = vmatpush1.bf16.msra.mxu0 %v4536
        %4555 = vmatprep.subr.bf16.mxu0 0
        %4556 = vmatpush1.bf16.msra.mxu0 %v4537
        %4557 = vmatprep.subr.bf16.mxu0 0
        %4558 = vmatpush1.bf16.msra.mxu0 %v4538
        %4559 = vmatprep.subr.bf16.mxu0 0
        %4560 = vmatpush1.bf16.msra.mxu0 %v4539
        %4561 = vmatprep.subr.bf16.mxu0 0
        %4562 = vmatpush1.bf16.msra.mxu0 %v4540
        %4563 = vmatprep.subr.bf16.mxu0 0
        %4564 = vmatpush1.bf16.msra.mxu0 %v4541
        %4565 = vmatprep.subr.bf16.mxu0 0
        %4566 = vmatpush1.bf16.msra.mxu0 %v4542
        %4567 = vmatprep.subr.bf16.mxu0 0
        %4568 = vmatpush1.bf16.msra.mxu0 0
        %4569 = vmatprep.subr.bf16.mxu0 0
        %4570 = vmatpush1.bf16.msra.mxu0 0
        %4571 = vmatprep.subr.bf16.mxu0 0
        %4572 = vmatpush1.bf16.msra.mxu0 0
        %4573 = vmatprep.subr.bf16.mxu0 0
        %4574 = vmatpush1.bf16.msra.mxu0 0
        %4575 = vmatprep.subr.bf16.mxu0 0
        %4576 = vmatpush1.bf16.msra.mxu0 0
        %4577 = vmatprep.subr.bf16.mxu0 0
        %4578 = vmatpush1.bf16.msra.mxu0 0
        %4579 = vmatprep.subr.bf16.mxu0 0
        %4580 = vmatpush1.bf16.msra.mxu0 0
        %4581 = vmatprep.subr.bf16.mxu0 0
        %4582 = vmatpush1.bf16.msra.mxu0 0
        %4583 = vmatprep.mubr.bf16.mxu0 0
        %4584 = vmatmul.mubr.bf16.gmra.mrb[0].mxu0 %v4471
        %v4585 = vpop.f32.mrb[0].mxu0
        %v4586 = vadd.f32 0.0, %v4585
        %v4587 = vpop.f32.mrb[0].mxu0
        %v4588 = vpop.f32.mrb[0].mxu0
        %v4589 = vadd.f32 0.0, %v4588
        %v4590 = vpop.f32.mrb[0].mxu0
        %4591 = vmatprep.mubr.bf16.mxu0 0
        %4592 = vmatmul.mubr.bf16.gmra.mrb[0].mxu0 %v4472
        %v4593 = vpop.f32.mrb[0].mxu0
        %v4594 = vadd.f32 0.0, %v4593
        %v4595 = vpop.f32.mrb[0].mxu0
        %v4596 = vpop.f32.mrb[0].mxu0
        %v4597 = vadd.f32 0.0, %v4596
        %v4598 = vpop.f32.mrb[0].mxu0
        %4599 = vmatprep.mubr.bf16.mxu0 0
        %4600 = vmatmul.mubr.bf16.gmra.mrb[0].mxu0 %v4473
        %v4601 = vpop.f32.mrb[0].mxu0
        %v4602 = vadd.f32 0.0, %v4601
        %v4603 = vpop.f32.mrb[0].mxu0
        %v4604 = vpop.f32.mrb[0].mxu0
        %v4605 = vadd.f32 0.0, %v4604
        %v4606 = vpop.f32.mrb[0].mxu0
        %4607 = vmatprep.mubr.bf16.mxu0 0
        %4608 = vmatmul.mubr.bf16.gmra.mrb[0].mxu0 %v4474
        %v4609 = vpop.f32.mrb[0].mxu0
        %v4610 = vadd.f32 0.0, %v4609
        %v4611 = vpop.f32.mrb[0].mxu0
        %v4612 = vpop.f32.mrb[0].mxu0
        %v4613 = vadd.f32 0.0, %v4612
        %v4614 = vpop.f32.mrb[0].mxu0
        %4615 = vmatprep.mubr.bf16.mxu0 0
        %4616 = vmatmul.mubr.bf16.gmra.mrb[0].mxu0 %v4475
        %v4617 = vpop.f32.mrb[0].mxu0
        %v4618 = vadd.f32 0.0, %v4617
        %v4619 = vpop.f32.mrb[0].mxu0
        %v4620 = vpop.f32.mrb[0].mxu0
        %v4621 = vadd.f32 0.0, %v4620
        %v4622 = vpop.f32.mrb[0].mxu0
        %4623 = vmatprep.mubr.bf16.mxu0 0
        %4624 = vmatmul.mubr.bf16.gmra.mrb[0].mxu0 %v4476
        %v4625 = vpop.f32.mrb[0].mxu0
        %v4626 = vadd.f32 0.0, %v4625
        %v4627 = vpop.f32.mrb[0].mxu0
        %v4628 = vpop.f32.mrb[0].mxu0
        %v4629 = vadd.f32 0.0, %v4628
        %v4630 = vpop.f32.mrb[0].mxu0
        %4631 = vmatprep.mubr.bf16.mxu0 0
        %4632 = vmatmul.mubr.bf16.gmra.mrb[0].mxu0 %v4477
        %v4633 = vpop.f32.mrb[0].mxu0
        %v4634 = vadd.f32 0.0, %v4633
        %v4635 = vpop.f32.mrb[0].mxu0
        %v4636 = vpop.f32.mrb[0].mxu0
        %v4637 = vadd.f32 0.0, %v4636
        %v4638 = vpop.f32.mrb[0].mxu0
        %4639 = vmatprep.mubr.bf16.mxu0 0
        %4640 = vmatmul.mubr.bf16.gmra.mrb[0].mxu0 %v4478
        %v4641 = vpop.f32.mrb[0].mxu0
        %v4642 = vadd.f32 0.0, %v4641
        %v4643 = vpop.f32.mrb[0].mxu0
        %v4644 = vpop.f32.mrb[0].mxu0
        %v4645 = vadd.f32 0.0, %v4644
        %v4646 = vpop.f32.mrb[0].mxu0
        %4647 = vmatprep.mubr.bf16.mxu0 0
        %4648 = vmatmul.mubr.bf16.gmra.mrb[0].mxu0 %v4479
        %v4649 = vpop.f32.mrb[0].mxu0
        %v4650 = vadd.f32 0.0, %v4649
        %v4651 = vpop.f32.mrb[0].mxu0
        %v4652 = vpop.f32.mrb[0].mxu0
        %v4653 = vadd.f32 0.0, %v4652
        %v4654 = vpop.f32.mrb[0].mxu0
        %4655 = vmatprep.mubr.bf16.mxu0 0
        %4656 = vmatmul.mubr.bf16.gmra.mrb[0].mxu0 %v4480
        %v4657 = vpop.f32.mrb[0].mxu0
        %v4658 = vadd.f32 0.0, %v4657
        %v4659 = vpop.f32.mrb[0].mxu0
        %v4660 = vpop.f32.mrb[0].mxu0
        %v4661 = vadd.f32 0.0, %v4660
        %v4662 = vpop.f32.mrb[0].mxu0
        %4663 = vmatprep.mubr.bf16.mxu0 0
        %4664 = vmatmul.mubr.bf16.gmra.mrb[0].mxu0 %v4481
        %v4665 = vpop.f32.mrb[0].mxu0
        %v4666 = vadd.f32 0.0, %v4665
        %v4667 = vpop.f32.mrb[0].mxu0
        %v4668 = vpop.f32.mrb[0].mxu0
        %v4669 = vadd.f32 0.0, %v4668
        %v4670 = vpop.f32.mrb[0].mxu0
        %4671 = vmatprep.mubr.bf16.mxu0 0
        %4672 = vmatmul.mubr.bf16.gmra.mrb[0].mxu0 %v4482
        %v4673 = vpop.f32.mrb[0].mxu0
        %v4674 = vadd.f32 0.0, %v4673
        %v4675 = vpop.f32.mrb[0].mxu0
        %v4676 = vpop.f32.mrb[0].mxu0
        %v4677 = vadd.f32 0.0, %v4676
        %v4678 = vpop.f32.mrb[0].mxu0
        %4679 = vmatprep.mubr.bf16.mxu0 0
        %4680 = vmatmul.mubr.bf16.gmra.mrb[0].mxu0 %v4483
        %v4681 = vpop.f32.mrb[0].mxu0
        %v4682 = vadd.f32 0.0, %v4681
        %v4683 = vpop.f32.mrb[0].mxu0
        %v4684 = vpop.f32.mrb[0].mxu0
        %v4685 = vadd.f32 0.0, %v4684
        %v4686 = vpop.f32.mrb[0].mxu0
        %4687 = vmatprep.mubr.bf16.mxu0 0
        %4688 = vmatmul.mubr.bf16.gmra.mrb[0].mxu0 %v4484
        %v4689 = vpop.f32.mrb[0].mxu0
        %v4690 = vadd.f32 0.0, %v4689
        %v4691 = vpop.f32.mrb[0].mxu0
        %v4692 = vpop.f32.mrb[0].mxu0
        %v4693 = vadd.f32 0.0, %v4692
        %v4694 = vpop.f32.mrb[0].mxu0
        %4695 = vmatprep.mubr.bf16.mxu0 0
        %4696 = vmatmul.mubr.bf16.gmra.mrb[0].mxu0 %v4485
        %v4697 = vpop.f32.mrb[0].mxu0
        %v4698 = vadd.f32 0.0, %v4697
        %v4699 = vpop.f32.mrb[0].mxu0
        %v4700 = vpop.f32.mrb[0].mxu0
        %v4701 = vadd.f32 0.0, %v4700
        %v4702 = vpop.f32.mrb[0].mxu0
        %4703 = vmatprep.mubr.bf16.mxu0 0
        %4704 = vmatmul.mubr.bf16.gmra.mrb[0].mxu0 %v4486
        %v4705 = vpop.f32.mrb[0].mxu0
        %v4706 = vadd.f32 0.0, %v4705
        %v4707 = vpop.f32.mrb[0].mxu0
        %v4708 = vpop.f32.mrb[0].mxu0
        %v4709 = vadd.f32 0.0, %v4708
        %v4710 = vpop.f32.mrb[0].mxu0
        %4711 = vdwg.mxu0
        %4712 = vst [vmem:[%s449] sm:$0xff] %v4586
        %4713 = vst [vmem:[%s449 + $0x8] sm:$0xff] %v4589
        %4714 = vst [vmem:[%s449 + $0x10] sm:$0xff] %v4594
        %4715 = vst [vmem:[%s449 + $0x18] sm:$0xff] %v4597
        %4716 = vst [vmem:[%s449 + $0x20] sm:$0xff] %v4602
        %4717 = vst [vmem:[%s449 + $0x28] sm:$0xff] %v4605
        %4718 = vst [vmem:[%s449 + $0x30] sm:$0xff] %v4610
        %4719 = vst [vmem:[%s449 + $0x38] sm:$0xff] %v4613
        %4720 = vst [vmem:[%s449 + $0x40] sm:$0xff] %v4618
        %4721 = vst [vmem:[%s449 + $0x48] sm:$0xff] %v4621
        %4722 = vst [vmem:[%s449 + $0x50] sm:$0xff] %v4626
        %4723 = vst [vmem:[%s449 + $0x58] sm:$0xff] %v4629
        %4724 = vst [vmem:[%s449 + $0x60] sm:$0xff] %v4634
        %4725 = vst [vmem:[%s449 + $0x68] sm:$0xff] %v4637
        %4726 = vst [vmem:[%s449 + $0x70] sm:$0xff] %v4642
        %4727 = vst [vmem:[%s449 + $0x78] sm:$0xff] %v4645
        %4728 = vst [vmem:[%s449 + $0x80] sm:$0xff] %v4650
        %4729 = vst [vmem:[%s449 + $0x88] sm:$0xff] %v4653
        %4730 = vst [vmem:[%s449 + $0x90] sm:$0xff] %v4658
        %4731 = vst [vmem:[%s449 + $0x98] sm:$0xff] %v4661
        %4732 = vst [vmem:[%s449 + $0xa0] sm:$0xff] %v4666
        %4733 = vst [vmem:[%s449 + $0xa8] sm:$0xff] %v4669
        %4734 = vst [vmem:[%s449 + $0xb0] sm:$0xff] %v4674
        %4735 = vst [vmem:[%s449 + $0xb8] sm:$0xff] %v4677
        %4736 = vst [vmem:[%s449 + $0xc0] sm:$0xff] %v4682
        %4737 = vst [vmem:[%s449 + $0xc8] sm:$0xff] %v4685
        %4738 = vst [vmem:[%s449 + $0xd0] sm:$0xff] %v4690
        %4739 = vst [vmem:[%s449 + $0xd8] sm:$0xff] %v4693
        %4740 = vst [vmem:[%s449 + $0xe0] sm:$0xff] %v4698
        %4741 = vst [vmem:[%s449 + $0xe8] sm:$0xff] %v4701
        %4742 = vst [vmem:[%s449 + $0xf0] sm:$0xff] %v4706
        %4743 = vst [vmem:[%s449 + $0xf8] sm:$0xff] %v4709
        %s4744 = sand.u32 %s215, 1
        %s4745 = scalar_lea.sflag [#allocation7], %s4744
        %s4746 = sand.u32 %s215, 1
        %s4747 = smul.addr %s4746, 256
        %s4748 = scalar_lea.vmem [#allocation17], %s4747
        // Predicated region
        $region81: #{tpu_custom_call.1} parent=47 // pred_check
          %p4749 = pneg %p225
        $region82: #{tpu_custom_call.1} parent=47 // pred_check_branch
          %4751 = sbr.rel (%p4749) target = $region84
        $region83: #{tpu_custom_call.1} parent=47 // pred_region
          %s4752 = smul.u32 32, %s34
          %s4754 = ssub.s32 4096, 4096
          %4755 = vsyncadd %s4745, %s4754
          %s4756 = smul.addr %s33, 64
          %s4757 = sadd.s32 %s4752, %s4756
          %s4758 = smul.addr %s4757, 128
          %s4759 = scalar_lea.hbm %s7, %s4758
          %s4760 = sshll.u32 %s4748, 4
          %s4761 = int_to_ptr.vmem [resolvable:$true] %s4760
          %4766 = dma.vmem_to_hbm [thread:$0]  %s4761, 4096, %s4759, %s4745, 128, 128, 8
        $region84: #{tpu_custom_call.1} parent=47 // pred_fallthru
          _
      $region48: #{tpu_custom_call.1} parent=5 // pred_fallthru
        _
      %p4767 = scmp.le.s32.totalorder 2, %s24
      // Predicated region
      $region85: #{tpu_custom_call.1} parent=5 // pred_check
        %p4768 = pneg %p4767
      $region86: #{tpu_custom_call.1} parent=5 // pred_check_branch
        %4770 = sbr.rel (%p4768) target = $region88
      $region87: #{tpu_custom_call.1} parent=5 // pred_region
        %s4771 = ssub.s32 %s24, 2
        // Predicated region
        $region89: #{tpu_custom_call.1} parent=87 // pred_check
          %p4772 = pneg %p231
        $region90: #{tpu_custom_call.1} parent=87 // pred_check_branch
          %4774 = sbr.rel (%p4772) target = $region92
        $region91: #{tpu_custom_call.1} parent=87 // pred_region
          %s4775 = sand.u32 %s216, 1
          %s4776 = scalar_lea.sflag [#allocation7], %s4775
          %s4777 = sand.u32 %s216, 1
          %s4778 = smul.addr %s4777, 256
          %s4779 = scalar_lea.vmem [#allocation17], %s4778
          %4780 = dma.done %s4776, 4096
        $region92: #{tpu_custom_call.1} parent=87 // pred_fallthru
          _
      $region88: #{tpu_custom_call.1} parent=5 // pred_fallthru
        _
    $region6: #{tpu_custom_call.1} parent=1 // loop_footer
      %s28 = sadd.s32 1, %s24
    $region7: #{tpu_custom_call.1} parent=1 // loop_footer_branch
      %23 = sbr.rel target = $region3
    $region8: #{tpu_custom_call.1} parent=1 // loop_exit
      _
    %4781 = vsyncpa [#allocation6], 1
    %s4782 = scalar_lea.sflag [#allocation6], 1
    %4783 = vsyncpa %s4782, 1
    %4784 = vsyncpa [#allocation9], 1
    %s4785 = scalar_lea.sflag [#allocation9], 1
    %4786 = vsyncpa %s4785, 1
    %4787 = vsyncpa [#allocation12], 1
    %4788 = vsyncpa [#allocation15], 1
    %4789 = vsyncpa [#allocation7], 1
    %s4790 = scalar_lea.sflag [#allocation7], 1
    %4791 = vsyncpa %s4790, 1

</llo_original>
